<compile_context>
chip_gen: v5e
topology: v5e:2x2
jax: 0.10.0
libtpu: 0.0.40
codegen_flags: <defaults>
</compile_context>

<pallas_src>
import jax
import jax.numpy as jnp
from jax.experimental import pallas as pl
from jax.experimental.pallas import tpu as pltpu

INPUT_DIM = 784
LATENT_DIM = 20


# ----------------------------------------------------------------------------
# kernel
# ----------------------------------------------------------------------------
def vae_kernel(x_ref, eps_ref,
               w1, b1, w2, b2, w3, b3,
               wmu, bmu, wlv, blv,
               wd1, bd1, wd2, bd2, wd3, bd3, wd4, bd4,
               xpred_ref, mu_ref, logvar_ref):
    """One batch tile of the fused VAE forward."""

    def dense(a, w, b):
        # bf16 MXU matmul, f32 accumulation, f32 bias add.
        return jnp.dot(a.astype(jnp.bfloat16), w[...],
                       preferred_element_type=jnp.float32) + b[...]

    # ---------------- encoder ----------------
    h = jnp.maximum(dense(x_ref[...], w1, b1), 0.0)     # (TB, 512)
    h = jnp.maximum(dense(h, w2, b2), 0.0)               # (TB, 256)
    h = jnp.maximum(dense(h, w3, b3), 0.0)               # (TB, 128)

    mu = dense(h, wmu, bmu)                               # (TB, 20) f32
    logvar = dense(h, wlv, blv)                           # (TB, 20) f32

    # ---------------- reparametrize ----------------
    # TODO(synk): no clamp on logvar before exp (matches the PyTorch reference).
    std = jnp.exp(0.5 * logvar)
    z = mu + eps_ref[...] * std                           # (TB, 20) f32

    # ---------------- decoder ----------------
    d = jnp.maximum(dense(z, wd1, bd1), 0.0)              # (TB, 128)
    d = jnp.maximum(dense(d, wd2, bd2), 0.0)              # (TB, 256)
    d = jnp.maximum(dense(d, wd3, bd3), 0.0)              # (TB, 512)
    logits = dense(d, wd4, bd4)                           # (TB, 784) f32

    xpred_ref[...] = jax.nn.sigmoid(logits).astype(xpred_ref.dtype)
    mu_ref[...] = mu
    logvar_ref[...] = logvar


# ----------------------------------------------------------------------------
# parameter construction / preparation
# ----------------------------------------------------------------------------
def init_linear(key, fan_in, fan_out):
    """Matches torch.nn.Linear default init (uniform +-1/sqrt(fan_in)).
    Weight stored as (fan_in, fan_out)."""
    kw, kb = jax.random.split(key)
    bound = 1.0 / (fan_in ** 0.5)
    w = jax.random.uniform(kw, (fan_in, fan_out), minval=-bound, maxval=bound,
                           dtype=jnp.float32)
    b = jax.random.uniform(kb, (1, fan_out), minval=-bound, maxval=bound,
                           dtype=jnp.float32)
    return w, b


def init_vae_params(key, input_dim=INPUT_DIM, latent_dim=LATENT_DIM):
    dims = [
        (input_dim, 512), (512, 256), (256, 128),                      # encoder
        (128, latent_dim), (128, latent_dim),                          # fc_mu, fc_logvar
        (latent_dim, 128), (128, 256), (256, 512), (512, input_dim),   # decoder
    ]
    keys = jax.random.split(key, len(dims))
    return [init_linear(k, fi, fo) for k, (fi, fo) in zip(keys, dims)]


def prepare_params(params):
    """Cast weights to bf16 (MXU inputs), keep biases f32; flatten in kernel order."""
    flat = []
    for w, b in params:
        flat.extend([w.astype(jnp.bfloat16), b.astype(jnp.float32)])
    return flat


# ----------------------------------------------------------------------------
# wrapper
# ----------------------------------------------------------------------------
def _round_up(n, m):
    return ((n + m - 1) // m) * m


def _default_vmem_limit():
    """48 MiB on v7x (64 MiB physical VMEM), 64 MiB on v5e/v6e (128 MiB physical)."""
    try:
        kind = jax.devices()[0].device_kind.lower()
    except Exception:
        kind = ""
    if "v7" in kind or "7x" in kind:
        return 48 << 20
    return 64 << 20


def vae_forward(x, eps, params, *, batch_tile=None,
                xpred_dtype=jnp.bfloat16, core_parallel=False):
    """x: (B, 1, 28, 28) float (NCHW), eps: (B, LATENT_DIM) float.
    Returns (x_pred (B,1,28,28) [xpred_dtype], mu (B,LATENT_DIM) f32,
             logvar (B,LATENT_DIM) f32)."""
    B = x.shape[0]
    input_dim = params[0][0].shape[0]
    latent_dim = params[3][0].shape[1]

    # Metadata-only reshape; no extra HBM pass (input stays f32, cast in-kernel).
    x_flat = x.reshape(B, input_dim)
    eps = eps.astype(jnp.float32)

    # Batch tile: 512 for large batches (amortizes per-step pipeline overhead
    # and fills the 256-wide MXU), 128 for small ones.  For B <= tile the block
    # is exactly the batch (single block, no padding / ragged edge).
    if batch_tile is None:
        batch_tile = 512 if B >= 512 else (256 if B >= 256 else 128)
    if B <= batch_tile:
        tb = B
    else:
        tb = _round_up(batch_tile, 8)
    grid = pl.cdiv(B, tb)

    prepped = prepare_params(params)

    def tile_spec(d):
        return pl.BlockSpec((tb, d), lambda i: (i, 0))

    def resident_spec(p):
        # Full-shape block, constant index_map -> stays VMEM-resident across
        # grid steps (Mosaic skips the redundant DMA for unchanged blocks).
        return pl.BlockSpec(p.shape, lambda i: (0, 0))

    out_shape = (
        jax.ShapeDtypeStruct((B, input_dim), xpred_dtype),
        jax.ShapeDtypeStruct((B, latent_dim), jnp.float32),
        jax.ShapeDtypeStruct((B, latent_dim), jnp.float32),
    )
    out_specs = (tile_spec(input_dim), tile_spec(latent_dim), tile_spec(latent_dim))

    # Batch axis is embarrassingly parallel.  On v7x (2 TensorCores / chip)
    # pass core_parallel=True (and make sure grid >= 2) to shard it across
    # both cores via CORE_PARALLEL when this jax version exposes it.
    if core_parallel and hasattr(pltpu, "CORE_PARALLEL"):
        semantics = (pltpu.CORE_PARALLEL,)
    else:
        semantics = ("parallel",)

    xpred, mu, logvar = pl.pallas_call(
        vae_kernel,
        grid=(grid,),
        in_specs=[tile_spec(input_dim), tile_spec(latent_dim)]
                 + [resident_spec(p) for p in prepped],
        out_specs=out_specs,
        out_shape=out_shape,
        compiler_params=pltpu.CompilerParams(
            dimension_semantics=semantics,
            vmem_limit_bytes=_default_vmem_limit()),
    )(x_flat, eps, *prepped)

    x_pred = xpred.reshape(B, 1, 28, 28)   # free reshape, matches the torch module
    return x_pred, mu, logvar


# ----------------------------------------------------------------------------
# pure-JAX reference (f32) for correctness checking
# ----------------------------------------------------------------------------
def vae_reference(x, eps, params):
    (w1, b1), (w2, b2), (w3, b3), (wmu, bmu), (wlv, blv), \
        (wd1, bd1), (wd2, bd2), (wd3, bd3), (wd4, bd4) = params
    h = x.reshape(x.shape[0], INPUT_DIM).astype(jnp.float32)
    h = jax.nn.relu(h @ w1 + b1)
    h = jax.nn.relu(h @ w2 + b2)
    h = jax.nn.relu(h @ w3 + b3)
    mu = h @ wmu + bmu
    logvar = h @ wlv + blv
    z = mu + eps * jnp.exp(0.5 * logvar)
    d = jax.nn.relu(z @ wd1 + bd1)
    d = jax.nn.relu(d @ wd2 + bd2)
    d = jax.nn.relu(d @ wd3 + bd3)
    x_pred = jax.nn.sigmoid(d @ wd4 + bd4)
    return x_pred.reshape(-1, 1, 28, 28), mu, logvar


if __name__ == "__main__":
    key = jax.random.PRNGKey(0)
    k_params, k_x, k_eps = jax.random.split(key, 3)

    B = 2
    params = init_vae_params(k_params)
    x = jax.random.normal(k_x, (B, 1, 28, 28), dtype=jnp.float32)
    eps = jax.random.normal(k_eps, (B, LATENT_DIM), dtype=jnp.float32)

    fwd = jax.jit(vae_forward)
    x_pred, mu, logvar = fwd(x, eps, params)
    jax.block_until_ready((x_pred, mu, logvar))

    # shape / sanity checks
    assert x_pred.shape == (B, 1, 28, 28)
    assert mu.shape == (B, LATENT_DIM)
    assert logvar.shape == (B, LATENT_DIM)
    assert bool(jnp.all(jnp.isfinite(x_pred.astype(jnp.float32))))
    assert bool(jnp.all((x_pred >= 0.0) & (x_pred <= 1.0)))
    assert bool(jnp.all(jnp.isfinite(mu))) and bool(jnp.all(jnp.isfinite(logvar)))

    # numerical check vs f32 reference (kernel matmuls run in bf16)
    xr, mur, lvr = vae_reference(x, eps, params)
    assert float(jnp.max(jnp.abs(x_pred.astype(jnp.float32) - xr))) < 3e-2
    assert float(jnp.max(jnp.abs(mu - mur))) < 5e-2
    assert float(jnp.max(jnp.abs(logvar - lvr))) < 5e-2

    print("KERNEL_OK")
</pallas_src>

<mosaic_0001>
module attributes {stable_mosaic.version = 11 : i64} {
  func.func @vae_kernel(%arg0: i32, %arg1: memref<2x784xf32, #tpu.memory_space<vmem>>, %arg2: memref<2x20xf32, #tpu.memory_space<vmem>>, %arg3: memref<784x512xbf16, #tpu.memory_space<vmem>>, %arg4: memref<1x512xf32, #tpu.memory_space<vmem>>, %arg5: memref<512x256xbf16, #tpu.memory_space<vmem>>, %arg6: memref<1x256xf32, #tpu.memory_space<vmem>>, %arg7: memref<256x128xbf16, #tpu.memory_space<vmem>>, %arg8: memref<1x128xf32, #tpu.memory_space<vmem>>, %arg9: memref<128x20xbf16, #tpu.memory_space<vmem>>, %arg10: memref<1x20xf32, #tpu.memory_space<vmem>>, %arg11: memref<128x20xbf16, #tpu.memory_space<vmem>>, %arg12: memref<1x20xf32, #tpu.memory_space<vmem>>, %arg13: memref<20x128xbf16, #tpu.memory_space<vmem>>, %arg14: memref<1x128xf32, #tpu.memory_space<vmem>>, %arg15: memref<128x256xbf16, #tpu.memory_space<vmem>>, %arg16: memref<1x256xf32, #tpu.memory_space<vmem>>, %arg17: memref<256x512xbf16, #tpu.memory_space<vmem>>, %arg18: memref<1x512xf32, #tpu.memory_space<vmem>>, %arg19: memref<512x784xbf16, #tpu.memory_space<vmem>>, %arg20: memref<1x784xf32, #tpu.memory_space<vmem>>, %arg21: memref<2x784xbf16, #tpu.memory_space<vmem>>, %arg22: memref<2x20xf32, #tpu.memory_space<vmem>>, %arg23: memref<2x20xf32, #tpu.memory_space<vmem>>) attributes {dimension_semantics = [#tpu.dimension_semantics<parallel>], iteration_bounds = array<i64: 1>, scalar_prefetch = 0 : i64, scratch_operands = 0 : i64, tpu.core_type = #tpu.core_type<tc>, window_params = [{transform_indices = @transform_0, window_bounds = array<i64: 2, 784>}, {transform_indices = @transform_1, window_bounds = array<i64: 2, 20>}, {pipeline_mode = #tpu.pipeline_mode<synchronous>, transform_indices = @transform_2, window_bounds = array<i64: 784, 512>}, {pipeline_mode = #tpu.pipeline_mode<synchronous>, transform_indices = @transform_3, window_bounds = array<i64: 1, 512>}, {pipeline_mode = #tpu.pipeline_mode<synchronous>, transform_indices = @transform_4, window_bounds = array<i64: 512, 256>}, {pipeline_mode = #tpu.pipeline_mode<synchronous>, transform_indices = @transform_5, window_bounds = array<i64: 1, 256>}, {pipeline_mode = #tpu.pipeline_mode<synchronous>, transform_indices = @transform_6, window_bounds = array<i64: 256, 128>}, {pipeline_mode = #tpu.pipeline_mode<synchronous>, transform_indices = @transform_7, window_bounds = array<i64: 1, 128>}, {pipeline_mode = #tpu.pipeline_mode<synchronous>, transform_indices = @transform_8, window_bounds = array<i64: 128, 20>}, {pipeline_mode = #tpu.pipeline_mode<synchronous>, transform_indices = @transform_9, window_bounds = array<i64: 1, 20>}, {pipeline_mode = #tpu.pipeline_mode<synchronous>, transform_indices = @transform_10, window_bounds = array<i64: 128, 20>}, {pipeline_mode = #tpu.pipeline_mode<synchronous>, transform_indices = @transform_11, window_bounds = array<i64: 1, 20>}, {pipeline_mode = #tpu.pipeline_mode<synchronous>, transform_indices = @transform_12, window_bounds = array<i64: 20, 128>}, {pipeline_mode = #tpu.pipeline_mode<synchronous>, transform_indices = @transform_13, window_bounds = array<i64: 1, 128>}, {pipeline_mode = #tpu.pipeline_mode<synchronous>, transform_indices = @transform_14, window_bounds = array<i64: 128, 256>}, {pipeline_mode = #tpu.pipeline_mode<synchronous>, transform_indices = @transform_15, window_bounds = array<i64: 1, 256>}, {pipeline_mode = #tpu.pipeline_mode<synchronous>, transform_indices = @transform_16, window_bounds = array<i64: 256, 512>}, {pipeline_mode = #tpu.pipeline_mode<synchronous>, transform_indices = @transform_17, window_bounds = array<i64: 1, 512>}, {pipeline_mode = #tpu.pipeline_mode<synchronous>, transform_indices = @transform_18, window_bounds = array<i64: 512, 784>}, {pipeline_mode = #tpu.pipeline_mode<synchronous>, transform_indices = @transform_19, window_bounds = array<i64: 1, 784>}, {transform_indices = @transform_20, window_bounds = array<i64: 2, 784>}, {transform_indices = @transform_21, window_bounds = array<i64: 2, 20>}, {transform_indices = @transform_22, window_bounds = array<i64: 2, 20>}]} {
    %c0 = arith.constant 0 : index
    %c0_0 = arith.constant 0 : index
    %0 = vector.load %arg1[%c0, %c0_0] : memref<2x784xf32, #tpu.memory_space<vmem>>, vector<2x784xf32>
    %1 = arith.truncf %0 : vector<2x784xf32> to vector<2x784xbf16>
    %c0_1 = arith.constant 0 : index
    %c0_2 = arith.constant 0 : index
    %2 = vector.load %arg3[%c0_1, %c0_2] : memref<784x512xbf16, #tpu.memory_space<vmem>>, vector<784x512xbf16>
    %cst = arith.constant dense<0.000000e+00> : vector<2x512xf32>
    %3 = tpu.matmul %1, %2, %cst {dimension_numbers = #tpu.dot_dimension_numbers<[1], [0], [0], [1], [0, 0, 1, 1], [], []>} : vector<2x784xbf16>, vector<784x512xbf16>, vector<2x512xf32> -> vector<2x512xf32>
    %c0_3 = arith.constant 0 : index
    %c0_4 = arith.constant 0 : index
    %4 = vector.load %arg4[%c0_3, %c0_4] : memref<1x512xf32, #tpu.memory_space<vmem>>, vector<1x512xf32>
    %5 = vector.broadcast %4 : vector<1x512xf32> to vector<2x512xf32>
    %6 = arith.addf %3, %5 : vector<2x512xf32>
    %cst_5 = arith.constant 0.000000e+00 : f32
    %7 = vector.broadcast %cst_5 : f32 to vector<2x512xf32>
    %8 = arith.maximumf %6, %7 : vector<2x512xf32>
    %9 = arith.truncf %8 : vector<2x512xf32> to vector<2x512xbf16>
    %c0_6 = arith.constant 0 : index
    %c0_7 = arith.constant 0 : index
    %10 = vector.load %arg5[%c0_6, %c0_7] : memref<512x256xbf16, #tpu.memory_space<vmem>>, vector<512x256xbf16>
    %cst_8 = arith.constant dense<0.000000e+00> : vector<2x256xf32>
    %11 = tpu.matmul %9, %10, %cst_8 {dimension_numbers = #tpu.dot_dimension_numbers<[1], [0], [0], [1], [0, 0, 1, 1], [], []>} : vector<2x512xbf16>, vector<512x256xbf16>, vector<2x256xf32> -> vector<2x256xf32>
    %c0_9 = arith.constant 0 : index
    %c0_10 = arith.constant 0 : index
    %12 = vector.load %arg6[%c0_9, %c0_10] : memref<1x256xf32, #tpu.memory_space<vmem>>, vector<1x256xf32>
    %13 = vector.broadcast %12 : vector<1x256xf32> to vector<2x256xf32>
    %14 = arith.addf %11, %13 : vector<2x256xf32>
    %cst_11 = arith.constant 0.000000e+00 : f32
    %15 = vector.broadcast %cst_11 : f32 to vector<2x256xf32>
    %16 = arith.maximumf %14, %15 : vector<2x256xf32>
    %17 = arith.truncf %16 : vector<2x256xf32> to vector<2x256xbf16>
    %c0_12 = arith.constant 0 : index
    %c0_13 = arith.constant 0 : index
    %18 = vector.load %arg7[%c0_12, %c0_13] : memref<256x128xbf16, #tpu.memory_space<vmem>>, vector<256x128xbf16>
    %cst_14 = arith.constant dense<0.000000e+00> : vector<2x128xf32>
    %19 = tpu.matmul %17, %18, %cst_14 {dimension_numbers = #tpu.dot_dimension_numbers<[1], [0], [0], [1], [0, 0, 1, 1], [], []>} : vector<2x256xbf16>, vector<256x128xbf16>, vector<2x128xf32> -> vector<2x128xf32>
    %c0_15 = arith.constant 0 : index
    %c0_16 = arith.constant 0 : index
    %20 = vector.load %arg8[%c0_15, %c0_16] : memref<1x128xf32, #tpu.memory_space<vmem>>, vector<1x128xf32>
    %21 = vector.broadcast %20 : vector<1x128xf32> to vector<2x128xf32>
    %22 = arith.addf %19, %21 : vector<2x128xf32>
    %cst_17 = arith.constant 0.000000e+00 : f32
    %23 = vector.broadcast %cst_17 : f32 to vector<2x128xf32>
    %24 = arith.maximumf %22, %23 : vector<2x128xf32>
    %25 = arith.truncf %24 : vector<2x128xf32> to vector<2x128xbf16>
    %c0_18 = arith.constant 0 : index
    %c0_19 = arith.constant 0 : index
    %26 = vector.load %arg9[%c0_18, %c0_19] : memref<128x20xbf16, #tpu.memory_space<vmem>>, vector<128x20xbf16>
    %cst_20 = arith.constant dense<0.000000e+00> : vector<2x20xf32>
    %27 = tpu.matmul %25, %26, %cst_20 {dimension_numbers = #tpu.dot_dimension_numbers<[1], [0], [0], [1], [0, 0, 1, 1], [], []>} : vector<2x128xbf16>, vector<128x20xbf16>, vector<2x20xf32> -> vector<2x20xf32>
    %c0_21 = arith.constant 0 : index
    %c0_22 = arith.constant 0 : index
    %28 = vector.load %arg10[%c0_21, %c0_22] : memref<1x20xf32, #tpu.memory_space<vmem>>, vector<1x20xf32>
    %29 = vector.broadcast %28 : vector<1x20xf32> to vector<2x20xf32>
    %30 = arith.addf %27, %29 : vector<2x20xf32>
    %31 = arith.truncf %24 : vector<2x128xf32> to vector<2x128xbf16>
    %c0_23 = arith.constant 0 : index
    %c0_24 = arith.constant 0 : index
    %32 = vector.load %arg11[%c0_23, %c0_24] : memref<128x20xbf16, #tpu.memory_space<vmem>>, vector<128x20xbf16>
    %cst_25 = arith.constant dense<0.000000e+00> : vector<2x20xf32>
    %33 = tpu.matmul %31, %32, %cst_25 {dimension_numbers = #tpu.dot_dimension_numbers<[1], [0], [0], [1], [0, 0, 1, 1], [], []>} : vector<2x128xbf16>, vector<128x20xbf16>, vector<2x20xf32> -> vector<2x20xf32>
    %c0_26 = arith.constant 0 : index
    %c0_27 = arith.constant 0 : index
    %34 = vector.load %arg12[%c0_26, %c0_27] : memref<1x20xf32, #tpu.memory_space<vmem>>, vector<1x20xf32>
    %35 = vector.broadcast %34 : vector<1x20xf32> to vector<2x20xf32>
    %36 = arith.addf %33, %35 : vector<2x20xf32>
    %cst_28 = arith.constant 5.000000e-01 : f32
    %37 = vector.broadcast %cst_28 : f32 to vector<2x20xf32>
    %38 = arith.mulf %37, %36 : vector<2x20xf32>
    %39 = math.exp %38 : vector<2x20xf32>
    %c0_29 = arith.constant 0 : index
    %c0_30 = arith.constant 0 : index
    %40 = vector.load %arg2[%c0_29, %c0_30] : memref<2x20xf32, #tpu.memory_space<vmem>>, vector<2x20xf32>
    %41 = arith.mulf %40, %39 : vector<2x20xf32>
    %42 = arith.addf %30, %41 : vector<2x20xf32>
    %43 = arith.truncf %42 : vector<2x20xf32> to vector<2x20xbf16>
    %c0_31 = arith.constant 0 : index
    %c0_32 = arith.constant 0 : index
    %44 = vector.load %arg13[%c0_31, %c0_32] : memref<20x128xbf16, #tpu.memory_space<vmem>>, vector<20x128xbf16>
    %cst_33 = arith.constant dense<0.000000e+00> : vector<2x128xf32>
    %45 = tpu.matmul %43, %44, %cst_33 {dimension_numbers = #tpu.dot_dimension_numbers<[1], [0], [0], [1], [0, 0, 1, 1], [], []>} : vector<2x20xbf16>, vector<20x128xbf16>, vector<2x128xf32> -> vector<2x128xf32>
    %c0_34 = arith.constant 0 : index
    %c0_35 = arith.constant 0 : index
    %46 = vector.load %arg14[%c0_34, %c0_35] : memref<1x128xf32, #tpu.memory_space<vmem>>, vector<1x128xf32>
    %47 = vector.broadcast %46 : vector<1x128xf32> to vector<2x128xf32>
    %48 = arith.addf %45, %47 : vector<2x128xf32>
    %cst_36 = arith.constant 0.000000e+00 : f32
    %49 = vector.broadcast %cst_36 : f32 to vector<2x128xf32>
    %50 = arith.maximumf %48, %49 : vector<2x128xf32>
    %51 = arith.truncf %50 : vector<2x128xf32> to vector<2x128xbf16>
    %c0_37 = arith.constant 0 : index
    %c0_38 = arith.constant 0 : index
    %52 = vector.load %arg15[%c0_37, %c0_38] : memref<128x256xbf16, #tpu.memory_space<vmem>>, vector<128x256xbf16>
    %cst_39 = arith.constant dense<0.000000e+00> : vector<2x256xf32>
    %53 = tpu.matmul %51, %52, %cst_39 {dimension_numbers = #tpu.dot_dimension_numbers<[1], [0], [0], [1], [0, 0, 1, 1], [], []>} : vector<2x128xbf16>, vector<128x256xbf16>, vector<2x256xf32> -> vector<2x256xf32>
    %c0_40 = arith.constant 0 : index
    %c0_41 = arith.constant 0 : index
    %54 = vector.load %arg16[%c0_40, %c0_41] : memref<1x256xf32, #tpu.memory_space<vmem>>, vector<1x256xf32>
    %55 = vector.broadcast %54 : vector<1x256xf32> to vector<2x256xf32>
    %56 = arith.addf %53, %55 : vector<2x256xf32>
    %cst_42 = arith.constant 0.000000e+00 : f32
    %57 = vector.broadcast %cst_42 : f32 to vector<2x256xf32>
    %58 = arith.maximumf %56, %57 : vector<2x256xf32>
    %59 = arith.truncf %58 : vector<2x256xf32> to vector<2x256xbf16>
    %c0_43 = arith.constant 0 : index
    %c0_44 = arith.constant 0 : index
    %60 = vector.load %arg17[%c0_43, %c0_44] : memref<256x512xbf16, #tpu.memory_space<vmem>>, vector<256x512xbf16>
    %cst_45 = arith.constant dense<0.000000e+00> : vector<2x512xf32>
    %61 = tpu.matmul %59, %60, %cst_45 {dimension_numbers = #tpu.dot_dimension_numbers<[1], [0], [0], [1], [0, 0, 1, 1], [], []>} : vector<2x256xbf16>, vector<256x512xbf16>, vector<2x512xf32> -> vector<2x512xf32>
    %c0_46 = arith.constant 0 : index
    %c0_47 = arith.constant 0 : index
    %62 = vector.load %arg18[%c0_46, %c0_47] : memref<1x512xf32, #tpu.memory_space<vmem>>, vector<1x512xf32>
    %63 = vector.broadcast %62 : vector<1x512xf32> to vector<2x512xf32>
    %64 = arith.addf %61, %63 : vector<2x512xf32>
    %cst_48 = arith.constant 0.000000e+00 : f32
    %65 = vector.broadcast %cst_48 : f32 to vector<2x512xf32>
    %66 = arith.maximumf %64, %65 : vector<2x512xf32>
    %67 = arith.truncf %66 : vector<2x512xf32> to vector<2x512xbf16>
    %c0_49 = arith.constant 0 : index
    %c0_50 = arith.constant 0 : index
    %68 = vector.load %arg19[%c0_49, %c0_50] : memref<512x784xbf16, #tpu.memory_space<vmem>>, vector<512x784xbf16>
    %cst_51 = arith.constant dense<0.000000e+00> : vector<2x784xf32>
    %69 = tpu.matmul %67, %68, %cst_51 {dimension_numbers = #tpu.dot_dimension_numbers<[1], [0], [0], [1], [0, 0, 1, 1], [], []>} : vector<2x512xbf16>, vector<512x784xbf16>, vector<2x784xf32> -> vector<2x784xf32>
    %c0_52 = arith.constant 0 : index
    %c0_53 = arith.constant 0 : index
    %70 = vector.load %arg20[%c0_52, %c0_53] : memref<1x784xf32, #tpu.memory_space<vmem>>, vector<1x784xf32>
    %71 = vector.broadcast %70 : vector<1x784xf32> to vector<2x784xf32>
    %72 = arith.addf %69, %71 : vector<2x784xf32>
    %73 = arith.negf %72 : vector<2x784xf32>
    %74 = math.exp %73 : vector<2x784xf32>
    %cst_54 = arith.constant 1.000000e+00 : f32
    %75 = vector.broadcast %cst_54 : f32 to vector<2x784xf32>
    %76 = arith.addf %75, %74 : vector<2x784xf32>
    %77 = arith.divf %75, %76 : vector<2x784xf32>
    %78 = arith.truncf %77 : vector<2x784xf32> to vector<2x784xbf16>
    %c0_55 = arith.constant 0 : index
    %c0_56 = arith.constant 0 : index
    %79 = vector.load %arg21[%c0_55, %c0_56] : memref<2x784xbf16, #tpu.memory_space<vmem>>, vector<2x784xbf16>
    tpu.vector_store %arg21[%c0_55, %c0_56], %78 {strides = array<i32>} : memref<2x784xbf16, #tpu.memory_space<vmem>>, vector<2x784xbf16>,
    %c0_57 = arith.constant 0 : index
    %c0_58 = arith.constant 0 : index
    %80 = vector.load %arg22[%c0_57, %c0_58] : memref<2x20xf32, #tpu.memory_space<vmem>>, vector<2x20xf32>
    tpu.vector_store %arg22[%c0_57, %c0_58], %30 {strides = array<i32>} : memref<2x20xf32, #tpu.memory_space<vmem>>, vector<2x20xf32>,
    %c0_59 = arith.constant 0 : index
    %c0_60 = arith.constant 0 : index
    %81 = vector.load %arg23[%c0_59, %c0_60] : memref<2x20xf32, #tpu.memory_space<vmem>>, vector<2x20xf32>
    tpu.vector_store %arg23[%c0_59, %c0_60], %36 {strides = array<i32>} : memref<2x20xf32, #tpu.memory_space<vmem>>, vector<2x20xf32>,
    return
  }
  func.func @transform_0(%arg0: i32) -> (i32, i32) {
    %c0_i32 = arith.constant 0 : i32
    %c0_i32_0 = arith.constant 0 : i32
    return %arg0, %c0_i32 : i32, i32
  }
  func.func @transform_1(%arg0: i32) -> (i32, i32) {
    %c0_i32 = arith.constant 0 : i32
    %c0_i32_0 = arith.constant 0 : i32
    return %arg0, %c0_i32 : i32, i32
  }
  func.func @transform_2(%arg0: i32) -> (i32, i32) {
    %c0_i32 = arith.constant 0 : i32
    %c0_i32_0 = arith.constant 0 : i32
    %c0_i32_1 = arith.constant 0 : i32
    return %c0_i32, %c0_i32_0 : i32, i32
  }
  func.func @transform_3(%arg0: i32) -> (i32, i32) {
    %c0_i32 = arith.constant 0 : i32
    %c0_i32_0 = arith.constant 0 : i32
    %c0_i32_1 = arith.constant 0 : i32
    return %c0_i32, %c0_i32_0 : i32, i32
  }
  func.func @transform_4(%arg0: i32) -> (i32, i32) {
    %c0_i32 = arith.constant 0 : i32
    %c0_i32_0 = arith.constant 0 : i32
    %c0_i32_1 = arith.constant 0 : i32
    return %c0_i32, %c0_i32_0 : i32, i32
  }
  func.func @transform_5(%arg0: i32) -> (i32, i32) {
    %c0_i32 = arith.constant 0 : i32
    %c0_i32_0 = arith.constant 0 : i32
    %c0_i32_1 = arith.constant 0 : i32
    return %c0_i32, %c0_i32_0 : i32, i32
  }
  func.func @transform_6(%arg0: i32) -> (i32, i32) {
    %c0_i32 = arith.constant 0 : i32
    %c0_i32_0 = arith.constant 0 : i32
    %c0_i32_1 = arith.constant 0 : i32
    return %c0_i32, %c0_i32_0 : i32, i32
  }
  func.func @transform_7(%arg0: i32) -> (i32, i32) {
    %c0_i32 = arith.constant 0 : i32
    %c0_i32_0 = arith.constant 0 : i32
    %c0_i32_1 = arith.constant 0 : i32
    return %c0_i32, %c0_i32_0 : i32, i32
  }
  func.func @transform_8(%arg0: i32) -> (i32, i32) {
    %c0_i32 = arith.constant 0 : i32
    %c0_i32_0 = arith.constant 0 : i32
    %c0_i32_1 = arith.constant 0 : i32
    return %c0_i32, %c0_i32_0 : i32, i32
  }
  func.func @transform_9(%arg0: i32) -> (i32, i32) {
    %c0_i32 = arith.constant 0 : i32
    %c0_i32_0 = arith.constant 0 : i32
    %c0_i32_1 = arith.constant 0 : i32
    return %c0_i32, %c0_i32_0 : i32, i32
  }
  func.func @transform_10(%arg0: i32) -> (i32, i32) {
    %c0_i32 = arith.constant 0 : i32
    %c0_i32_0 = arith.constant 0 : i32
    %c0_i32_1 = arith.constant 0 : i32
    return %c0_i32, %c0_i32_0 : i32, i32
  }
  func.func @transform_11(%arg0: i32) -> (i32, i32) {
    %c0_i32 = arith.constant 0 : i32
    %c0_i32_0 = arith.constant 0 : i32
    %c0_i32_1 = arith.constant 0 : i32
    return %c0_i32, %c0_i32_0 : i32, i32
  }
  func.func @transform_12(%arg0: i32) -> (i32, i32) {
    %c0_i32 = arith.constant 0 : i32
    %c0_i32_0 = arith.constant 0 : i32
    %c0_i32_1 = arith.constant 0 : i32
    return %c0_i32, %c0_i32_0 : i32, i32
  }
  func.func @transform_13(%arg0: i32) -> (i32, i32) {
    %c0_i32 = arith.constant 0 : i32
    %c0_i32_0 = arith.constant 0 : i32
    %c0_i32_1 = arith.constant 0 : i32
    return %c0_i32, %c0_i32_0 : i32, i32
  }
  func.func @transform_14(%arg0: i32) -> (i32, i32) {
    %c0_i32 = arith.constant 0 : i32
    %c0_i32_0 = arith.constant 0 : i32
    %c0_i32_1 = arith.constant 0 : i32
    return %c0_i32, %c0_i32_0 : i32, i32
  }
  func.func @transform_15(%arg0: i32) -> (i32, i32) {
    %c0_i32 = arith.constant 0 : i32
    %c0_i32_0 = arith.constant 0 : i32
    %c0_i32_1 = arith.constant 0 : i32
    return %c0_i32, %c0_i32_0 : i32, i32
  }
  func.func @transform_16(%arg0: i32) -> (i32, i32) {
    %c0_i32 = arith.constant 0 : i32
    %c0_i32_0 = arith.constant 0 : i32
    %c0_i32_1 = arith.constant 0 : i32
    return %c0_i32, %c0_i32_0 : i32, i32
  }
  func.func @transform_17(%arg0: i32) -> (i32, i32) {
    %c0_i32 = arith.constant 0 : i32
    %c0_i32_0 = arith.constant 0 : i32
    %c0_i32_1 = arith.constant 0 : i32
    return %c0_i32, %c0_i32_0 : i32, i32
  }
  func.func @transform_18(%arg0: i32) -> (i32, i32) {
    %c0_i32 = arith.constant 0 : i32
    %c0_i32_0 = arith.constant 0 : i32
    %c0_i32_1 = arith.constant 0 : i32
    return %c0_i32, %c0_i32_0 : i32, i32
  }
  func.func @transform_19(%arg0: i32) -> (i32, i32) {
    %c0_i32 = arith.constant 0 : i32
    %c0_i32_0 = arith.constant 0 : i32
    %c0_i32_1 = arith.constant 0 : i32
    return %c0_i32, %c0_i32_0 : i32, i32
  }
  func.func @transform_20(%arg0: i32) -> (i32, i32) {
    %c0_i32 = arith.constant 0 : i32
    %c0_i32_0 = arith.constant 0 : i32
    return %arg0, %c0_i32 : i32, i32
  }
  func.func @transform_21(%arg0: i32) -> (i32, i32) {
    %c0_i32 = arith.constant 0 : i32
    %c0_i32_0 = arith.constant 0 : i32
    return %arg0, %c0_i32 : i32, i32
  }
  func.func @transform_22(%arg0: i32) -> (i32, i32) {
    %c0_i32 = arith.constant 0 : i32
    %c0_i32_0 = arith.constant 0 : i32
    return %arg0, %c0_i32 : i32, i32
  }
}

</mosaic_0001>

<llo_original>
// kernel: vae_forward.1
$region0: #{vae_forward.1}
  #allocation0 [shape = 'u32[]', space=smem, size = 0x4, offset = 0x4, fixed_abs, tag = 'smem constant byte address 0x4 - core index']
  #allocation1 [shape = 'u32[72,128]{1,0:T(1,128)}', space=vmem, size = 0x9000, scoped, tag = 'internal scratch']
  %s0 = inlined_call_operand.vmem [shape: f32[2,784], index: 0, kind: input, shape index: {}]
  %s1 = inlined_call_operand.vmem [shape: f32[2,20], index: 1, kind: input, shape index: {}]
  %s2 = inlined_call_operand.vmem [shape: bf16[784,512], index: 2, kind: input, shape index: {}]
  %s3 = inlined_call_operand.vmem [shape: f32[1,512], index: 3, kind: input, shape index: {}]
  %s4 = inlined_call_operand.vmem [shape: bf16[512,256], index: 4, kind: input, shape index: {}]
  %s5 = inlined_call_operand.vmem [shape: f32[1,256], index: 5, kind: input, shape index: {}]
  %s6 = inlined_call_operand.vmem [shape: bf16[256,128], index: 6, kind: input, shape index: {}]
  %s7 = inlined_call_operand.vmem [shape: f32[1,128], index: 7, kind: input, shape index: {}]
  %s8 = inlined_call_operand.vmem [shape: bf16[128,20], index: 8, kind: input, shape index: {}]
  %s9 = inlined_call_operand.vmem [shape: f32[1,20], index: 9, kind: input, shape index: {}]
  %s10 = inlined_call_operand.vmem [shape: bf16[128,20], index: 10, kind: input, shape index: {}]
  %s11 = inlined_call_operand.vmem [shape: f32[1,20], index: 11, kind: input, shape index: {}]
  %s12 = inlined_call_operand.vmem [shape: bf16[20,128], index: 12, kind: input, shape index: {}]
  %s13 = inlined_call_operand.vmem [shape: f32[1,128], index: 13, kind: input, shape index: {}]
  %s14 = inlined_call_operand.vmem [shape: bf16[128,256], index: 14, kind: input, shape index: {}]
  %s15 = inlined_call_operand.vmem [shape: f32[1,256], index: 15, kind: input, shape index: {}]
  %s16 = inlined_call_operand.vmem [shape: bf16[256,512], index: 16, kind: input, shape index: {}]
  %s17 = inlined_call_operand.vmem [shape: f32[1,512], index: 17, kind: input, shape index: {}]
  %s18 = inlined_call_operand.vmem [shape: bf16[512,784], index: 18, kind: input, shape index: {}]
  %s19 = inlined_call_operand.vmem [shape: f32[1,784], index: 19, kind: input, shape index: {}]
  %s20 = inlined_call_operand.vmem [shape: bf16[2,784], index: 20, kind: output, shape index: {0}]
  %s21 = inlined_call_operand.hbm [shape: f32[2,20], index: 21, kind: output, shape index: {1}]
  %s22 = inlined_call_operand.hbm [shape: f32[2,20], index: 22, kind: output, shape index: {2}]
  %23 = xla_tuple %s20, %s21, %s22
  %s24 = sld [smem:[#allocation0]]
  $region106: #{vae_forward.1} parent=0
    _
  %s26 = ssub.s32 1, %s24
  %s27 = scalar_select 0, %s26, %s24
  $region1: #{vae_forward.1} parent=0
    #allocation2 [shape = 'u8[1024]{0}', space=vmem, size = 0x400, scoped, tag = 'output window, operand 1, single buffered']
    #allocation3 [shape = 's32[1]{0}', space=sflag, size = 0x4, scoped, tag = 'scoped memory for vae_forward.1']
    #allocation4 [shape = 'u8[1024]{0}', space=vmem, size = 0x400, scoped, tag = 'output window, operand 2, single buffered']
    #allocation5 [shape = 's32[1]{0}', space=sflag, size = 0x4, scoped, tag = 'scoped memory for vae_forward.1']
    %28 = vsyncpa [#allocation3], 0
    %29 = vsyncpa [#allocation5], 0
    // Predicated region
    $region2: #{vae_forward.1} parent=1 // pred_check
      _
    $region3: #{vae_forward.1} parent=1 // pred_check_branch
      %31 = sbr.rel (0) target = $region5
    $region4: #{vae_forward.1} parent=1 // pred_region
      _
    $region5: #{vae_forward.1} parent=1 // pred_fallthru
      _
    // Predicated region
    $region6: #{vae_forward.1} parent=1 // pred_check
      _
    $region7: #{vae_forward.1} parent=1 // pred_check_branch
      %33 = sbr.rel (0) target = $region9
    $region8: #{vae_forward.1} parent=1 // pred_region
      _
    $region9: #{vae_forward.1} parent=1 // pred_fallthru
      _
    // Predicated region
    $region10: #{vae_forward.1} parent=1 // pred_check
      _
    $region11: #{vae_forward.1} parent=1 // pred_check_branch
      %35 = sbr.rel (0) target = $region13
    $region12: #{vae_forward.1} parent=1 // pred_region
      _
    $region13: #{vae_forward.1} parent=1 // pred_fallthru
      _
    // Predicated region
    $region14: #{vae_forward.1} parent=1 // pred_check
      _
    $region15: #{vae_forward.1} parent=1 // pred_check_branch
      %37 = sbr.rel (0) target = $region17
    $region16: #{vae_forward.1} parent=1 // pred_region
      _
    $region17: #{vae_forward.1} parent=1 // pred_fallthru
      _
    // Predicated region
    $region18: #{vae_forward.1} parent=1 // pred_check
      _
    $region19: #{vae_forward.1} parent=1 // pred_check_branch
      %39 = sbr.rel (0) target = $region21
    $region20: #{vae_forward.1} parent=1 // pred_region
      _
    $region21: #{vae_forward.1} parent=1 // pred_fallthru
      _
    // Predicated region
    $region22: #{vae_forward.1} parent=1 // pred_check
      _
    $region23: #{vae_forward.1} parent=1 // pred_check_branch
      %41 = sbr.rel (0) target = $region25
    $region24: #{vae_forward.1} parent=1 // pred_region
      _
    $region25: #{vae_forward.1} parent=1 // pred_fallthru
      _
    // Predicated region
    $region26: #{vae_forward.1} parent=1 // pred_check
      _
    $region27: #{vae_forward.1} parent=1 // pred_check_branch
      %43 = sbr.rel (0) target = $region29
    $region28: #{vae_forward.1} parent=1 // pred_region
      _
    $region29: #{vae_forward.1} parent=1 // pred_fallthru
      _
    // Predicated region
    $region30: #{vae_forward.1} parent=1 // pred_check
      _
    $region31: #{vae_forward.1} parent=1 // pred_check_branch
      %45 = sbr.rel (0) target = $region33
    $region32: #{vae_forward.1} parent=1 // pred_region
      _
    $region33: #{vae_forward.1} parent=1 // pred_fallthru
      _
    // Predicated region
    $region34: #{vae_forward.1} parent=1 // pred_check
      _
    $region35: #{vae_forward.1} parent=1 // pred_check_branch
      %47 = sbr.rel (0) target = $region37
    $region36: #{vae_forward.1} parent=1 // pred_region
      _
    $region37: #{vae_forward.1} parent=1 // pred_fallthru
      _
    // Predicated region
    $region38: #{vae_forward.1} parent=1 // pred_check
      _
    $region39: #{vae_forward.1} parent=1 // pred_check_branch
      %49 = sbr.rel (0) target = $region41
    $region40: #{vae_forward.1} parent=1 // pred_region
      _
    $region41: #{vae_forward.1} parent=1 // pred_fallthru
      _
    // Predicated region
    $region42: #{vae_forward.1} parent=1 // pred_check
      _
    $region43: #{vae_forward.1} parent=1 // pred_check_branch
      %51 = sbr.rel (0) target = $region45
    $region44: #{vae_forward.1} parent=1 // pred_region
      _
    $region45: #{vae_forward.1} parent=1 // pred_fallthru
      _
    // Predicated region
    $region46: #{vae_forward.1} parent=1 // pred_check
      _
    $region47: #{vae_forward.1} parent=1 // pred_check_branch
      %53 = sbr.rel (0) target = $region49
    $region48: #{vae_forward.1} parent=1 // pred_region
      _
    $region49: #{vae_forward.1} parent=1 // pred_fallthru
      _
    // Predicated region
    $region50: #{vae_forward.1} parent=1 // pred_check
      _
    $region51: #{vae_forward.1} parent=1 // pred_check_branch
      %55 = sbr.rel (0) target = $region53
    $region52: #{vae_forward.1} parent=1 // pred_region
      _
    $region53: #{vae_forward.1} parent=1 // pred_fallthru
      _
    // Predicated region
    $region54: #{vae_forward.1} parent=1 // pred_check
      _
    $region55: #{vae_forward.1} parent=1 // pred_check_branch
      %57 = sbr.rel (0) target = $region57
    $region56: #{vae_forward.1} parent=1 // pred_region
      _
    $region57: #{vae_forward.1} parent=1 // pred_fallthru
      _
    // Predicated region
    $region58: #{vae_forward.1} parent=1 // pred_check
      _
    $region59: #{vae_forward.1} parent=1 // pred_check_branch
      %59 = sbr.rel (0) target = $region61
    $region60: #{vae_forward.1} parent=1 // pred_region
      _
    $region61: #{vae_forward.1} parent=1 // pred_fallthru
      _
    // Predicated region
    $region62: #{vae_forward.1} parent=1 // pred_check
      _
    $region63: #{vae_forward.1} parent=1 // pred_check_branch
      %61 = sbr.rel (0) target = $region65
    $region64: #{vae_forward.1} parent=1 // pred_region
      _
    $region65: #{vae_forward.1} parent=1 // pred_fallthru
      _
    // Predicated region
    $region66: #{vae_forward.1} parent=1 // pred_check
      _
    $region67: #{vae_forward.1} parent=1 // pred_check_branch
      %63 = sbr.rel (0) target = $region69
    $region68: #{vae_forward.1} parent=1 // pred_region
      _
    $region69: #{vae_forward.1} parent=1 // pred_fallthru
      _
    // Predicated region
    $region70: #{vae_forward.1} parent=1 // pred_check
      _
    $region71: #{vae_forward.1} parent=1 // pred_check_branch
      %65 = sbr.rel (0) target = $region73
    $region72: #{vae_forward.1} parent=1 // pred_region
      _
    $region73: #{vae_forward.1} parent=1 // pred_fallthru
      _
    // Predicated region
    $region74: #{vae_forward.1} parent=1 // pred_check
      _
    $region75: #{vae_forward.1} parent=1 // pred_check_branch
      %67 = sbr.rel (0) target = $region77
    $region76: #{vae_forward.1} parent=1 // pred_region
      _
    $region77: #{vae_forward.1} parent=1 // pred_fallthru
      _
    // Predicated region
    $region78: #{vae_forward.1} parent=1 // pred_check
      _
    $region79: #{vae_forward.1} parent=1 // pred_check_branch
      %69 = sbr.rel (0) target = $region81
    $region80: #{vae_forward.1} parent=1 // pred_region
      _
    $region81: #{vae_forward.1} parent=1 // pred_fallthru
      _
    %v71 = vld [vmem:[%s0] sm:$0xff]
    %v72 = vld [vmem:[%s0 + $0x8] sm:$0x3f]
    %75 = vst [vmem:[#allocation1] ss:$4 sm:$0xff] %v71
    %s76 = scalar_lea.vmem [#allocation1], 32
    %77 = vst [vmem:[%s76] ss:$4 sm:$0xff] %v72
    %v78 = vld.sshfl [vmem:[#allocation1] sm:$0xff pattern:$0x73625140]
    %v79 = vld.sshfl [vmem:[#allocation1 + $0x8] sm:$0xff pattern:$0x73625140]
    %v80 = vld.sshfl [vmem:[#allocation1 + $0x10] sm:$0xff pattern:$0x73625140]
    %v81 = vld.sshfl [vmem:[#allocation1 + $0x18] sm:$0xff pattern:$0x73625140]
    %v82 = vld.sshfl [vmem:[#allocation1 + $0x20] sm:$0xff pattern:$0x73625140]
    %v83 = vld.sshfl [vmem:[#allocation1 + $0x28] sm:$0xff pattern:$0x73625140]
    %v84 = vld.sshfl [vmem:[#allocation1 + $0x30] sm:$0xff pattern:$0x73625140]
    %v92 = vpack.c.bf16 %v78, %v78
    %v93 = vpack.c.bf16 %v79, %v79
    %v94 = vpack.c.bf16 %v80, %v80
    %v95 = vpack.c.bf16 %v81, %v81
    %v96 = vpack.c.bf16 %v82, %v82
    %v97 = vpack.c.bf16 %v83, %v83
    %v98 = vpack.c.bf16 %v84, %v84
    %v99 = vld [vmem:[%s2] sm:$0xff]
    %v100 = vld [vmem:[%s2 + $0x8] sm:$0xff]
    %v101 = vld [vmem:[%s2 + $0x10] sm:$0xff]
    %v102 = vld [vmem:[%s2 + $0x18] sm:$0xff]
    %v103 = vld [vmem:[%s2 + $0x20] sm:$0xff]
    %v104 = vld [vmem:[%s2 + $0x28] sm:$0xff]
    %v105 = vld [vmem:[%s2 + $0x30] sm:$0xff]
    %v106 = vld [vmem:[%s2 + $0x38] sm:$0xff]
    %v107 = vld [vmem:[%s2 + $0x40] sm:$0xff]
    %v108 = vld [vmem:[%s2 + $0x48] sm:$0xff]
    %v109 = vld [vmem:[%s2 + $0x50] sm:$0xff]
    %v110 = vld [vmem:[%s2 + $0x58] sm:$0xff]
    %v111 = vld [vmem:[%s2 + $0x60] sm:$0xff]
    %v112 = vld [vmem:[%s2 + $0x68] sm:$0xff]
    %v113 = vld [vmem:[%s2 + $0x70] sm:$0xff]
    %v114 = vld [vmem:[%s2 + $0x78] sm:$0xff]
    %v115 = vld [vmem:[%s2 + $0x80] sm:$0xff]
    %v116 = vld [vmem:[%s2 + $0x88] sm:$0xff]
    %v117 = vld [vmem:[%s2 + $0x90] sm:$0xff]
    %v118 = vld [vmem:[%s2 + $0x98] sm:$0xff]
    %v119 = vld [vmem:[%s2 + $0xa0] sm:$0xff]
    %v120 = vld [vmem:[%s2 + $0xa8] sm:$0xff]
    %v121 = vld [vmem:[%s2 + $0xb0] sm:$0xff]
    %v122 = vld [vmem:[%s2 + $0xb8] sm:$0xff]
    %v123 = vld [vmem:[%s2 + $0xc0] sm:$0xff]
    %v124 = vld [vmem:[%s2 + $0xc8] sm:$0xff]
    %v125 = vld [vmem:[%s2 + $0xd0] sm:$0xff]
    %v126 = vld [vmem:[%s2 + $0xd8] sm:$0xff]
    %v127 = vld [vmem:[%s2 + $0xe0] sm:$0xff]
    %v128 = vld [vmem:[%s2 + $0xe8] sm:$0xff]
    %v129 = vld [vmem:[%s2 + $0xf0] sm:$0xff]
    %v130 = vld [vmem:[%s2 + $0xf8] sm:$0xff]
    %v131 = vld [vmem:[%s2 + $0x100] sm:$0xff]
    %v132 = vld [vmem:[%s2 + $0x108] sm:$0xff]
    %v133 = vld [vmem:[%s2 + $0x110] sm:$0xff]
    %v134 = vld [vmem:[%s2 + $0x118] sm:$0xff]
    %v135 = vld [vmem:[%s2 + $0x120] sm:$0xff]
    %v136 = vld [vmem:[%s2 + $0x128] sm:$0xff]
    %v137 = vld [vmem:[%s2 + $0x130] sm:$0xff]
    %v138 = vld [vmem:[%s2 + $0x138] sm:$0xff]
    %v139 = vld [vmem:[%s2 + $0x140] sm:$0xff]
    %v140 = vld [vmem:[%s2 + $0x148] sm:$0xff]
    %v141 = vld [vmem:[%s2 + $0x150] sm:$0xff]
    %v142 = vld [vmem:[%s2 + $0x158] sm:$0xff]
    %v143 = vld [vmem:[%s2 + $0x160] sm:$0xff]
    %v144 = vld [vmem:[%s2 + $0x168] sm:$0xff]
    %v145 = vld [vmem:[%s2 + $0x170] sm:$0xff]
    %v146 = vld [vmem:[%s2 + $0x178] sm:$0xff]
    %v147 = vld [vmem:[%s2 + $0x180] sm:$0xff]
    %v148 = vld [vmem:[%s2 + $0x188] sm:$0xff]
    %v149 = vld [vmem:[%s2 + $0x190] sm:$0xff]
    %v150 = vld [vmem:[%s2 + $0x198] sm:$0xff]
    %v151 = vld [vmem:[%s2 + $0x1a0] sm:$0xff]
    %v152 = vld [vmem:[%s2 + $0x1a8] sm:$0xff]
    %v153 = vld [vmem:[%s2 + $0x1b0] sm:$0xff]
    %v154 = vld [vmem:[%s2 + $0x1b8] sm:$0xff]
    %v155 = vld [vmem:[%s2 + $0x1c0] sm:$0xff]
    %v156 = vld [vmem:[%s2 + $0x1c8] sm:$0xff]
    %v157 = vld [vmem:[%s2 + $0x1d0] sm:$0xff]
    %v158 = vld [vmem:[%s2 + $0x1d8] sm:$0xff]
    %v159 = vld [vmem:[%s2 + $0x1e0] sm:$0xff]
    %v160 = vld [vmem:[%s2 + $0x1e8] sm:$0xff]
    %v161 = vld [vmem:[%s2 + $0x1f0] sm:$0xff]
    %v162 = vld [vmem:[%s2 + $0x1f8] sm:$0xff]
    %v163 = vld [vmem:[%s2 + $0x200] sm:$0xff]
    %v164 = vld [vmem:[%s2 + $0x208] sm:$0xff]
    %v165 = vld [vmem:[%s2 + $0x210] sm:$0xff]
    %v166 = vld [vmem:[%s2 + $0x218] sm:$0xff]
    %v167 = vld [vmem:[%s2 + $0x220] sm:$0xff]
    %v168 = vld [vmem:[%s2 + $0x228] sm:$0xff]
    %v169 = vld [vmem:[%s2 + $0x230] sm:$0xff]
    %v170 = vld [vmem:[%s2 + $0x238] sm:$0xff]
    %v171 = vld [vmem:[%s2 + $0x240] sm:$0xff]
    %v172 = vld [vmem:[%s2 + $0x248] sm:$0xff]
    %v173 = vld [vmem:[%s2 + $0x250] sm:$0xff]
    %v174 = vld [vmem:[%s2 + $0x258] sm:$0xff]
    %v175 = vld [vmem:[%s2 + $0x260] sm:$0xff]
    %v176 = vld [vmem:[%s2 + $0x268] sm:$0xff]
    %v177 = vld [vmem:[%s2 + $0x270] sm:$0xff]
    %v178 = vld [vmem:[%s2 + $0x278] sm:$0xff]
    %v179 = vld [vmem:[%s2 + $0x280] sm:$0xff]
    %v180 = vld [vmem:[%s2 + $0x288] sm:$0xff]
    %v181 = vld [vmem:[%s2 + $0x290] sm:$0xff]
    %v182 = vld [vmem:[%s2 + $0x298] sm:$0xff]
    %v183 = vld [vmem:[%s2 + $0x2a0] sm:$0xff]
    %v184 = vld [vmem:[%s2 + $0x2a8] sm:$0xff]
    %v185 = vld [vmem:[%s2 + $0x2b0] sm:$0xff]
    %v186 = vld [vmem:[%s2 + $0x2b8] sm:$0xff]
    %v187 = vld [vmem:[%s2 + $0x2c0] sm:$0xff]
    %v188 = vld [vmem:[%s2 + $0x2c8] sm:$0xff]
    %v189 = vld [vmem:[%s2 + $0x2d0] sm:$0xff]
    %v190 = vld [vmem:[%s2 + $0x2d8] sm:$0xff]
    %v191 = vld [vmem:[%s2 + $0x2e0] sm:$0xff]
    %v192 = vld [vmem:[%s2 + $0x2e8] sm:$0xff]
    %v193 = vld [vmem:[%s2 + $0x2f0] sm:$0xff]
    %v194 = vld [vmem:[%s2 + $0x2f8] sm:$0xff]
    %v195 = vld [vmem:[%s2 + $0x300] sm:$0xff]
    %v196 = vld [vmem:[%s2 + $0x308] sm:$0xff]
    %v197 = vld [vmem:[%s2 + $0x310] sm:$0xff]
    %v198 = vld [vmem:[%s2 + $0x318] sm:$0xff]
    %v199 = vld [vmem:[%s2 + $0x320] sm:$0xff]
    %v200 = vld [vmem:[%s2 + $0x328] sm:$0xff]
    %v201 = vld [vmem:[%s2 + $0x330] sm:$0xff]
    %v202 = vld [vmem:[%s2 + $0x338] sm:$0xff]
    %v203 = vld [vmem:[%s2 + $0x340] sm:$0xff]
    %v204 = vld [vmem:[%s2 + $0x348] sm:$0xff]
    %v205 = vld [vmem:[%s2 + $0x350] sm:$0xff]
    %v206 = vld [vmem:[%s2 + $0x358] sm:$0xff]
    %v207 = vld [vmem:[%s2 + $0x360] sm:$0xff]
    %v208 = vld [vmem:[%s2 + $0x368] sm:$0xff]
    %v209 = vld [vmem:[%s2 + $0x370] sm:$0xff]
    %v210 = vld [vmem:[%s2 + $0x378] sm:$0xff]
    %v211 = vld [vmem:[%s2 + $0x380] sm:$0xff]
    %v212 = vld [vmem:[%s2 + $0x388] sm:$0xff]
    %v213 = vld [vmem:[%s2 + $0x390] sm:$0xff]
    %v214 = vld [vmem:[%s2 + $0x398] sm:$0xff]
    %v215 = vld [vmem:[%s2 + $0x3a0] sm:$0xff]
    %v216 = vld [vmem:[%s2 + $0x3a8] sm:$0xff]
    %v217 = vld [vmem:[%s2 + $0x3b0] sm:$0xff]
    %v218 = vld [vmem:[%s2 + $0x3b8] sm:$0xff]
    %v219 = vld [vmem:[%s2 + $0x3c0] sm:$0xff]
    %v220 = vld [vmem:[%s2 + $0x3c8] sm:$0xff]
    %v221 = vld [vmem:[%s2 + $0x3d0] sm:$0xff]
    %v222 = vld [vmem:[%s2 + $0x3d8] sm:$0xff]
    %v223 = vld [vmem:[%s2 + $0x3e0] sm:$0xff]
    %v224 = vld [vmem:[%s2 + $0x3e8] sm:$0xff]
    %v225 = vld [vmem:[%s2 + $0x3f0] sm:$0xff]
    %v226 = vld [vmem:[%s2 + $0x3f8] sm:$0xff]
    %v227 = vld [vmem:[%s2 + $0x400] sm:$0xff]
    %v228 = vld [vmem:[%s2 + $0x408] sm:$0xff]
    %v229 = vld [vmem:[%s2 + $0x410] sm:$0xff]
    %v230 = vld [vmem:[%s2 + $0x418] sm:$0xff]
    %v231 = vld [vmem:[%s2 + $0x420] sm:$0xff]
    %v232 = vld [vmem:[%s2 + $0x428] sm:$0xff]
    %v233 = vld [vmem:[%s2 + $0x430] sm:$0xff]
    %v234 = vld [vmem:[%s2 + $0x438] sm:$0xff]
    %v235 = vld [vmem:[%s2 + $0x440] sm:$0xff]
    %v236 = vld [vmem:[%s2 + $0x448] sm:$0xff]
    %v237 = vld [vmem:[%s2 + $0x450] sm:$0xff]
    %v238 = vld [vmem:[%s2 + $0x458] sm:$0xff]
    %v239 = vld [vmem:[%s2 + $0x460] sm:$0xff]
    %v240 = vld [vmem:[%s2 + $0x468] sm:$0xff]
    %v241 = vld [vmem:[%s2 + $0x470] sm:$0xff]
    %v242 = vld [vmem:[%s2 + $0x478] sm:$0xff]
    %v243 = vld [vmem:[%s2 + $0x480] sm:$0xff]
    %v244 = vld [vmem:[%s2 + $0x488] sm:$0xff]
    %v245 = vld [vmem:[%s2 + $0x490] sm:$0xff]
    %v246 = vld [vmem:[%s2 + $0x498] sm:$0xff]
    %v247 = vld [vmem:[%s2 + $0x4a0] sm:$0xff]
    %v248 = vld [vmem:[%s2 + $0x4a8] sm:$0xff]
    %v249 = vld [vmem:[%s2 + $0x4b0] sm:$0xff]
    %v250 = vld [vmem:[%s2 + $0x4b8] sm:$0xff]
    %v251 = vld [vmem:[%s2 + $0x4c0] sm:$0xff]
    %v252 = vld [vmem:[%s2 + $0x4c8] sm:$0xff]
    %v253 = vld [vmem:[%s2 + $0x4d0] sm:$0xff]
    %v254 = vld [vmem:[%s2 + $0x4d8] sm:$0xff]
    %v255 = vld [vmem:[%s2 + $0x4e0] sm:$0xff]
    %v256 = vld [vmem:[%s2 + $0x4e8] sm:$0xff]
    %v257 = vld [vmem:[%s2 + $0x4f0] sm:$0xff]
    %v258 = vld [vmem:[%s2 + $0x4f8] sm:$0xff]
    %v259 = vld [vmem:[%s2 + $0x500] sm:$0xff]
    %v260 = vld [vmem:[%s2 + $0x508] sm:$0xff]
    %v261 = vld [vmem:[%s2 + $0x510] sm:$0xff]
    %v262 = vld [vmem:[%s2 + $0x518] sm:$0xff]
    %v263 = vld [vmem:[%s2 + $0x520] sm:$0xff]
    %v264 = vld [vmem:[%s2 + $0x528] sm:$0xff]
    %v265 = vld [vmem:[%s2 + $0x530] sm:$0xff]
    %v266 = vld [vmem:[%s2 + $0x538] sm:$0xff]
    %v267 = vld [vmem:[%s2 + $0x540] sm:$0xff]
    %v268 = vld [vmem:[%s2 + $0x548] sm:$0xff]
    %v269 = vld [vmem:[%s2 + $0x550] sm:$0xff]
    %v270 = vld [vmem:[%s2 + $0x558] sm:$0xff]
    %v271 = vld [vmem:[%s2 + $0x560] sm:$0xff]
    %v272 = vld [vmem:[%s2 + $0x568] sm:$0xff]
    %v273 = vld [vmem:[%s2 + $0x570] sm:$0xff]
    %v274 = vld [vmem:[%s2 + $0x578] sm:$0xff]
    %v275 = vld [vmem:[%s2 + $0x580] sm:$0xff]
    %v276 = vld [vmem:[%s2 + $0x588] sm:$0xff]
    %v277 = vld [vmem:[%s2 + $0x590] sm:$0xff]
    %v278 = vld [vmem:[%s2 + $0x598] sm:$0xff]
    %v279 = vld [vmem:[%s2 + $0x5a0] sm:$0xff]
    %v280 = vld [vmem:[%s2 + $0x5a8] sm:$0xff]
    %v281 = vld [vmem:[%s2 + $0x5b0] sm:$0xff]
    %v282 = vld [vmem:[%s2 + $0x5b8] sm:$0xff]
    %v283 = vld [vmem:[%s2 + $0x5c0] sm:$0xff]
    %v284 = vld [vmem:[%s2 + $0x5c8] sm:$0xff]
    %v285 = vld [vmem:[%s2 + $0x5d0] sm:$0xff]
    %v286 = vld [vmem:[%s2 + $0x5d8] sm:$0xff]
    %v287 = vld [vmem:[%s2 + $0x5e0] sm:$0xff]
    %v288 = vld [vmem:[%s2 + $0x5e8] sm:$0xff]
    %v289 = vld [vmem:[%s2 + $0x5f0] sm:$0xff]
    %v290 = vld [vmem:[%s2 + $0x5f8] sm:$0xff]
    %v291 = vld [vmem:[%s2 + $0x600] sm:$0xff]
    %v292 = vld [vmem:[%s2 + $0x608] sm:$0xff]
    %v293 = vld [vmem:[%s2 + $0x610] sm:$0xff]
    %v294 = vld [vmem:[%s2 + $0x618] sm:$0xff]
    %v295 = vld [vmem:[%s3] sm:$0xf]
    %v297 = vperm.slane %v295, 0
    %v298 = vperm.slane %v295, 1
    %v299 = vperm.slane %v295, 2
    %v300 = vperm.slane %v295, 3
    %v501 = vunpack.c.l.b16 %v99
    %v502 = vunpack.c.h.b16 %v99
    %v503 = vunpack.c.l.b16 %v100
    %v504 = vunpack.c.h.b16 %v100
    %v505 = vunpack.c.l.b16 %v101
    %v506 = vunpack.c.h.b16 %v101
    %v507 = vunpack.c.l.b16 %v102
    %v508 = vunpack.c.h.b16 %v102
    %v509 = vunpack.c.l.b16 %v103
    %v510 = vunpack.c.h.b16 %v103
    %v511 = vunpack.c.l.b16 %v104
    %v512 = vunpack.c.h.b16 %v104
    %v513 = vunpack.c.l.b16 %v105
    %v514 = vunpack.c.h.b16 %v105
    %v515 = vunpack.c.l.b16 %v106
    %v516 = vunpack.c.h.b16 %v106
    %v517 = vunpack.c.l.b16 %v107
    %v518 = vunpack.c.h.b16 %v107
    %v519 = vunpack.c.l.b16 %v108
    %v520 = vunpack.c.h.b16 %v108
    %v521 = vunpack.c.l.b16 %v109
    %v522 = vunpack.c.h.b16 %v109
    %v523 = vunpack.c.l.b16 %v110
    %v524 = vunpack.c.h.b16 %v110
    %v525 = vunpack.c.l.b16 %v111
    %v526 = vunpack.c.h.b16 %v111
    %v527 = vunpack.c.l.b16 %v112
    %v528 = vunpack.c.h.b16 %v112
    %v529 = vunpack.c.l.b16 %v113
    %v530 = vunpack.c.h.b16 %v113
    %v531 = vunpack.c.l.b16 %v114
    %v532 = vunpack.c.h.b16 %v114
    %v533 = vunpack.c.l.b16 %v115
    %v534 = vunpack.c.h.b16 %v115
    %v535 = vunpack.c.l.b16 %v116
    %v536 = vunpack.c.h.b16 %v116
    %v537 = vunpack.c.l.b16 %v117
    %v538 = vunpack.c.h.b16 %v117
    %v539 = vunpack.c.l.b16 %v118
    %v540 = vunpack.c.h.b16 %v118
    %v541 = vunpack.c.l.b16 %v119
    %v542 = vunpack.c.h.b16 %v119
    %v543 = vunpack.c.l.b16 %v120
    %v544 = vunpack.c.h.b16 %v120
    %v545 = vunpack.c.l.b16 %v121
    %v546 = vunpack.c.h.b16 %v121
    %v547 = vunpack.c.l.b16 %v122
    %v548 = vunpack.c.h.b16 %v122
    %v549 = vunpack.c.l.b16 %v123
    %v550 = vunpack.c.h.b16 %v123
    %v551 = vunpack.c.l.b16 %v124
    %v552 = vunpack.c.h.b16 %v124
    %v553 = vunpack.c.l.b16 %v125
    %v554 = vunpack.c.h.b16 %v125
    %v555 = vunpack.c.l.b16 %v126
    %v556 = vunpack.c.h.b16 %v126
    %v557 = vunpack.c.l.b16 %v127
    %v558 = vunpack.c.h.b16 %v127
    %v559 = vunpack.c.l.b16 %v128
    %v560 = vunpack.c.h.b16 %v128
    %v561 = vunpack.c.l.b16 %v129
    %v562 = vunpack.c.h.b16 %v129
    %v563 = vunpack.c.l.b16 %v130
    %v564 = vunpack.c.h.b16 %v130
    %v565 = vunpack.c.l.b16 %v131
    %v566 = vunpack.c.h.b16 %v131
    %v567 = vunpack.c.l.b16 %v132
    %v568 = vunpack.c.h.b16 %v132
    %v569 = vunpack.c.l.b16 %v133
    %v570 = vunpack.c.h.b16 %v133
    %v571 = vunpack.c.l.b16 %v134
    %v572 = vunpack.c.h.b16 %v134
    %v573 = vunpack.c.l.b16 %v135
    %v574 = vunpack.c.h.b16 %v135
    %v575 = vunpack.c.l.b16 %v136
    %v576 = vunpack.c.h.b16 %v136
    %v577 = vunpack.c.l.b16 %v137
    %v578 = vunpack.c.h.b16 %v137
    %v579 = vunpack.c.l.b16 %v138
    %v580 = vunpack.c.h.b16 %v138
    %v581 = vunpack.c.l.b16 %v139
    %v582 = vunpack.c.h.b16 %v139
    %v583 = vunpack.c.l.b16 %v140
    %v584 = vunpack.c.h.b16 %v140
    %v585 = vunpack.c.l.b16 %v141
    %v586 = vunpack.c.h.b16 %v141
    %v587 = vunpack.c.l.b16 %v142
    %v588 = vunpack.c.h.b16 %v142
    %v589 = vunpack.c.l.b16 %v143
    %v590 = vunpack.c.h.b16 %v143
    %v591 = vunpack.c.l.b16 %v144
    %v592 = vunpack.c.h.b16 %v144
    %v593 = vunpack.c.l.b16 %v145
    %v594 = vunpack.c.h.b16 %v145
    %v595 = vunpack.c.l.b16 %v146
    %v596 = vunpack.c.h.b16 %v146
    %v597 = vunpack.c.l.b16 %v147
    %v598 = vunpack.c.h.b16 %v147
    %v599 = vunpack.c.l.b16 %v148
    %v600 = vunpack.c.h.b16 %v148
    %v601 = vunpack.c.l.b16 %v149
    %v602 = vunpack.c.h.b16 %v149
    %v603 = vunpack.c.l.b16 %v150
    %v604 = vunpack.c.h.b16 %v150
    %v605 = vunpack.c.l.b16 %v151
    %v606 = vunpack.c.h.b16 %v151
    %v607 = vunpack.c.l.b16 %v152
    %v608 = vunpack.c.h.b16 %v152
    %v609 = vunpack.c.l.b16 %v153
    %v610 = vunpack.c.h.b16 %v153
    %v611 = vunpack.c.l.b16 %v154
    %v612 = vunpack.c.h.b16 %v154
    %v613 = vunpack.c.l.b16 %v155
    %v614 = vunpack.c.h.b16 %v155
    %v615 = vunpack.c.l.b16 %v156
    %v616 = vunpack.c.h.b16 %v156
    %v617 = vunpack.c.l.b16 %v157
    %v618 = vunpack.c.h.b16 %v157
    %v619 = vunpack.c.l.b16 %v158
    %v620 = vunpack.c.h.b16 %v158
    %v621 = vunpack.c.l.b16 %v159
    %v622 = vunpack.c.h.b16 %v159
    %v623 = vunpack.c.l.b16 %v160
    %v624 = vunpack.c.h.b16 %v160
    %v625 = vunpack.c.l.b16 %v161
    %v626 = vunpack.c.h.b16 %v161
    %v627 = vunpack.c.l.b16 %v162
    %v628 = vunpack.c.h.b16 %v162
    %v629 = vunpack.c.l.b16 %v163
    %v630 = vunpack.c.h.b16 %v163
    %v631 = vunpack.c.l.b16 %v164
    %v632 = vunpack.c.h.b16 %v164
    %v633 = vunpack.c.l.b16 %v165
    %v634 = vunpack.c.h.b16 %v165
    %v635 = vunpack.c.l.b16 %v166
    %v636 = vunpack.c.h.b16 %v166
    %v637 = vunpack.c.l.b16 %v167
    %v638 = vunpack.c.h.b16 %v167
    %v639 = vunpack.c.l.b16 %v168
    %v640 = vunpack.c.h.b16 %v168
    %v641 = vunpack.c.l.b16 %v169
    %v642 = vunpack.c.h.b16 %v169
    %v643 = vunpack.c.l.b16 %v170
    %v644 = vunpack.c.h.b16 %v170
    %v645 = vunpack.c.l.b16 %v171
    %v646 = vunpack.c.h.b16 %v171
    %v647 = vunpack.c.l.b16 %v172
    %v648 = vunpack.c.h.b16 %v172
    %v649 = vunpack.c.l.b16 %v173
    %v650 = vunpack.c.h.b16 %v173
    %v651 = vunpack.c.l.b16 %v174
    %v652 = vunpack.c.h.b16 %v174
    %v653 = vunpack.c.l.b16 %v175
    %v654 = vunpack.c.h.b16 %v175
    %v655 = vunpack.c.l.b16 %v176
    %v656 = vunpack.c.h.b16 %v176
    %v657 = vunpack.c.l.b16 %v177
    %v658 = vunpack.c.h.b16 %v177
    %v659 = vunpack.c.l.b16 %v178
    %v660 = vunpack.c.h.b16 %v178
    %v661 = vunpack.c.l.b16 %v179
    %v662 = vunpack.c.h.b16 %v179
    %v663 = vunpack.c.l.b16 %v180
    %v664 = vunpack.c.h.b16 %v180
    %v665 = vunpack.c.l.b16 %v181
    %v666 = vunpack.c.h.b16 %v181
    %v667 = vunpack.c.l.b16 %v182
    %v668 = vunpack.c.h.b16 %v182
    %v669 = vunpack.c.l.b16 %v183
    %v670 = vunpack.c.h.b16 %v183
    %v671 = vunpack.c.l.b16 %v184
    %v672 = vunpack.c.h.b16 %v184
    %v673 = vunpack.c.l.b16 %v185
    %v674 = vunpack.c.h.b16 %v185
    %v675 = vunpack.c.l.b16 %v186
    %v676 = vunpack.c.h.b16 %v186
    %v677 = vunpack.c.l.b16 %v187
    %v678 = vunpack.c.h.b16 %v187
    %v679 = vunpack.c.l.b16 %v188
    %v680 = vunpack.c.h.b16 %v188
    %v681 = vunpack.c.l.b16 %v189
    %v682 = vunpack.c.h.b16 %v189
    %v683 = vunpack.c.l.b16 %v190
    %v684 = vunpack.c.h.b16 %v190
    %v685 = vunpack.c.l.b16 %v191
    %v686 = vunpack.c.h.b16 %v191
    %v687 = vunpack.c.l.b16 %v192
    %v688 = vunpack.c.h.b16 %v192
    %v689 = vunpack.c.l.b16 %v193
    %v690 = vunpack.c.h.b16 %v193
    %v691 = vunpack.c.l.b16 %v194
    %v692 = vunpack.c.h.b16 %v194
    %v693 = vunpack.c.l.b16 %v195
    %v694 = vunpack.c.h.b16 %v195
    %v695 = vunpack.c.l.b16 %v196
    %v696 = vunpack.c.h.b16 %v196
    %v697 = vunpack.c.l.b16 %v197
    %v698 = vunpack.c.h.b16 %v197
    %v699 = vunpack.c.l.b16 %v198
    %v700 = vunpack.c.h.b16 %v198
    %v701 = vunpack.c.l.b16 %v199
    %v702 = vunpack.c.h.b16 %v199
    %v703 = vunpack.c.l.b16 %v200
    %v704 = vunpack.c.h.b16 %v200
    %v705 = vunpack.c.l.b16 %v201
    %v706 = vunpack.c.h.b16 %v201
    %v707 = vunpack.c.l.b16 %v202
    %v708 = vunpack.c.h.b16 %v202
    %v709 = vunpack.c.l.b16 %v203
    %v710 = vunpack.c.h.b16 %v203
    %v711 = vunpack.c.l.b16 %v204
    %v712 = vunpack.c.h.b16 %v204
    %v713 = vunpack.c.l.b16 %v205
    %v714 = vunpack.c.h.b16 %v205
    %v715 = vunpack.c.l.b16 %v206
    %v716 = vunpack.c.h.b16 %v206
    %v717 = vunpack.c.l.b16 %v207
    %v718 = vunpack.c.h.b16 %v207
    %v719 = vunpack.c.l.b16 %v208
    %v720 = vunpack.c.h.b16 %v208
    %v721 = vunpack.c.l.b16 %v209
    %v722 = vunpack.c.h.b16 %v209
    %v723 = vunpack.c.l.b16 %v210
    %v724 = vunpack.c.h.b16 %v210
    %v725 = vunpack.c.l.b16 %v211
    %v726 = vunpack.c.h.b16 %v211
    %v727 = vunpack.c.l.b16 %v212
    %v728 = vunpack.c.h.b16 %v212
    %v729 = vunpack.c.l.b16 %v213
    %v730 = vunpack.c.h.b16 %v213
    %v731 = vunpack.c.l.b16 %v214
    %v732 = vunpack.c.h.b16 %v214
    %v733 = vunpack.c.l.b16 %v215
    %v734 = vunpack.c.h.b16 %v215
    %v735 = vunpack.c.l.b16 %v216
    %v736 = vunpack.c.h.b16 %v216
    %v737 = vunpack.c.l.b16 %v217
    %v738 = vunpack.c.h.b16 %v217
    %v739 = vunpack.c.l.b16 %v218
    %v740 = vunpack.c.h.b16 %v218
    %v741 = vunpack.c.l.b16 %v219
    %v742 = vunpack.c.h.b16 %v219
    %v743 = vunpack.c.l.b16 %v220
    %v744 = vunpack.c.h.b16 %v220
    %v745 = vunpack.c.l.b16 %v221
    %v746 = vunpack.c.h.b16 %v221
    %v747 = vunpack.c.l.b16 %v222
    %v748 = vunpack.c.h.b16 %v222
    %v749 = vunpack.c.l.b16 %v223
    %v750 = vunpack.c.h.b16 %v223
    %v751 = vunpack.c.l.b16 %v224
    %v752 = vunpack.c.h.b16 %v224
    %v753 = vunpack.c.l.b16 %v225
    %v754 = vunpack.c.h.b16 %v225
    %v755 = vunpack.c.l.b16 %v226
    %v756 = vunpack.c.h.b16 %v226
    %v757 = vunpack.c.l.b16 %v227
    %v758 = vunpack.c.h.b16 %v227
    %v759 = vunpack.c.l.b16 %v228
    %v760 = vunpack.c.h.b16 %v228
    %v761 = vunpack.c.l.b16 %v229
    %v762 = vunpack.c.h.b16 %v229
    %v763 = vunpack.c.l.b16 %v230
    %v764 = vunpack.c.h.b16 %v230
    %v765 = vunpack.c.l.b16 %v231
    %v766 = vunpack.c.h.b16 %v231
    %v767 = vunpack.c.l.b16 %v232
    %v768 = vunpack.c.h.b16 %v232
    %v769 = vunpack.c.l.b16 %v233
    %v770 = vunpack.c.h.b16 %v233
    %v771 = vunpack.c.l.b16 %v234
    %v772 = vunpack.c.h.b16 %v234
    %v773 = vunpack.c.l.b16 %v235
    %v774 = vunpack.c.h.b16 %v235
    %v775 = vunpack.c.l.b16 %v236
    %v776 = vunpack.c.h.b16 %v236
    %v777 = vunpack.c.l.b16 %v237
    %v778 = vunpack.c.h.b16 %v237
    %v779 = vunpack.c.l.b16 %v238
    %v780 = vunpack.c.h.b16 %v238
    %v781 = vunpack.c.l.b16 %v239
    %v782 = vunpack.c.h.b16 %v239
    %v783 = vunpack.c.l.b16 %v240
    %v784 = vunpack.c.h.b16 %v240
    %v785 = vunpack.c.l.b16 %v241
    %v786 = vunpack.c.h.b16 %v241
    %v787 = vunpack.c.l.b16 %v242
    %v788 = vunpack.c.h.b16 %v242
    %v789 = vunpack.c.l.b16 %v243
    %v790 = vunpack.c.h.b16 %v243
    %v791 = vunpack.c.l.b16 %v244
    %v792 = vunpack.c.h.b16 %v244
    %v793 = vunpack.c.l.b16 %v245
    %v794 = vunpack.c.h.b16 %v245
    %v795 = vunpack.c.l.b16 %v246
    %v796 = vunpack.c.h.b16 %v246
    %v797 = vunpack.c.l.b16 %v247
    %v798 = vunpack.c.h.b16 %v247
    %v799 = vunpack.c.l.b16 %v248
    %v800 = vunpack.c.h.b16 %v248
    %v801 = vunpack.c.l.b16 %v249
    %v802 = vunpack.c.h.b16 %v249
    %v803 = vunpack.c.l.b16 %v250
    %v804 = vunpack.c.h.b16 %v250
    %v805 = vunpack.c.l.b16 %v251
    %v806 = vunpack.c.h.b16 %v251
    %v807 = vunpack.c.l.b16 %v252
    %v808 = vunpack.c.h.b16 %v252
    %v809 = vunpack.c.l.b16 %v253
    %v810 = vunpack.c.h.b16 %v253
    %v811 = vunpack.c.l.b16 %v254
    %v812 = vunpack.c.h.b16 %v254
    %v813 = vunpack.c.l.b16 %v255
    %v814 = vunpack.c.h.b16 %v255
    %v815 = vunpack.c.l.b16 %v256
    %v816 = vunpack.c.h.b16 %v256
    %v817 = vunpack.c.l.b16 %v257
    %v818 = vunpack.c.h.b16 %v257
    %v819 = vunpack.c.l.b16 %v258
    %v820 = vunpack.c.h.b16 %v258
    %v821 = vunpack.c.l.b16 %v259
    %v822 = vunpack.c.h.b16 %v259
    %v823 = vunpack.c.l.b16 %v260
    %v824 = vunpack.c.h.b16 %v260
    %v825 = vunpack.c.l.b16 %v261
    %v826 = vunpack.c.h.b16 %v261
    %v827 = vunpack.c.l.b16 %v262
    %v828 = vunpack.c.h.b16 %v262
    %v829 = vunpack.c.l.b16 %v263
    %v830 = vunpack.c.h.b16 %v263
    %v831 = vunpack.c.l.b16 %v264
    %v832 = vunpack.c.h.b16 %v264
    %v833 = vunpack.c.l.b16 %v265
    %v834 = vunpack.c.h.b16 %v265
    %v835 = vunpack.c.l.b16 %v266
    %v836 = vunpack.c.h.b16 %v266
    %v837 = vunpack.c.l.b16 %v267
    %v838 = vunpack.c.h.b16 %v267
    %v839 = vunpack.c.l.b16 %v268
    %v840 = vunpack.c.h.b16 %v268
    %v841 = vunpack.c.l.b16 %v269
    %v842 = vunpack.c.h.b16 %v269
    %v843 = vunpack.c.l.b16 %v270
    %v844 = vunpack.c.h.b16 %v270
    %v845 = vunpack.c.l.b16 %v271
    %v846 = vunpack.c.h.b16 %v271
    %v847 = vunpack.c.l.b16 %v272
    %v848 = vunpack.c.h.b16 %v272
    %v849 = vunpack.c.l.b16 %v273
    %v850 = vunpack.c.h.b16 %v273
    %v851 = vunpack.c.l.b16 %v274
    %v852 = vunpack.c.h.b16 %v274
    %v853 = vunpack.c.l.b16 %v275
    %v854 = vunpack.c.h.b16 %v275
    %v855 = vunpack.c.l.b16 %v276
    %v856 = vunpack.c.h.b16 %v276
    %v857 = vunpack.c.l.b16 %v277
    %v858 = vunpack.c.h.b16 %v277
    %v859 = vunpack.c.l.b16 %v278
    %v860 = vunpack.c.h.b16 %v278
    %v861 = vunpack.c.l.b16 %v279
    %v862 = vunpack.c.h.b16 %v279
    %v863 = vunpack.c.l.b16 %v280
    %v864 = vunpack.c.h.b16 %v280
    %v865 = vunpack.c.l.b16 %v281
    %v866 = vunpack.c.h.b16 %v281
    %v867 = vunpack.c.l.b16 %v282
    %v868 = vunpack.c.h.b16 %v282
    %v869 = vunpack.c.l.b16 %v283
    %v870 = vunpack.c.h.b16 %v283
    %v871 = vunpack.c.l.b16 %v284
    %v872 = vunpack.c.h.b16 %v284
    %v873 = vunpack.c.l.b16 %v285
    %v874 = vunpack.c.h.b16 %v285
    %v875 = vunpack.c.l.b16 %v286
    %v876 = vunpack.c.h.b16 %v286
    %v877 = vunpack.c.l.b16 %v287
    %v878 = vunpack.c.h.b16 %v287
    %v879 = vunpack.c.l.b16 %v288
    %v880 = vunpack.c.h.b16 %v288
    %v881 = vunpack.c.l.b16 %v289
    %v882 = vunpack.c.h.b16 %v289
    %v883 = vunpack.c.l.b16 %v290
    %v884 = vunpack.c.h.b16 %v290
    %v885 = vunpack.c.l.b16 %v291
    %v886 = vunpack.c.h.b16 %v291
    %v887 = vunpack.c.l.b16 %v292
    %v888 = vunpack.c.h.b16 %v292
    %v889 = vunpack.c.l.b16 %v293
    %v890 = vunpack.c.h.b16 %v293
    %v891 = vunpack.c.l.b16 %v294
    %v892 = vunpack.c.h.b16 %v294
    %v893 = vpack.c.b16 %v505, %v501
    %v894 = vpack.c.b16 %v506, %v502
    %v895 = vpack.c.b16 %v507, %v503
    %v896 = vpack.c.b16 %v508, %v504
    %v897 = vpack.c.b16 %v513, %v509
    %v898 = vpack.c.b16 %v514, %v510
    %v899 = vpack.c.b16 %v515, %v511
    %v900 = vpack.c.b16 %v516, %v512
    %v901 = vpack.c.b16 %v521, %v517
    %v902 = vpack.c.b16 %v522, %v518
    %v903 = vpack.c.b16 %v523, %v519
    %v904 = vpack.c.b16 %v524, %v520
    %v905 = vpack.c.b16 %v529, %v525
    %v906 = vpack.c.b16 %v530, %v526
    %v907 = vpack.c.b16 %v531, %v527
    %v908 = vpack.c.b16 %v532, %v528
    %v909 = vpack.c.b16 %v537, %v533
    %v910 = vpack.c.b16 %v538, %v534
    %v911 = vpack.c.b16 %v539, %v535
    %v912 = vpack.c.b16 %v540, %v536
    %v913 = vpack.c.b16 %v545, %v541
    %v914 = vpack.c.b16 %v546, %v542
    %v915 = vpack.c.b16 %v547, %v543
    %v916 = vpack.c.b16 %v548, %v544
    %v917 = vpack.c.b16 %v553, %v549
    %v918 = vpack.c.b16 %v554, %v550
    %v919 = vpack.c.b16 %v555, %v551
    %v920 = vpack.c.b16 %v556, %v552
    %v921 = vpack.c.b16 %v561, %v557
    %v922 = vpack.c.b16 %v562, %v558
    %v923 = vpack.c.b16 %v563, %v559
    %v924 = vpack.c.b16 %v564, %v560
    %v925 = vpack.c.b16 %v569, %v565
    %v926 = vpack.c.b16 %v570, %v566
    %v927 = vpack.c.b16 %v571, %v567
    %v928 = vpack.c.b16 %v572, %v568
    %v929 = vpack.c.b16 %v577, %v573
    %v930 = vpack.c.b16 %v578, %v574
    %v931 = vpack.c.b16 %v579, %v575
    %v932 = vpack.c.b16 %v580, %v576
    %v933 = vpack.c.b16 %v585, %v581
    %v934 = vpack.c.b16 %v586, %v582
    %v935 = vpack.c.b16 %v587, %v583
    %v936 = vpack.c.b16 %v588, %v584
    %v937 = vpack.c.b16 %v593, %v589
    %v938 = vpack.c.b16 %v594, %v590
    %v939 = vpack.c.b16 %v595, %v591
    %v940 = vpack.c.b16 %v596, %v592
    %v941 = vpack.c.b16 %v601, %v597
    %v942 = vpack.c.b16 %v602, %v598
    %v943 = vpack.c.b16 %v603, %v599
    %v944 = vpack.c.b16 %v604, %v600
    %v945 = vpack.c.b16 %v609, %v605
    %v946 = vpack.c.b16 %v610, %v606
    %v947 = vpack.c.b16 %v611, %v607
    %v948 = vpack.c.b16 %v612, %v608
    %v949 = vpack.c.b16 %v617, %v613
    %v950 = vpack.c.b16 %v618, %v614
    %v951 = vpack.c.b16 %v619, %v615
    %v952 = vpack.c.b16 %v620, %v616
    %v953 = vpack.c.b16 %v625, %v621
    %v954 = vpack.c.b16 %v626, %v622
    %v955 = vpack.c.b16 %v627, %v623
    %v956 = vpack.c.b16 %v628, %v624
    %v957 = vpack.c.b16 %v633, %v629
    %v958 = vpack.c.b16 %v634, %v630
    %v959 = vpack.c.b16 %v635, %v631
    %v960 = vpack.c.b16 %v636, %v632
    %v961 = vpack.c.b16 %v641, %v637
    %v962 = vpack.c.b16 %v642, %v638
    %v963 = vpack.c.b16 %v643, %v639
    %v964 = vpack.c.b16 %v644, %v640
    %v965 = vpack.c.b16 %v649, %v645
    %v966 = vpack.c.b16 %v650, %v646
    %v967 = vpack.c.b16 %v651, %v647
    %v968 = vpack.c.b16 %v652, %v648
    %v969 = vpack.c.b16 %v657, %v653
    %v970 = vpack.c.b16 %v658, %v654
    %v971 = vpack.c.b16 %v659, %v655
    %v972 = vpack.c.b16 %v660, %v656
    %v973 = vpack.c.b16 %v665, %v661
    %v974 = vpack.c.b16 %v666, %v662
    %v975 = vpack.c.b16 %v667, %v663
    %v976 = vpack.c.b16 %v668, %v664
    %v977 = vpack.c.b16 %v673, %v669
    %v978 = vpack.c.b16 %v674, %v670
    %v979 = vpack.c.b16 %v675, %v671
    %v980 = vpack.c.b16 %v676, %v672
    %v981 = vpack.c.b16 %v681, %v677
    %v982 = vpack.c.b16 %v682, %v678
    %v983 = vpack.c.b16 %v683, %v679
    %v984 = vpack.c.b16 %v684, %v680
    %v985 = vpack.c.b16 %v689, %v685
    %v986 = vpack.c.b16 %v690, %v686
    %v987 = vpack.c.b16 %v691, %v687
    %v988 = vpack.c.b16 %v692, %v688
    %v989 = vpack.c.b16 %v697, %v693
    %v990 = vpack.c.b16 %v698, %v694
    %v991 = vpack.c.b16 %v699, %v695
    %v992 = vpack.c.b16 %v700, %v696
    %v993 = vpack.c.b16 %v705, %v701
    %v994 = vpack.c.b16 %v706, %v702
    %v995 = vpack.c.b16 %v707, %v703
    %v996 = vpack.c.b16 %v708, %v704
    %v997 = vpack.c.b16 %v713, %v709
    %v998 = vpack.c.b16 %v714, %v710
    %v999 = vpack.c.b16 %v715, %v711
    %v1000 = vpack.c.b16 %v716, %v712
    %v1001 = vpack.c.b16 %v721, %v717
    %v1002 = vpack.c.b16 %v722, %v718
    %v1003 = vpack.c.b16 %v723, %v719
    %v1004 = vpack.c.b16 %v724, %v720
    %v1005 = vpack.c.b16 %v729, %v725
    %v1006 = vpack.c.b16 %v730, %v726
    %v1007 = vpack.c.b16 %v731, %v727
    %v1008 = vpack.c.b16 %v732, %v728
    %v1009 = vpack.c.b16 %v737, %v733
    %v1010 = vpack.c.b16 %v738, %v734
    %v1011 = vpack.c.b16 %v739, %v735
    %v1012 = vpack.c.b16 %v740, %v736
    %v1013 = vpack.c.b16 %v745, %v741
    %v1014 = vpack.c.b16 %v746, %v742
    %v1015 = vpack.c.b16 %v747, %v743
    %v1016 = vpack.c.b16 %v748, %v744
    %v1017 = vpack.c.b16 %v753, %v749
    %v1018 = vpack.c.b16 %v754, %v750
    %v1019 = vpack.c.b16 %v755, %v751
    %v1020 = vpack.c.b16 %v756, %v752
    %v1021 = vpack.c.b16 %v761, %v757
    %v1022 = vpack.c.b16 %v762, %v758
    %v1023 = vpack.c.b16 %v763, %v759
    %v1024 = vpack.c.b16 %v764, %v760
    %v1025 = vpack.c.b16 %v769, %v765
    %v1026 = vpack.c.b16 %v770, %v766
    %v1027 = vpack.c.b16 %v771, %v767
    %v1028 = vpack.c.b16 %v772, %v768
    %v1029 = vpack.c.b16 %v777, %v773
    %v1030 = vpack.c.b16 %v778, %v774
    %v1031 = vpack.c.b16 %v779, %v775
    %v1032 = vpack.c.b16 %v780, %v776
    %v1033 = vpack.c.b16 %v785, %v781
    %v1034 = vpack.c.b16 %v786, %v782
    %v1035 = vpack.c.b16 %v787, %v783
    %v1036 = vpack.c.b16 %v788, %v784
    %v1037 = vpack.c.b16 %v793, %v789
    %v1038 = vpack.c.b16 %v794, %v790
    %v1039 = vpack.c.b16 %v795, %v791
    %v1040 = vpack.c.b16 %v796, %v792
    %v1041 = vpack.c.b16 %v801, %v797
    %v1042 = vpack.c.b16 %v802, %v798
    %v1043 = vpack.c.b16 %v803, %v799
    %v1044 = vpack.c.b16 %v804, %v800
    %v1045 = vpack.c.b16 %v809, %v805
    %v1046 = vpack.c.b16 %v810, %v806
    %v1047 = vpack.c.b16 %v811, %v807
    %v1048 = vpack.c.b16 %v812, %v808
    %v1049 = vpack.c.b16 %v817, %v813
    %v1050 = vpack.c.b16 %v818, %v814
    %v1051 = vpack.c.b16 %v819, %v815
    %v1052 = vpack.c.b16 %v820, %v816
    %v1053 = vpack.c.b16 %v825, %v821
    %v1054 = vpack.c.b16 %v826, %v822
    %v1055 = vpack.c.b16 %v827, %v823
    %v1056 = vpack.c.b16 %v828, %v824
    %v1057 = vpack.c.b16 %v833, %v829
    %v1058 = vpack.c.b16 %v834, %v830
    %v1059 = vpack.c.b16 %v835, %v831
    %v1060 = vpack.c.b16 %v836, %v832
    %v1061 = vpack.c.b16 %v841, %v837
    %v1062 = vpack.c.b16 %v842, %v838
    %v1063 = vpack.c.b16 %v843, %v839
    %v1064 = vpack.c.b16 %v844, %v840
    %v1065 = vpack.c.b16 %v849, %v845
    %v1066 = vpack.c.b16 %v850, %v846
    %v1067 = vpack.c.b16 %v851, %v847
    %v1068 = vpack.c.b16 %v852, %v848
    %v1069 = vpack.c.b16 %v857, %v853
    %v1070 = vpack.c.b16 %v858, %v854
    %v1071 = vpack.c.b16 %v859, %v855
    %v1072 = vpack.c.b16 %v860, %v856
    %v1073 = vpack.c.b16 %v865, %v861
    %v1074 = vpack.c.b16 %v866, %v862
    %v1075 = vpack.c.b16 %v867, %v863
    %v1076 = vpack.c.b16 %v868, %v864
    %v1077 = vpack.c.b16 %v873, %v869
    %v1078 = vpack.c.b16 %v874, %v870
    %v1079 = vpack.c.b16 %v875, %v871
    %v1080 = vpack.c.b16 %v876, %v872
    %v1081 = vpack.c.b16 %v881, %v877
    %v1082 = vpack.c.b16 %v882, %v878
    %v1083 = vpack.c.b16 %v883, %v879
    %v1084 = vpack.c.b16 %v884, %v880
    %v1085 = vpack.c.b16 %v889, %v885
    %v1086 = vpack.c.b16 %v890, %v886
    %v1087 = vpack.c.b16 %v891, %v887
    %v1088 = vpack.c.b16 %v892, %v888
    %vm1285 = vcmask 130048
    %v1287 = vsel %vm1285, %v98, 0
    %1289 = vmatpush.bf16.msra.mxu0 %v921
    %1290 = vmatpush.bf16.msra.mxu0 %v917
    %1291 = vmatpush.bf16.msra.mxu0 %v913
    %1292 = vmatpush.bf16.msra.mxu0 %v909
    %1293 = vmatpush.bf16.msra.mxu0 %v905
    %1294 = vmatpush.bf16.msra.mxu0 %v901
    %1295 = vmatpush.bf16.msra.mxu0 %v897
    %1296 = vmatpush.bf16.msra.mxu0 %v893
    %1297 = vmatmul.bf16.gmra.mxu0 %v92
    %v1298 = vpop.f32.mrf.mxu0
    %v1299 = vadd.f32 %v297, %v1298
    %v1300 = vpop.f32.mrf.mxu0
    %1301 = vdwg.mxu0
    %1302 = vmatpush.bf16.msra.mxu0 %v953
    %1303 = vmatpush.bf16.msra.mxu0 %v949
    %1304 = vmatpush.bf16.msra.mxu0 %v945
    %1305 = vmatpush.bf16.msra.mxu0 %v941
    %1306 = vmatpush.bf16.msra.mxu0 %v937
    %1307 = vmatpush.bf16.msra.mxu0 %v933
    %1308 = vmatpush.bf16.msra.mxu0 %v929
    %1309 = vmatpush.bf16.msra.mxu0 %v925
    %1310 = vmatmul.bf16.gmra.mxu0 %v93
    %v1311 = vpop.f32.mrf.mxu0
    %v1312 = vadd.f32 %v1299, %v1311
    %v1313 = vpop.f32.mrf.mxu0
    %1314 = vdwg.mxu0
    %1315 = vmatpush.bf16.msra.mxu0 %v985
    %1316 = vmatpush.bf16.msra.mxu0 %v981
    %1317 = vmatpush.bf16.msra.mxu0 %v977
    %1318 = vmatpush.bf16.msra.mxu0 %v973
    %1319 = vmatpush.bf16.msra.mxu0 %v969
    %1320 = vmatpush.bf16.msra.mxu0 %v965
    %1321 = vmatpush.bf16.msra.mxu0 %v961
    %1322 = vmatpush.bf16.msra.mxu0 %v957
    %1323 = vmatmul.bf16.gmra.mxu0 %v94
    %v1324 = vpop.f32.mrf.mxu0
    %v1325 = vadd.f32 %v1312, %v1324
    %v1326 = vpop.f32.mrf.mxu0
    %1327 = vdwg.mxu0
    %1328 = vmatpush.bf16.msra.mxu0 %v1017
    %1329 = vmatpush.bf16.msra.mxu0 %v1013
    %1330 = vmatpush.bf16.msra.mxu0 %v1009
    %1331 = vmatpush.bf16.msra.mxu0 %v1005
    %1332 = vmatpush.bf16.msra.mxu0 %v1001
    %1333 = vmatpush.bf16.msra.mxu0 %v997
    %1334 = vmatpush.bf16.msra.mxu0 %v993
    %1335 = vmatpush.bf16.msra.mxu0 %v989
    %1336 = vmatmul.bf16.gmra.mxu0 %v95
    %v1337 = vpop.f32.mrf.mxu0
    %v1338 = vadd.f32 %v1325, %v1337
    %v1339 = vpop.f32.mrf.mxu0
    %1340 = vdwg.mxu0
    %1341 = vmatpush.bf16.msra.mxu0 %v1049
    %1342 = vmatpush.bf16.msra.mxu0 %v1045
    %1343 = vmatpush.bf16.msra.mxu0 %v1041
    %1344 = vmatpush.bf16.msra.mxu0 %v1037
    %1345 = vmatpush.bf16.msra.mxu0 %v1033
    %1346 = vmatpush.bf16.msra.mxu0 %v1029
    %1347 = vmatpush.bf16.msra.mxu0 %v1025
    %1348 = vmatpush.bf16.msra.mxu0 %v1021
    %1349 = vmatmul.bf16.gmra.mxu0 %v96
    %v1350 = vpop.f32.mrf.mxu0
    %v1351 = vadd.f32 %v1338, %v1350
    %v1352 = vpop.f32.mrf.mxu0
    %1353 = vdwg.mxu0
    %1354 = vmatpush.bf16.msra.mxu0 %v1081
    %1355 = vmatpush.bf16.msra.mxu0 %v1077
    %1356 = vmatpush.bf16.msra.mxu0 %v1073
    %1357 = vmatpush.bf16.msra.mxu0 %v1069
    %1358 = vmatpush.bf16.msra.mxu0 %v1065
    %1359 = vmatpush.bf16.msra.mxu0 %v1061
    %1360 = vmatpush.bf16.msra.mxu0 %v1057
    %1361 = vmatpush.bf16.msra.mxu0 %v1053
    %1362 = vmatmul.bf16.gmra.mxu0 %v97
    %v1363 = vpop.f32.mrf.mxu0
    %v1364 = vadd.f32 %v1351, %v1363
    %v1365 = vpop.f32.mrf.mxu0
    %1366 = vdwg.mxu0
    %1367 = vmatpush.bf16.msra.mxu0 0
    %1368 = vmatpush.bf16.msra.mxu0 0
    %1369 = vmatpush.bf16.msra.mxu0 0
    %1370 = vmatpush.bf16.msra.mxu0 0
    %1371 = vmatpush.bf16.msra.mxu0 0
    %1372 = vmatpush.bf16.msra.mxu0 0
    %1373 = vmatpush.bf16.msra.mxu0 0
    %1374 = vmatpush.bf16.msra.mxu0 %v1085
    %1375 = vmatmul.bf16.gmra.mxu0 %v1287
    %v1376 = vpop.f32.mrf.mxu0
    %v1377 = vadd.f32 %v1364, %v1376
    %v1378 = vpop.f32.mrf.mxu0
    %1379 = vdwg.mxu0
    %1380 = vmatpush.bf16.msra.mxu0 %v922
    %1381 = vmatpush.bf16.msra.mxu0 %v918
    %1382 = vmatpush.bf16.msra.mxu0 %v914
    %1383 = vmatpush.bf16.msra.mxu0 %v910
    %1384 = vmatpush.bf16.msra.mxu0 %v906
    %1385 = vmatpush.bf16.msra.mxu0 %v902
    %1386 = vmatpush.bf16.msra.mxu0 %v898
    %1387 = vmatpush.bf16.msra.mxu0 %v894
    %1388 = vmatmul.bf16.gmra.mxu0 %v92
    %v1389 = vpop.f32.mrf.mxu0
    %v1390 = vadd.f32 %v298, %v1389
    %v1391 = vpop.f32.mrf.mxu0
    %1392 = vdwg.mxu0
    %1393 = vmatpush.bf16.msra.mxu0 %v954
    %1394 = vmatpush.bf16.msra.mxu0 %v950
    %1395 = vmatpush.bf16.msra.mxu0 %v946
    %1396 = vmatpush.bf16.msra.mxu0 %v942
    %1397 = vmatpush.bf16.msra.mxu0 %v938
    %1398 = vmatpush.bf16.msra.mxu0 %v934
    %1399 = vmatpush.bf16.msra.mxu0 %v930
    %1400 = vmatpush.bf16.msra.mxu0 %v926
    %1401 = vmatmul.bf16.gmra.mxu0 %v93
    %v1402 = vpop.f32.mrf.mxu0
    %v1403 = vadd.f32 %v1390, %v1402
    %v1404 = vpop.f32.mrf.mxu0
    %1405 = vdwg.mxu0
    %1406 = vmatpush.bf16.msra.mxu0 %v986
    %1407 = vmatpush.bf16.msra.mxu0 %v982
    %1408 = vmatpush.bf16.msra.mxu0 %v978
    %1409 = vmatpush.bf16.msra.mxu0 %v974
    %1410 = vmatpush.bf16.msra.mxu0 %v970
    %1411 = vmatpush.bf16.msra.mxu0 %v966
    %1412 = vmatpush.bf16.msra.mxu0 %v962
    %1413 = vmatpush.bf16.msra.mxu0 %v958
    %1414 = vmatmul.bf16.gmra.mxu0 %v94
    %v1415 = vpop.f32.mrf.mxu0
    %v1416 = vadd.f32 %v1403, %v1415
    %v1417 = vpop.f32.mrf.mxu0
    %1418 = vdwg.mxu0
    %1419 = vmatpush.bf16.msra.mxu0 %v1018
    %1420 = vmatpush.bf16.msra.mxu0 %v1014
    %1421 = vmatpush.bf16.msra.mxu0 %v1010
    %1422 = vmatpush.bf16.msra.mxu0 %v1006
    %1423 = vmatpush.bf16.msra.mxu0 %v1002
    %1424 = vmatpush.bf16.msra.mxu0 %v998
    %1425 = vmatpush.bf16.msra.mxu0 %v994
    %1426 = vmatpush.bf16.msra.mxu0 %v990
    %1427 = vmatmul.bf16.gmra.mxu0 %v95
    %v1428 = vpop.f32.mrf.mxu0
    %v1429 = vadd.f32 %v1416, %v1428
    %v1430 = vpop.f32.mrf.mxu0
    %1431 = vdwg.mxu0
    %1432 = vmatpush.bf16.msra.mxu0 %v1050
    %1433 = vmatpush.bf16.msra.mxu0 %v1046
    %1434 = vmatpush.bf16.msra.mxu0 %v1042
    %1435 = vmatpush.bf16.msra.mxu0 %v1038
    %1436 = vmatpush.bf16.msra.mxu0 %v1034
    %1437 = vmatpush.bf16.msra.mxu0 %v1030
    %1438 = vmatpush.bf16.msra.mxu0 %v1026
    %1439 = vmatpush.bf16.msra.mxu0 %v1022
    %1440 = vmatmul.bf16.gmra.mxu0 %v96
    %v1441 = vpop.f32.mrf.mxu0
    %v1442 = vadd.f32 %v1429, %v1441
    %v1443 = vpop.f32.mrf.mxu0
    %1444 = vdwg.mxu0
    %1445 = vmatpush.bf16.msra.mxu0 %v1082
    %1446 = vmatpush.bf16.msra.mxu0 %v1078
    %1447 = vmatpush.bf16.msra.mxu0 %v1074
    %1448 = vmatpush.bf16.msra.mxu0 %v1070
    %1449 = vmatpush.bf16.msra.mxu0 %v1066
    %1450 = vmatpush.bf16.msra.mxu0 %v1062
    %1451 = vmatpush.bf16.msra.mxu0 %v1058
    %1452 = vmatpush.bf16.msra.mxu0 %v1054
    %1453 = vmatmul.bf16.gmra.mxu0 %v97
    %v1454 = vpop.f32.mrf.mxu0
    %v1455 = vadd.f32 %v1442, %v1454
    %v1456 = vpop.f32.mrf.mxu0
    %1457 = vdwg.mxu0
    %1458 = vmatpush.bf16.msra.mxu0 0
    %1459 = vmatpush.bf16.msra.mxu0 0
    %1460 = vmatpush.bf16.msra.mxu0 0
    %1461 = vmatpush.bf16.msra.mxu0 0
    %1462 = vmatpush.bf16.msra.mxu0 0
    %1463 = vmatpush.bf16.msra.mxu0 0
    %1464 = vmatpush.bf16.msra.mxu0 0
    %1465 = vmatpush.bf16.msra.mxu0 %v1086
    %1466 = vmatmul.bf16.gmra.mxu0 %v1287
    %v1467 = vpop.f32.mrf.mxu0
    %v1468 = vadd.f32 %v1455, %v1467
    %v1469 = vpop.f32.mrf.mxu0
    %1470 = vdwg.mxu0
    %1471 = vmatpush.bf16.msra.mxu0 %v923
    %1472 = vmatpush.bf16.msra.mxu0 %v919
    %1473 = vmatpush.bf16.msra.mxu0 %v915
    %1474 = vmatpush.bf16.msra.mxu0 %v911
    %1475 = vmatpush.bf16.msra.mxu0 %v907
    %1476 = vmatpush.bf16.msra.mxu0 %v903
    %1477 = vmatpush.bf16.msra.mxu0 %v899
    %1478 = vmatpush.bf16.msra.mxu0 %v895
    %1479 = vmatmul.bf16.gmra.mxu0 %v92
    %v1480 = vpop.f32.mrf.mxu0
    %v1481 = vadd.f32 %v299, %v1480
    %v1482 = vpop.f32.mrf.mxu0
    %1483 = vdwg.mxu0
    %1484 = vmatpush.bf16.msra.mxu0 %v955
    %1485 = vmatpush.bf16.msra.mxu0 %v951
    %1486 = vmatpush.bf16.msra.mxu0 %v947
    %1487 = vmatpush.bf16.msra.mxu0 %v943
    %1488 = vmatpush.bf16.msra.mxu0 %v939
    %1489 = vmatpush.bf16.msra.mxu0 %v935
    %1490 = vmatpush.bf16.msra.mxu0 %v931
    %1491 = vmatpush.bf16.msra.mxu0 %v927
    %1492 = vmatmul.bf16.gmra.mxu0 %v93
    %v1493 = vpop.f32.mrf.mxu0
    %v1494 = vadd.f32 %v1481, %v1493
    %v1495 = vpop.f32.mrf.mxu0
    %1496 = vdwg.mxu0
    %1497 = vmatpush.bf16.msra.mxu0 %v987
    %1498 = vmatpush.bf16.msra.mxu0 %v983
    %1499 = vmatpush.bf16.msra.mxu0 %v979
    %1500 = vmatpush.bf16.msra.mxu0 %v975
    %1501 = vmatpush.bf16.msra.mxu0 %v971
    %1502 = vmatpush.bf16.msra.mxu0 %v967
    %1503 = vmatpush.bf16.msra.mxu0 %v963
    %1504 = vmatpush.bf16.msra.mxu0 %v959
    %1505 = vmatmul.bf16.gmra.mxu0 %v94
    %v1506 = vpop.f32.mrf.mxu0
    %v1507 = vadd.f32 %v1494, %v1506
    %v1508 = vpop.f32.mrf.mxu0
    %1509 = vdwg.mxu0
    %1510 = vmatpush.bf16.msra.mxu0 %v1019
    %1511 = vmatpush.bf16.msra.mxu0 %v1015
    %1512 = vmatpush.bf16.msra.mxu0 %v1011
    %1513 = vmatpush.bf16.msra.mxu0 %v1007
    %1514 = vmatpush.bf16.msra.mxu0 %v1003
    %1515 = vmatpush.bf16.msra.mxu0 %v999
    %1516 = vmatpush.bf16.msra.mxu0 %v995
    %1517 = vmatpush.bf16.msra.mxu0 %v991
    %1518 = vmatmul.bf16.gmra.mxu0 %v95
    %v1519 = vpop.f32.mrf.mxu0
    %v1520 = vadd.f32 %v1507, %v1519
    %v1521 = vpop.f32.mrf.mxu0
    %1522 = vdwg.mxu0
    %1523 = vmatpush.bf16.msra.mxu0 %v1051
    %1524 = vmatpush.bf16.msra.mxu0 %v1047
    %1525 = vmatpush.bf16.msra.mxu0 %v1043
    %1526 = vmatpush.bf16.msra.mxu0 %v1039
    %1527 = vmatpush.bf16.msra.mxu0 %v1035
    %1528 = vmatpush.bf16.msra.mxu0 %v1031
    %1529 = vmatpush.bf16.msra.mxu0 %v1027
    %1530 = vmatpush.bf16.msra.mxu0 %v1023
    %1531 = vmatmul.bf16.gmra.mxu0 %v96
    %v1532 = vpop.f32.mrf.mxu0
    %v1533 = vadd.f32 %v1520, %v1532
    %v1534 = vpop.f32.mrf.mxu0
    %1535 = vdwg.mxu0
    %1536 = vmatpush.bf16.msra.mxu0 %v1083
    %1537 = vmatpush.bf16.msra.mxu0 %v1079
    %1538 = vmatpush.bf16.msra.mxu0 %v1075
    %1539 = vmatpush.bf16.msra.mxu0 %v1071
    %1540 = vmatpush.bf16.msra.mxu0 %v1067
    %1541 = vmatpush.bf16.msra.mxu0 %v1063
    %1542 = vmatpush.bf16.msra.mxu0 %v1059
    %1543 = vmatpush.bf16.msra.mxu0 %v1055
    %1544 = vmatmul.bf16.gmra.mxu0 %v97
    %v1545 = vpop.f32.mrf.mxu0
    %v1546 = vadd.f32 %v1533, %v1545
    %v1547 = vpop.f32.mrf.mxu0
    %1548 = vdwg.mxu0
    %1549 = vmatpush.bf16.msra.mxu0 0
    %1550 = vmatpush.bf16.msra.mxu0 0
    %1551 = vmatpush.bf16.msra.mxu0 0
    %1552 = vmatpush.bf16.msra.mxu0 0
    %1553 = vmatpush.bf16.msra.mxu0 0
    %1554 = vmatpush.bf16.msra.mxu0 0
    %1555 = vmatpush.bf16.msra.mxu0 0
    %1556 = vmatpush.bf16.msra.mxu0 %v1087
    %1557 = vmatmul.bf16.gmra.mxu0 %v1287
    %v1558 = vpop.f32.mrf.mxu0
    %v1559 = vadd.f32 %v1546, %v1558
    %v1560 = vpop.f32.mrf.mxu0
    %1561 = vdwg.mxu0
    %1562 = vmatpush.bf16.msra.mxu0 %v924
    %1563 = vmatpush.bf16.msra.mxu0 %v920
    %1564 = vmatpush.bf16.msra.mxu0 %v916
    %1565 = vmatpush.bf16.msra.mxu0 %v912
    %1566 = vmatpush.bf16.msra.mxu0 %v908
    %1567 = vmatpush.bf16.msra.mxu0 %v904
    %1568 = vmatpush.bf16.msra.mxu0 %v900
    %1569 = vmatpush.bf16.msra.mxu0 %v896
    %1570 = vmatmul.bf16.gmra.mxu0 %v92
    %v1571 = vpop.f32.mrf.mxu0
    %v1572 = vadd.f32 %v300, %v1571
    %v1573 = vpop.f32.mrf.mxu0
    %1574 = vdwg.mxu0
    %1575 = vmatpush.bf16.msra.mxu0 %v956
    %1576 = vmatpush.bf16.msra.mxu0 %v952
    %1577 = vmatpush.bf16.msra.mxu0 %v948
    %1578 = vmatpush.bf16.msra.mxu0 %v944
    %1579 = vmatpush.bf16.msra.mxu0 %v940
    %1580 = vmatpush.bf16.msra.mxu0 %v936
    %1581 = vmatpush.bf16.msra.mxu0 %v932
    %1582 = vmatpush.bf16.msra.mxu0 %v928
    %1583 = vmatmul.bf16.gmra.mxu0 %v93
    %v1584 = vpop.f32.mrf.mxu0
    %v1585 = vadd.f32 %v1572, %v1584
    %v1586 = vpop.f32.mrf.mxu0
    %1587 = vdwg.mxu0
    %1588 = vmatpush.bf16.msra.mxu0 %v988
    %1589 = vmatpush.bf16.msra.mxu0 %v984
    %1590 = vmatpush.bf16.msra.mxu0 %v980
    %1591 = vmatpush.bf16.msra.mxu0 %v976
    %1592 = vmatpush.bf16.msra.mxu0 %v972
    %1593 = vmatpush.bf16.msra.mxu0 %v968
    %1594 = vmatpush.bf16.msra.mxu0 %v964
    %1595 = vmatpush.bf16.msra.mxu0 %v960
    %1596 = vmatmul.bf16.gmra.mxu0 %v94
    %v1597 = vpop.f32.mrf.mxu0
    %v1598 = vadd.f32 %v1585, %v1597
    %v1599 = vpop.f32.mrf.mxu0
    %1600 = vdwg.mxu0
    %1601 = vmatpush.bf16.msra.mxu0 %v1020
    %1602 = vmatpush.bf16.msra.mxu0 %v1016
    %1603 = vmatpush.bf16.msra.mxu0 %v1012
    %1604 = vmatpush.bf16.msra.mxu0 %v1008
    %1605 = vmatpush.bf16.msra.mxu0 %v1004
    %1606 = vmatpush.bf16.msra.mxu0 %v1000
    %1607 = vmatpush.bf16.msra.mxu0 %v996
    %1608 = vmatpush.bf16.msra.mxu0 %v992
    %1609 = vmatmul.bf16.gmra.mxu0 %v95
    %v1610 = vpop.f32.mrf.mxu0
    %v1611 = vadd.f32 %v1598, %v1610
    %v1612 = vpop.f32.mrf.mxu0
    %1613 = vdwg.mxu0
    %1614 = vmatpush.bf16.msra.mxu0 %v1052
    %1615 = vmatpush.bf16.msra.mxu0 %v1048
    %1616 = vmatpush.bf16.msra.mxu0 %v1044
    %1617 = vmatpush.bf16.msra.mxu0 %v1040
    %1618 = vmatpush.bf16.msra.mxu0 %v1036
    %1619 = vmatpush.bf16.msra.mxu0 %v1032
    %1620 = vmatpush.bf16.msra.mxu0 %v1028
    %1621 = vmatpush.bf16.msra.mxu0 %v1024
    %1622 = vmatmul.bf16.gmra.mxu0 %v96
    %v1623 = vpop.f32.mrf.mxu0
    %v1624 = vadd.f32 %v1611, %v1623
    %v1625 = vpop.f32.mrf.mxu0
    %1626 = vdwg.mxu0
    %1627 = vmatpush.bf16.msra.mxu0 %v1084
    %1628 = vmatpush.bf16.msra.mxu0 %v1080
    %1629 = vmatpush.bf16.msra.mxu0 %v1076
    %1630 = vmatpush.bf16.msra.mxu0 %v1072
    %1631 = vmatpush.bf16.msra.mxu0 %v1068
    %1632 = vmatpush.bf16.msra.mxu0 %v1064
    %1633 = vmatpush.bf16.msra.mxu0 %v1060
    %1634 = vmatpush.bf16.msra.mxu0 %v1056
    %1635 = vmatmul.bf16.gmra.mxu0 %v97
    %v1636 = vpop.f32.mrf.mxu0
    %v1637 = vadd.f32 %v1624, %v1636
    %v1638 = vpop.f32.mrf.mxu0
    %1639 = vdwg.mxu0
    %1640 = vmatpush.bf16.msra.mxu0 0
    %1641 = vmatpush.bf16.msra.mxu0 0
    %1642 = vmatpush.bf16.msra.mxu0 0
    %1643 = vmatpush.bf16.msra.mxu0 0
    %1644 = vmatpush.bf16.msra.mxu0 0
    %1645 = vmatpush.bf16.msra.mxu0 0
    %1646 = vmatpush.bf16.msra.mxu0 0
    %1647 = vmatpush.bf16.msra.mxu0 %v1088
    %1648 = vmatmul.bf16.gmra.mxu0 %v1287
    %v1649 = vpop.f32.mrf.mxu0
    %v1650 = vadd.f32 %v1637, %v1649
    %v1651 = vpop.f32.mrf.mxu0
    %1652 = vdwg.mxu0
    %v1653 = vmax.f32 %v1377, 0.0
    %v1654 = vmax.f32 %v1468, 0.0
    %v1655 = vmax.f32 %v1559, 0.0
    %v1656 = vmax.f32 %v1650, 0.0
    %v1657 = vpack.c.bf16 %v1653, %v1653
    %v1658 = vpack.c.bf16 %v1654, %v1654
    %v1659 = vpack.c.bf16 %v1655, %v1655
    %v1660 = vpack.c.bf16 %v1656, %v1656
    %v1661 = vld [vmem:[%s4] sm:$0xff]
    %v1662 = vld [vmem:[%s4 + $0x8] sm:$0xff]
    %v1663 = vld [vmem:[%s4 + $0x10] sm:$0xff]
    %v1664 = vld [vmem:[%s4 + $0x18] sm:$0xff]
    %v1665 = vld [vmem:[%s4 + $0x20] sm:$0xff]
    %v1666 = vld [vmem:[%s4 + $0x28] sm:$0xff]
    %v1667 = vld [vmem:[%s4 + $0x30] sm:$0xff]
    %v1668 = vld [vmem:[%s4 + $0x38] sm:$0xff]
    %v1669 = vld [vmem:[%s4 + $0x40] sm:$0xff]
    %v1670 = vld [vmem:[%s4 + $0x48] sm:$0xff]
    %v1671 = vld [vmem:[%s4 + $0x50] sm:$0xff]
    %v1672 = vld [vmem:[%s4 + $0x58] sm:$0xff]
    %v1673 = vld [vmem:[%s4 + $0x60] sm:$0xff]
    %v1674 = vld [vmem:[%s4 + $0x68] sm:$0xff]
    %v1675 = vld [vmem:[%s4 + $0x70] sm:$0xff]
    %v1676 = vld [vmem:[%s4 + $0x78] sm:$0xff]
    %v1677 = vld [vmem:[%s4 + $0x80] sm:$0xff]
    %v1678 = vld [vmem:[%s4 + $0x88] sm:$0xff]
    %v1679 = vld [vmem:[%s4 + $0x90] sm:$0xff]
    %v1680 = vld [vmem:[%s4 + $0x98] sm:$0xff]
    %v1681 = vld [vmem:[%s4 + $0xa0] sm:$0xff]
    %v1682 = vld [vmem:[%s4 + $0xa8] sm:$0xff]
    %v1683 = vld [vmem:[%s4 + $0xb0] sm:$0xff]
    %v1684 = vld [vmem:[%s4 + $0xb8] sm:$0xff]
    %v1685 = vld [vmem:[%s4 + $0xc0] sm:$0xff]
    %v1686 = vld [vmem:[%s4 + $0xc8] sm:$0xff]
    %v1687 = vld [vmem:[%s4 + $0xd0] sm:$0xff]
    %v1688 = vld [vmem:[%s4 + $0xd8] sm:$0xff]
    %v1689 = vld [vmem:[%s4 + $0xe0] sm:$0xff]
    %v1690 = vld [vmem:[%s4 + $0xe8] sm:$0xff]
    %v1691 = vld [vmem:[%s4 + $0xf0] sm:$0xff]
    %v1692 = vld [vmem:[%s4 + $0xf8] sm:$0xff]
    %v1693 = vld [vmem:[%s4 + $0x100] sm:$0xff]
    %v1694 = vld [vmem:[%s4 + $0x108] sm:$0xff]
    %v1695 = vld [vmem:[%s4 + $0x110] sm:$0xff]
    %v1696 = vld [vmem:[%s4 + $0x118] sm:$0xff]
    %v1697 = vld [vmem:[%s4 + $0x120] sm:$0xff]
    %v1698 = vld [vmem:[%s4 + $0x128] sm:$0xff]
    %v1699 = vld [vmem:[%s4 + $0x130] sm:$0xff]
    %v1700 = vld [vmem:[%s4 + $0x138] sm:$0xff]
    %v1701 = vld [vmem:[%s4 + $0x140] sm:$0xff]
    %v1702 = vld [vmem:[%s4 + $0x148] sm:$0xff]
    %v1703 = vld [vmem:[%s4 + $0x150] sm:$0xff]
    %v1704 = vld [vmem:[%s4 + $0x158] sm:$0xff]
    %v1705 = vld [vmem:[%s4 + $0x160] sm:$0xff]
    %v1706 = vld [vmem:[%s4 + $0x168] sm:$0xff]
    %v1707 = vld [vmem:[%s4 + $0x170] sm:$0xff]
    %v1708 = vld [vmem:[%s4 + $0x178] sm:$0xff]
    %v1709 = vld [vmem:[%s4 + $0x180] sm:$0xff]
    %v1710 = vld [vmem:[%s4 + $0x188] sm:$0xff]
    %v1711 = vld [vmem:[%s4 + $0x190] sm:$0xff]
    %v1712 = vld [vmem:[%s4 + $0x198] sm:$0xff]
    %v1713 = vld [vmem:[%s4 + $0x1a0] sm:$0xff]
    %v1714 = vld [vmem:[%s4 + $0x1a8] sm:$0xff]
    %v1715 = vld [vmem:[%s4 + $0x1b0] sm:$0xff]
    %v1716 = vld [vmem:[%s4 + $0x1b8] sm:$0xff]
    %v1717 = vld [vmem:[%s4 + $0x1c0] sm:$0xff]
    %v1718 = vld [vmem:[%s4 + $0x1c8] sm:$0xff]
    %v1719 = vld [vmem:[%s4 + $0x1d0] sm:$0xff]
    %v1720 = vld [vmem:[%s4 + $0x1d8] sm:$0xff]
    %v1721 = vld [vmem:[%s4 + $0x1e0] sm:$0xff]
    %v1722 = vld [vmem:[%s4 + $0x1e8] sm:$0xff]
    %v1723 = vld [vmem:[%s4 + $0x1f0] sm:$0xff]
    %v1724 = vld [vmem:[%s4 + $0x1f8] sm:$0xff]
    %v1725 = vld [vmem:[%s5] sm:$0x3]
    %v1727 = vperm.slane %v1725, 0
    %v1728 = vperm.slane %v1725, 1
    %v1795 = vunpack.c.l.b16 %v1661
    %v1796 = vunpack.c.h.b16 %v1661
    %v1797 = vunpack.c.l.b16 %v1662
    %v1798 = vunpack.c.h.b16 %v1662
    %v1799 = vunpack.c.l.b16 %v1663
    %v1800 = vunpack.c.h.b16 %v1663
    %v1801 = vunpack.c.l.b16 %v1664
    %v1802 = vunpack.c.h.b16 %v1664
    %v1803 = vunpack.c.l.b16 %v1665
    %v1804 = vunpack.c.h.b16 %v1665
    %v1805 = vunpack.c.l.b16 %v1666
    %v1806 = vunpack.c.h.b16 %v1666
    %v1807 = vunpack.c.l.b16 %v1667
    %v1808 = vunpack.c.h.b16 %v1667
    %v1809 = vunpack.c.l.b16 %v1668
    %v1810 = vunpack.c.h.b16 %v1668
    %v1811 = vunpack.c.l.b16 %v1669
    %v1812 = vunpack.c.h.b16 %v1669
    %v1813 = vunpack.c.l.b16 %v1670
    %v1814 = vunpack.c.h.b16 %v1670
    %v1815 = vunpack.c.l.b16 %v1671
    %v1816 = vunpack.c.h.b16 %v1671
    %v1817 = vunpack.c.l.b16 %v1672
    %v1818 = vunpack.c.h.b16 %v1672
    %v1819 = vunpack.c.l.b16 %v1673
    %v1820 = vunpack.c.h.b16 %v1673
    %v1821 = vunpack.c.l.b16 %v1674
    %v1822 = vunpack.c.h.b16 %v1674
    %v1823 = vunpack.c.l.b16 %v1675
    %v1824 = vunpack.c.h.b16 %v1675
    %v1825 = vunpack.c.l.b16 %v1676
    %v1826 = vunpack.c.h.b16 %v1676
    %v1827 = vunpack.c.l.b16 %v1677
    %v1828 = vunpack.c.h.b16 %v1677
    %v1829 = vunpack.c.l.b16 %v1678
    %v1830 = vunpack.c.h.b16 %v1678
    %v1831 = vunpack.c.l.b16 %v1679
    %v1832 = vunpack.c.h.b16 %v1679
    %v1833 = vunpack.c.l.b16 %v1680
    %v1834 = vunpack.c.h.b16 %v1680
    %v1835 = vunpack.c.l.b16 %v1681
    %v1836 = vunpack.c.h.b16 %v1681
    %v1837 = vunpack.c.l.b16 %v1682
    %v1838 = vunpack.c.h.b16 %v1682
    %v1839 = vunpack.c.l.b16 %v1683
    %v1840 = vunpack.c.h.b16 %v1683
    %v1841 = vunpack.c.l.b16 %v1684
    %v1842 = vunpack.c.h.b16 %v1684
    %v1843 = vunpack.c.l.b16 %v1685
    %v1844 = vunpack.c.h.b16 %v1685
    %v1845 = vunpack.c.l.b16 %v1686
    %v1846 = vunpack.c.h.b16 %v1686
    %v1847 = vunpack.c.l.b16 %v1687
    %v1848 = vunpack.c.h.b16 %v1687
    %v1849 = vunpack.c.l.b16 %v1688
    %v1850 = vunpack.c.h.b16 %v1688
    %v1851 = vunpack.c.l.b16 %v1689
    %v1852 = vunpack.c.h.b16 %v1689
    %v1853 = vunpack.c.l.b16 %v1690
    %v1854 = vunpack.c.h.b16 %v1690
    %v1855 = vunpack.c.l.b16 %v1691
    %v1856 = vunpack.c.h.b16 %v1691
    %v1857 = vunpack.c.l.b16 %v1692
    %v1858 = vunpack.c.h.b16 %v1692
    %v1859 = vunpack.c.l.b16 %v1693
    %v1860 = vunpack.c.h.b16 %v1693
    %v1861 = vunpack.c.l.b16 %v1694
    %v1862 = vunpack.c.h.b16 %v1694
    %v1863 = vunpack.c.l.b16 %v1695
    %v1864 = vunpack.c.h.b16 %v1695
    %v1865 = vunpack.c.l.b16 %v1696
    %v1866 = vunpack.c.h.b16 %v1696
    %v1867 = vunpack.c.l.b16 %v1697
    %v1868 = vunpack.c.h.b16 %v1697
    %v1869 = vunpack.c.l.b16 %v1698
    %v1870 = vunpack.c.h.b16 %v1698
    %v1871 = vunpack.c.l.b16 %v1699
    %v1872 = vunpack.c.h.b16 %v1699
    %v1873 = vunpack.c.l.b16 %v1700
    %v1874 = vunpack.c.h.b16 %v1700
    %v1875 = vunpack.c.l.b16 %v1701
    %v1876 = vunpack.c.h.b16 %v1701
    %v1877 = vunpack.c.l.b16 %v1702
    %v1878 = vunpack.c.h.b16 %v1702
    %v1879 = vunpack.c.l.b16 %v1703
    %v1880 = vunpack.c.h.b16 %v1703
    %v1881 = vunpack.c.l.b16 %v1704
    %v1882 = vunpack.c.h.b16 %v1704
    %v1883 = vunpack.c.l.b16 %v1705
    %v1884 = vunpack.c.h.b16 %v1705
    %v1885 = vunpack.c.l.b16 %v1706
    %v1886 = vunpack.c.h.b16 %v1706
    %v1887 = vunpack.c.l.b16 %v1707
    %v1888 = vunpack.c.h.b16 %v1707
    %v1889 = vunpack.c.l.b16 %v1708
    %v1890 = vunpack.c.h.b16 %v1708
    %v1891 = vunpack.c.l.b16 %v1709
    %v1892 = vunpack.c.h.b16 %v1709
    %v1893 = vunpack.c.l.b16 %v1710
    %v1894 = vunpack.c.h.b16 %v1710
    %v1895 = vunpack.c.l.b16 %v1711
    %v1896 = vunpack.c.h.b16 %v1711
    %v1897 = vunpack.c.l.b16 %v1712
    %v1898 = vunpack.c.h.b16 %v1712
    %v1899 = vunpack.c.l.b16 %v1713
    %v1900 = vunpack.c.h.b16 %v1713
    %v1901 = vunpack.c.l.b16 %v1714
    %v1902 = vunpack.c.h.b16 %v1714
    %v1903 = vunpack.c.l.b16 %v1715
    %v1904 = vunpack.c.h.b16 %v1715
    %v1905 = vunpack.c.l.b16 %v1716
    %v1906 = vunpack.c.h.b16 %v1716
    %v1907 = vunpack.c.l.b16 %v1717
    %v1908 = vunpack.c.h.b16 %v1717
    %v1909 = vunpack.c.l.b16 %v1718
    %v1910 = vunpack.c.h.b16 %v1718
    %v1911 = vunpack.c.l.b16 %v1719
    %v1912 = vunpack.c.h.b16 %v1719
    %v1913 = vunpack.c.l.b16 %v1720
    %v1914 = vunpack.c.h.b16 %v1720
    %v1915 = vunpack.c.l.b16 %v1721
    %v1916 = vunpack.c.h.b16 %v1721
    %v1917 = vunpack.c.l.b16 %v1722
    %v1918 = vunpack.c.h.b16 %v1722
    %v1919 = vunpack.c.l.b16 %v1723
    %v1920 = vunpack.c.h.b16 %v1723
    %v1921 = vunpack.c.l.b16 %v1724
    %v1922 = vunpack.c.h.b16 %v1724
    %v1923 = vpack.c.b16 %v1797, %v1795
    %v1924 = vpack.c.b16 %v1798, %v1796
    %v1925 = vpack.c.b16 %v1801, %v1799
    %v1926 = vpack.c.b16 %v1802, %v1800
    %v1927 = vpack.c.b16 %v1805, %v1803
    %v1928 = vpack.c.b16 %v1806, %v1804
    %v1929 = vpack.c.b16 %v1809, %v1807
    %v1930 = vpack.c.b16 %v1810, %v1808
    %v1931 = vpack.c.b16 %v1813, %v1811
    %v1932 = vpack.c.b16 %v1814, %v1812
    %v1933 = vpack.c.b16 %v1817, %v1815
    %v1934 = vpack.c.b16 %v1818, %v1816
    %v1935 = vpack.c.b16 %v1821, %v1819
    %v1936 = vpack.c.b16 %v1822, %v1820
    %v1937 = vpack.c.b16 %v1825, %v1823
    %v1938 = vpack.c.b16 %v1826, %v1824
    %v1939 = vpack.c.b16 %v1829, %v1827
    %v1940 = vpack.c.b16 %v1830, %v1828
    %v1941 = vpack.c.b16 %v1833, %v1831
    %v1942 = vpack.c.b16 %v1834, %v1832
    %v1943 = vpack.c.b16 %v1837, %v1835
    %v1944 = vpack.c.b16 %v1838, %v1836
    %v1945 = vpack.c.b16 %v1841, %v1839
    %v1946 = vpack.c.b16 %v1842, %v1840
    %v1947 = vpack.c.b16 %v1845, %v1843
    %v1948 = vpack.c.b16 %v1846, %v1844
    %v1949 = vpack.c.b16 %v1849, %v1847
    %v1950 = vpack.c.b16 %v1850, %v1848
    %v1951 = vpack.c.b16 %v1853, %v1851
    %v1952 = vpack.c.b16 %v1854, %v1852
    %v1953 = vpack.c.b16 %v1857, %v1855
    %v1954 = vpack.c.b16 %v1858, %v1856
    %v1955 = vpack.c.b16 %v1861, %v1859
    %v1956 = vpack.c.b16 %v1862, %v1860
    %v1957 = vpack.c.b16 %v1865, %v1863
    %v1958 = vpack.c.b16 %v1866, %v1864
    %v1959 = vpack.c.b16 %v1869, %v1867
    %v1960 = vpack.c.b16 %v1870, %v1868
    %v1961 = vpack.c.b16 %v1873, %v1871
    %v1962 = vpack.c.b16 %v1874, %v1872
    %v1963 = vpack.c.b16 %v1877, %v1875
    %v1964 = vpack.c.b16 %v1878, %v1876
    %v1965 = vpack.c.b16 %v1881, %v1879
    %v1966 = vpack.c.b16 %v1882, %v1880
    %v1967 = vpack.c.b16 %v1885, %v1883
    %v1968 = vpack.c.b16 %v1886, %v1884
    %v1969 = vpack.c.b16 %v1889, %v1887
    %v1970 = vpack.c.b16 %v1890, %v1888
    %v1971 = vpack.c.b16 %v1893, %v1891
    %v1972 = vpack.c.b16 %v1894, %v1892
    %v1973 = vpack.c.b16 %v1897, %v1895
    %v1974 = vpack.c.b16 %v1898, %v1896
    %v1975 = vpack.c.b16 %v1901, %v1899
    %v1976 = vpack.c.b16 %v1902, %v1900
    %v1977 = vpack.c.b16 %v1905, %v1903
    %v1978 = vpack.c.b16 %v1906, %v1904
    %v1979 = vpack.c.b16 %v1909, %v1907
    %v1980 = vpack.c.b16 %v1910, %v1908
    %v1981 = vpack.c.b16 %v1913, %v1911
    %v1982 = vpack.c.b16 %v1914, %v1912
    %v1983 = vpack.c.b16 %v1917, %v1915
    %v1984 = vpack.c.b16 %v1918, %v1916
    %v1985 = vpack.c.b16 %v1921, %v1919
    %v1986 = vpack.c.b16 %v1922, %v1920
    %2051 = vmatpush.bf16.msra.mxu0 %v1937
    %2052 = vmatpush.bf16.msra.mxu0 %v1935
    %2053 = vmatpush.bf16.msra.mxu0 %v1933
    %2054 = vmatpush.bf16.msra.mxu0 %v1931
    %2055 = vmatpush.bf16.msra.mxu0 %v1929
    %2056 = vmatpush.bf16.msra.mxu0 %v1927
    %2057 = vmatpush.bf16.msra.mxu0 %v1925
    %2058 = vmatpush.bf16.msra.mxu0 %v1923
    %2059 = vmatmul.bf16.gmra.mxu0 %v1657
    %v2060 = vpop.f32.mrf.mxu0
    %v2061 = vadd.f32 %v1727, %v2060
    %v2062 = vpop.f32.mrf.mxu0
    %2063 = vdwg.mxu0
    %2064 = vmatpush.bf16.msra.mxu0 %v1953
    %2065 = vmatpush.bf16.msra.mxu0 %v1951
    %2066 = vmatpush.bf16.msra.mxu0 %v1949
    %2067 = vmatpush.bf16.msra.mxu0 %v1947
    %2068 = vmatpush.bf16.msra.mxu0 %v1945
    %2069 = vmatpush.bf16.msra.mxu0 %v1943
    %2070 = vmatpush.bf16.msra.mxu0 %v1941
    %2071 = vmatpush.bf16.msra.mxu0 %v1939
    %2072 = vmatmul.bf16.gmra.mxu0 %v1658
    %v2073 = vpop.f32.mrf.mxu0
    %v2074 = vadd.f32 %v2061, %v2073
    %v2075 = vpop.f32.mrf.mxu0
    %2076 = vdwg.mxu0
    %2077 = vmatpush.bf16.msra.mxu0 %v1969
    %2078 = vmatpush.bf16.msra.mxu0 %v1967
    %2079 = vmatpush.bf16.msra.mxu0 %v1965
    %2080 = vmatpush.bf16.msra.mxu0 %v1963
    %2081 = vmatpush.bf16.msra.mxu0 %v1961
    %2082 = vmatpush.bf16.msra.mxu0 %v1959
    %2083 = vmatpush.bf16.msra.mxu0 %v1957
    %2084 = vmatpush.bf16.msra.mxu0 %v1955
    %2085 = vmatmul.bf16.gmra.mxu0 %v1659
    %v2086 = vpop.f32.mrf.mxu0
    %v2087 = vadd.f32 %v2074, %v2086
    %v2088 = vpop.f32.mrf.mxu0
    %2089 = vdwg.mxu0
    %2090 = vmatpush.bf16.msra.mxu0 %v1985
    %2091 = vmatpush.bf16.msra.mxu0 %v1983
    %2092 = vmatpush.bf16.msra.mxu0 %v1981
    %2093 = vmatpush.bf16.msra.mxu0 %v1979
    %2094 = vmatpush.bf16.msra.mxu0 %v1977
    %2095 = vmatpush.bf16.msra.mxu0 %v1975
    %2096 = vmatpush.bf16.msra.mxu0 %v1973
    %2097 = vmatpush.bf16.msra.mxu0 %v1971
    %2098 = vmatmul.bf16.gmra.mxu0 %v1660
    %v2099 = vpop.f32.mrf.mxu0
    %v2100 = vadd.f32 %v2087, %v2099
    %v2101 = vpop.f32.mrf.mxu0
    %2102 = vdwg.mxu0
    %2103 = vmatpush.bf16.msra.mxu0 %v1938
    %2104 = vmatpush.bf16.msra.mxu0 %v1936
    %2105 = vmatpush.bf16.msra.mxu0 %v1934
    %2106 = vmatpush.bf16.msra.mxu0 %v1932
    %2107 = vmatpush.bf16.msra.mxu0 %v1930
    %2108 = vmatpush.bf16.msra.mxu0 %v1928
    %2109 = vmatpush.bf16.msra.mxu0 %v1926
    %2110 = vmatpush.bf16.msra.mxu0 %v1924
    %2111 = vmatmul.bf16.gmra.mxu0 %v1657
    %v2112 = vpop.f32.mrf.mxu0
    %v2113 = vadd.f32 %v1728, %v2112
    %v2114 = vpop.f32.mrf.mxu0
    %2115 = vdwg.mxu0
    %2116 = vmatpush.bf16.msra.mxu0 %v1954
    %2117 = vmatpush.bf16.msra.mxu0 %v1952
    %2118 = vmatpush.bf16.msra.mxu0 %v1950
    %2119 = vmatpush.bf16.msra.mxu0 %v1948
    %2120 = vmatpush.bf16.msra.mxu0 %v1946
    %2121 = vmatpush.bf16.msra.mxu0 %v1944
    %2122 = vmatpush.bf16.msra.mxu0 %v1942
    %2123 = vmatpush.bf16.msra.mxu0 %v1940
    %2124 = vmatmul.bf16.gmra.mxu0 %v1658
    %v2125 = vpop.f32.mrf.mxu0
    %v2126 = vadd.f32 %v2113, %v2125
    %v2127 = vpop.f32.mrf.mxu0
    %2128 = vdwg.mxu0
    %2129 = vmatpush.bf16.msra.mxu0 %v1970
    %2130 = vmatpush.bf16.msra.mxu0 %v1968
    %2131 = vmatpush.bf16.msra.mxu0 %v1966
    %2132 = vmatpush.bf16.msra.mxu0 %v1964
    %2133 = vmatpush.bf16.msra.mxu0 %v1962
    %2134 = vmatpush.bf16.msra.mxu0 %v1960
    %2135 = vmatpush.bf16.msra.mxu0 %v1958
    %2136 = vmatpush.bf16.msra.mxu0 %v1956
    %2137 = vmatmul.bf16.gmra.mxu0 %v1659
    %v2138 = vpop.f32.mrf.mxu0
    %v2139 = vadd.f32 %v2126, %v2138
    %v2140 = vpop.f32.mrf.mxu0
    %2141 = vdwg.mxu0
    %2142 = vmatpush.bf16.msra.mxu0 %v1986
    %2143 = vmatpush.bf16.msra.mxu0 %v1984
    %2144 = vmatpush.bf16.msra.mxu0 %v1982
    %2145 = vmatpush.bf16.msra.mxu0 %v1980
    %2146 = vmatpush.bf16.msra.mxu0 %v1978
    %2147 = vmatpush.bf16.msra.mxu0 %v1976
    %2148 = vmatpush.bf16.msra.mxu0 %v1974
    %2149 = vmatpush.bf16.msra.mxu0 %v1972
    %2150 = vmatmul.bf16.gmra.mxu0 %v1660
    %v2151 = vpop.f32.mrf.mxu0
    %v2152 = vadd.f32 %v2139, %v2151
    %v2153 = vpop.f32.mrf.mxu0
    %2154 = vdwg.mxu0
    %v2155 = vmax.f32 %v2100, 0.0
    %v2156 = vmax.f32 %v2152, 0.0
    %v2157 = vpack.c.bf16 %v2155, %v2155
    %v2158 = vpack.c.bf16 %v2156, %v2156
    %v2159 = vld [vmem:[%s6] sm:$0xf]
    %v2160 = vld [vmem:[%s6 + $0x4] sm:$0xf]
    %v2161 = vld [vmem:[%s6 + $0x8] sm:$0xf]
    %v2162 = vld [vmem:[%s6 + $0xc] sm:$0xf]
    %v2163 = vld [vmem:[%s6 + $0x10] sm:$0xf]
    %v2164 = vld [vmem:[%s6 + $0x14] sm:$0xf]
    %v2165 = vld [vmem:[%s6 + $0x18] sm:$0xf]
    %v2166 = vld [vmem:[%s6 + $0x1c] sm:$0xf]
    %v2167 = vld [vmem:[%s6 + $0x20] sm:$0xf]
    %v2168 = vld [vmem:[%s6 + $0x24] sm:$0xf]
    %v2169 = vld [vmem:[%s6 + $0x28] sm:$0xf]
    %v2170 = vld [vmem:[%s6 + $0x2c] sm:$0xf]
    %v2171 = vld [vmem:[%s6 + $0x30] sm:$0xf]
    %v2172 = vld [vmem:[%s6 + $0x34] sm:$0xf]
    %v2173 = vld [vmem:[%s6 + $0x38] sm:$0xf]
    %v2174 = vld [vmem:[%s6 + $0x3c] sm:$0xf]
    %v2175 = vld [vmem:[%s6 + $0x40] sm:$0xf]
    %v2176 = vld [vmem:[%s6 + $0x44] sm:$0xf]
    %v2177 = vld [vmem:[%s6 + $0x48] sm:$0xf]
    %v2178 = vld [vmem:[%s6 + $0x4c] sm:$0xf]
    %v2179 = vld [vmem:[%s6 + $0x50] sm:$0xf]
    %v2180 = vld [vmem:[%s6 + $0x54] sm:$0xf]
    %v2181 = vld [vmem:[%s6 + $0x58] sm:$0xf]
    %v2182 = vld [vmem:[%s6 + $0x5c] sm:$0xf]
    %v2183 = vld [vmem:[%s6 + $0x60] sm:$0xf]
    %v2184 = vld [vmem:[%s6 + $0x64] sm:$0xf]
    %v2185 = vld [vmem:[%s6 + $0x68] sm:$0xf]
    %v2186 = vld [vmem:[%s6 + $0x6c] sm:$0xf]
    %v2187 = vld [vmem:[%s6 + $0x70] sm:$0xf]
    %v2188 = vld [vmem:[%s6 + $0x74] sm:$0xf]
    %v2189 = vld [vmem:[%s6 + $0x78] sm:$0xf]
    %v2190 = vld [vmem:[%s6 + $0x7c] sm:$0xf]
    %v2191 = vld [vmem:[%s7] sm:$0x1]
    %v2193 = vperm.slane %v2191, 0
    %v2227 = vunpack.c.l.b16 %v2159
    %v2228 = vunpack.c.l.b16 %v2160
    %v2229 = vunpack.c.l.b16 %v2161
    %v2230 = vunpack.c.l.b16 %v2162
    %v2231 = vunpack.c.l.b16 %v2163
    %v2232 = vunpack.c.l.b16 %v2164
    %v2233 = vunpack.c.l.b16 %v2165
    %v2234 = vunpack.c.l.b16 %v2166
    %v2235 = vunpack.c.l.b16 %v2167
    %v2236 = vunpack.c.l.b16 %v2168
    %v2237 = vunpack.c.l.b16 %v2169
    %v2238 = vunpack.c.l.b16 %v2170
    %v2239 = vunpack.c.l.b16 %v2171
    %v2240 = vunpack.c.l.b16 %v2172
    %v2241 = vunpack.c.l.b16 %v2173
    %v2242 = vunpack.c.l.b16 %v2174
    %v2243 = vunpack.c.l.b16 %v2175
    %v2244 = vunpack.c.l.b16 %v2176
    %v2245 = vunpack.c.l.b16 %v2177
    %v2246 = vunpack.c.l.b16 %v2178
    %v2247 = vunpack.c.l.b16 %v2179
    %v2248 = vunpack.c.l.b16 %v2180
    %v2249 = vunpack.c.l.b16 %v2181
    %v2250 = vunpack.c.l.b16 %v2182
    %v2251 = vunpack.c.l.b16 %v2183
    %v2252 = vunpack.c.l.b16 %v2184
    %v2253 = vunpack.c.l.b16 %v2185
    %v2254 = vunpack.c.l.b16 %v2186
    %v2255 = vunpack.c.l.b16 %v2187
    %v2256 = vunpack.c.l.b16 %v2188
    %v2257 = vunpack.c.l.b16 %v2189
    %v2258 = vunpack.c.l.b16 %v2190
    %v2259 = vpack.c.b16 %v2228, %v2227
    %v2260 = vpack.c.b16 %v2230, %v2229
    %v2261 = vpack.c.b16 %v2232, %v2231
    %v2262 = vpack.c.b16 %v2234, %v2233
    %v2263 = vpack.c.b16 %v2236, %v2235
    %v2264 = vpack.c.b16 %v2238, %v2237
    %v2265 = vpack.c.b16 %v2240, %v2239
    %v2266 = vpack.c.b16 %v2242, %v2241
    %v2267 = vpack.c.b16 %v2244, %v2243
    %v2268 = vpack.c.b16 %v2246, %v2245
    %v2269 = vpack.c.b16 %v2248, %v2247
    %v2270 = vpack.c.b16 %v2250, %v2249
    %v2271 = vpack.c.b16 %v2252, %v2251
    %v2272 = vpack.c.b16 %v2254, %v2253
    %v2273 = vpack.c.b16 %v2256, %v2255
    %v2274 = vpack.c.b16 %v2258, %v2257
    %2291 = vmatpush.bf16.msra.mxu0 %v2266
    %2292 = vmatpush.bf16.msra.mxu0 %v2265
    %2293 = vmatpush.bf16.msra.mxu0 %v2264
    %2294 = vmatpush.bf16.msra.mxu0 %v2263
    %2295 = vmatpush.bf16.msra.mxu0 %v2262
    %2296 = vmatpush.bf16.msra.mxu0 %v2261
    %2297 = vmatpush.bf16.msra.mxu0 %v2260
    %2298 = vmatpush.bf16.msra.mxu0 %v2259
    %2299 = vmatmul.bf16.gmra.mxu0 %v2157
    %v2300 = vpop.f32.mrf.mxu0
    %v2301 = vadd.f32 %v2193, %v2300
    %v2302 = vpop.f32.mrf.mxu0
    %2303 = vdwg.mxu0
    %2304 = vmatpush.bf16.msra.mxu0 %v2274
    %2305 = vmatpush.bf16.msra.mxu0 %v2273
    %2306 = vmatpush.bf16.msra.mxu0 %v2272
    %2307 = vmatpush.bf16.msra.mxu0 %v2271
    %2308 = vmatpush.bf16.msra.mxu0 %v2270
    %2309 = vmatpush.bf16.msra.mxu0 %v2269
    %2310 = vmatpush.bf16.msra.mxu0 %v2268
    %2311 = vmatpush.bf16.msra.mxu0 %v2267
    %2312 = vmatmul.bf16.gmra.mxu0 %v2158
    %v2313 = vpop.f32.mrf.mxu0
    %v2314 = vadd.f32 %v2301, %v2313
    %v2315 = vpop.f32.mrf.mxu0
    %2316 = vdwg.mxu0
    %v2317 = vmax.f32 %v2314, 0.0
    %v2318 = vpack.c.bf16 %v2317, %v2317
    %v2319 = vld [vmem:[%s8] sm:$0xf]
    %v2320 = vld [vmem:[%s8 + $0x4] sm:$0xf]
    %v2321 = vld [vmem:[%s8 + $0x8] sm:$0xf]
    %v2322 = vld [vmem:[%s8 + $0xc] sm:$0xf]
    %v2323 = vld [vmem:[%s8 + $0x10] sm:$0xf]
    %v2324 = vld [vmem:[%s8 + $0x14] sm:$0xf]
    %v2325 = vld [vmem:[%s8 + $0x18] sm:$0xf]
    %v2326 = vld [vmem:[%s8 + $0x1c] sm:$0xf]
    %v2327 = vld [vmem:[%s8 + $0x20] sm:$0xf]
    %v2328 = vld [vmem:[%s8 + $0x24] sm:$0xf]
    %v2329 = vld [vmem:[%s8 + $0x28] sm:$0xf]
    %v2330 = vld [vmem:[%s8 + $0x2c] sm:$0xf]
    %v2331 = vld [vmem:[%s8 + $0x30] sm:$0xf]
    %v2332 = vld [vmem:[%s8 + $0x34] sm:$0xf]
    %v2333 = vld [vmem:[%s8 + $0x38] sm:$0xf]
    %v2334 = vld [vmem:[%s8 + $0x3c] sm:$0xf]
    %v2335 = vld [vmem:[%s9] sm:$0x1]
    %v2337 = vperm.slane %v2335, 0
    %v2355 = vunpack.c.l.b16 %v2319
    %v2356 = vunpack.c.l.b16 %v2320
    %v2357 = vunpack.c.l.b16 %v2321
    %v2358 = vunpack.c.l.b16 %v2322
    %v2359 = vunpack.c.l.b16 %v2323
    %v2360 = vunpack.c.l.b16 %v2324
    %v2361 = vunpack.c.l.b16 %v2325
    %v2362 = vunpack.c.l.b16 %v2326
    %v2363 = vunpack.c.l.b16 %v2327
    %v2364 = vunpack.c.l.b16 %v2328
    %v2365 = vunpack.c.l.b16 %v2329
    %v2366 = vunpack.c.l.b16 %v2330
    %v2367 = vunpack.c.l.b16 %v2331
    %v2368 = vunpack.c.l.b16 %v2332
    %v2369 = vunpack.c.l.b16 %v2333
    %v2370 = vunpack.c.l.b16 %v2334
    %v2371 = vpack.c.b16 %v2356, %v2355
    %v2372 = vpack.c.b16 %v2358, %v2357
    %v2373 = vpack.c.b16 %v2360, %v2359
    %v2374 = vpack.c.b16 %v2362, %v2361
    %v2375 = vpack.c.b16 %v2364, %v2363
    %v2376 = vpack.c.b16 %v2366, %v2365
    %v2377 = vpack.c.b16 %v2368, %v2367
    %v2378 = vpack.c.b16 %v2370, %v2369
    %2387 = vmatpush.bf16.msra.mxu0 %v2378
    %2388 = vmatpush.bf16.msra.mxu0 %v2377
    %2389 = vmatpush.bf16.msra.mxu0 %v2376
    %2390 = vmatpush.bf16.msra.mxu0 %v2375
    %2391 = vmatpush.bf16.msra.mxu0 %v2374
    %2392 = vmatpush.bf16.msra.mxu0 %v2373
    %2393 = vmatpush.bf16.msra.mxu0 %v2372
    %2394 = vmatpush.bf16.msra.mxu0 %v2371
    %2395 = vmatmul.bf16.gmra.mxu0 %v2318
    %v2396 = vpop.f32.mrf.mxu0
    %v2397 = vadd.f32 %v2337, %v2396
    %v2398 = vpop.f32.mrf.mxu0
    %2399 = vdwg.mxu0
    %v2400 = vld [vmem:[%s10] sm:$0xf]
    %v2401 = vld [vmem:[%s10 + $0x4] sm:$0xf]
    %v2402 = vld [vmem:[%s10 + $0x8] sm:$0xf]
    %v2403 = vld [vmem:[%s10 + $0xc] sm:$0xf]
    %v2404 = vld [vmem:[%s10 + $0x10] sm:$0xf]
    %v2405 = vld [vmem:[%s10 + $0x14] sm:$0xf]
    %v2406 = vld [vmem:[%s10 + $0x18] sm:$0xf]
    %v2407 = vld [vmem:[%s10 + $0x1c] sm:$0xf]
    %v2408 = vld [vmem:[%s10 + $0x20] sm:$0xf]
    %v2409 = vld [vmem:[%s10 + $0x24] sm:$0xf]
    %v2410 = vld [vmem:[%s10 + $0x28] sm:$0xf]
    %v2411 = vld [vmem:[%s10 + $0x2c] sm:$0xf]
    %v2412 = vld [vmem:[%s10 + $0x30] sm:$0xf]
    %v2413 = vld [vmem:[%s10 + $0x34] sm:$0xf]
    %v2414 = vld [vmem:[%s10 + $0x38] sm:$0xf]
    %v2415 = vld [vmem:[%s10 + $0x3c] sm:$0xf]
    %v2416 = vld [vmem:[%s11] sm:$0x1]
    %v2418 = vperm.slane %v2416, 0
    %v2436 = vunpack.c.l.b16 %v2400
    %v2437 = vunpack.c.l.b16 %v2401
    %v2438 = vunpack.c.l.b16 %v2402
    %v2439 = vunpack.c.l.b16 %v2403
    %v2440 = vunpack.c.l.b16 %v2404
    %v2441 = vunpack.c.l.b16 %v2405
    %v2442 = vunpack.c.l.b16 %v2406
    %v2443 = vunpack.c.l.b16 %v2407
    %v2444 = vunpack.c.l.b16 %v2408
    %v2445 = vunpack.c.l.b16 %v2409
    %v2446 = vunpack.c.l.b16 %v2410
    %v2447 = vunpack.c.l.b16 %v2411
    %v2448 = vunpack.c.l.b16 %v2412
    %v2449 = vunpack.c.l.b16 %v2413
    %v2450 = vunpack.c.l.b16 %v2414
    %v2451 = vunpack.c.l.b16 %v2415
    %v2452 = vpack.c.b16 %v2437, %v2436
    %v2453 = vpack.c.b16 %v2439, %v2438
    %v2454 = vpack.c.b16 %v2441, %v2440
    %v2455 = vpack.c.b16 %v2443, %v2442
    %v2456 = vpack.c.b16 %v2445, %v2444
    %v2457 = vpack.c.b16 %v2447, %v2446
    %v2458 = vpack.c.b16 %v2449, %v2448
    %v2459 = vpack.c.b16 %v2451, %v2450
    %2468 = vmatpush.bf16.msra.mxu0 %v2459
    %2469 = vmatpush.bf16.msra.mxu0 %v2458
    %2470 = vmatpush.bf16.msra.mxu0 %v2457
    %2471 = vmatpush.bf16.msra.mxu0 %v2456
    %2472 = vmatpush.bf16.msra.mxu0 %v2455
    %2473 = vmatpush.bf16.msra.mxu0 %v2454
    %2474 = vmatpush.bf16.msra.mxu0 %v2453
    %2475 = vmatpush.bf16.msra.mxu0 %v2452
    %2476 = vmatmul.bf16.gmra.mxu0 %v2318
    %v2477 = vpop.f32.mrf.mxu0
    %v2478 = vadd.f32 %v2418, %v2477
    %v2479 = vpop.f32.mrf.mxu0
    %2480 = vdwg.mxu0
    %v2481 = vmul.f32 %v2478, 0.5
    %v2482 = vmul.f32 %v2481, 1.442695
    %v2483 = vpow.pop %v2482
    %v2484 = vld [vmem:[%s1] sm:$0x3]
    %v2485 = vmul.f32 %v2484, %v2483
    %v2486 = vadd.f32 %v2397, %v2485
    %v2487 = vpack.c.bf16 %v2486, %v2486
    %v2488 = vld [vmem:[%s12] sm:$0xf]
    %v2489 = vld [vmem:[%s12 + $0x4] sm:$0xf]
    %v2490 = vld [vmem:[%s12 + $0x8] sm:$0x3]
    %v2491 = vld [vmem:[%s13] sm:$0x1]
    %v2493 = vperm.slane %v2491, 0
    %v2498 = vunpack.c.l.b16 %v2488
    %v2499 = vunpack.c.l.b16 %v2489
    %v2500 = vunpack.c.l.b16 %v2490
    %v2501 = vpack.c.b16 %v2499, %v2498
    %v2502 = vpack.c.b16 %v2500, %v2500
    %vm2504 = vcmask 162816
    %v2506 = vsel %vm2504, %v2487, 0
    %vm2508 = vcmask 1041408
    %v2510 = vsel %vm2508, %v2502, 0
    %2512 = vmatpush.bf16.msra.mxu0 0
    %2513 = vmatpush.bf16.msra.mxu0 0
    %2514 = vmatpush.bf16.msra.mxu0 0
    %2515 = vmatpush.bf16.msra.mxu0 0
    %2516 = vmatpush.bf16.msra.mxu0 0
    %2517 = vmatpush.bf16.msra.mxu0 0
    %2518 = vmatpush.bf16.msra.mxu0 %v2510
    %2519 = vmatpush.bf16.msra.mxu0 %v2501
    %2520 = vmatmul.bf16.gmra.mxu0 %v2506
    %v2521 = vpop.f32.mrf.mxu0
    %v2522 = vadd.f32 %v2493, %v2521
    %v2523 = vpop.f32.mrf.mxu0
    %2524 = vdwg.mxu0
    %v2525 = vmax.f32 %v2522, 0.0
    %v2526 = vpack.c.bf16 %v2525, %v2525
    %v2527 = vld [vmem:[%s14] sm:$0xff]
    %v2528 = vld [vmem:[%s14 + $0x8] sm:$0xff]
    %v2529 = vld [vmem:[%s14 + $0x10] sm:$0xff]
    %v2530 = vld [vmem:[%s14 + $0x18] sm:$0xff]
    %v2531 = vld [vmem:[%s14 + $0x20] sm:$0xff]
    %v2532 = vld [vmem:[%s14 + $0x28] sm:$0xff]
    %v2533 = vld [vmem:[%s14 + $0x30] sm:$0xff]
    %v2534 = vld [vmem:[%s14 + $0x38] sm:$0xff]
    %v2535 = vld [vmem:[%s14 + $0x40] sm:$0xff]
    %v2536 = vld [vmem:[%s14 + $0x48] sm:$0xff]
    %v2537 = vld [vmem:[%s14 + $0x50] sm:$0xff]
    %v2538 = vld [vmem:[%s14 + $0x58] sm:$0xff]
    %v2539 = vld [vmem:[%s14 + $0x60] sm:$0xff]
    %v2540 = vld [vmem:[%s14 + $0x68] sm:$0xff]
    %v2541 = vld [vmem:[%s14 + $0x70] sm:$0xff]
    %v2542 = vld [vmem:[%s14 + $0x78] sm:$0xff]
    %v2543 = vld [vmem:[%s15] sm:$0x3]
    %v2545 = vperm.slane %v2543, 0
    %v2546 = vperm.slane %v2543, 1
    %v2565 = vunpack.c.l.b16 %v2527
    %v2566 = vunpack.c.h.b16 %v2527
    %v2567 = vunpack.c.l.b16 %v2528
    %v2568 = vunpack.c.h.b16 %v2528
    %v2569 = vunpack.c.l.b16 %v2529
    %v2570 = vunpack.c.h.b16 %v2529
    %v2571 = vunpack.c.l.b16 %v2530
    %v2572 = vunpack.c.h.b16 %v2530
    %v2573 = vunpack.c.l.b16 %v2531
    %v2574 = vunpack.c.h.b16 %v2531
    %v2575 = vunpack.c.l.b16 %v2532
    %v2576 = vunpack.c.h.b16 %v2532
    %v2577 = vunpack.c.l.b16 %v2533
    %v2578 = vunpack.c.h.b16 %v2533
    %v2579 = vunpack.c.l.b16 %v2534
    %v2580 = vunpack.c.h.b16 %v2534
    %v2581 = vunpack.c.l.b16 %v2535
    %v2582 = vunpack.c.h.b16 %v2535
    %v2583 = vunpack.c.l.b16 %v2536
    %v2584 = vunpack.c.h.b16 %v2536
    %v2585 = vunpack.c.l.b16 %v2537
    %v2586 = vunpack.c.h.b16 %v2537
    %v2587 = vunpack.c.l.b16 %v2538
    %v2588 = vunpack.c.h.b16 %v2538
    %v2589 = vunpack.c.l.b16 %v2539
    %v2590 = vunpack.c.h.b16 %v2539
    %v2591 = vunpack.c.l.b16 %v2540
    %v2592 = vunpack.c.h.b16 %v2540
    %v2593 = vunpack.c.l.b16 %v2541
    %v2594 = vunpack.c.h.b16 %v2541
    %v2595 = vunpack.c.l.b16 %v2542
    %v2596 = vunpack.c.h.b16 %v2542
    %v2597 = vpack.c.b16 %v2567, %v2565
    %v2598 = vpack.c.b16 %v2568, %v2566
    %v2599 = vpack.c.b16 %v2571, %v2569
    %v2600 = vpack.c.b16 %v2572, %v2570
    %v2601 = vpack.c.b16 %v2575, %v2573
    %v2602 = vpack.c.b16 %v2576, %v2574
    %v2603 = vpack.c.b16 %v2579, %v2577
    %v2604 = vpack.c.b16 %v2580, %v2578
    %v2605 = vpack.c.b16 %v2583, %v2581
    %v2606 = vpack.c.b16 %v2584, %v2582
    %v2607 = vpack.c.b16 %v2587, %v2585
    %v2608 = vpack.c.b16 %v2588, %v2586
    %v2609 = vpack.c.b16 %v2591, %v2589
    %v2610 = vpack.c.b16 %v2592, %v2590
    %v2611 = vpack.c.b16 %v2595, %v2593
    %v2612 = vpack.c.b16 %v2596, %v2594
    %2629 = vmatpush.bf16.msra.mxu0 %v2611
    %2630 = vmatpush.bf16.msra.mxu0 %v2609
    %2631 = vmatpush.bf16.msra.mxu0 %v2607
    %2632 = vmatpush.bf16.msra.mxu0 %v2605
    %2633 = vmatpush.bf16.msra.mxu0 %v2603
    %2634 = vmatpush.bf16.msra.mxu0 %v2601
    %2635 = vmatpush.bf16.msra.mxu0 %v2599
    %2636 = vmatpush.bf16.msra.mxu0 %v2597
    %2637 = vmatmul.bf16.gmra.mxu0 %v2526
    %v2638 = vpop.f32.mrf.mxu0
    %v2639 = vadd.f32 %v2545, %v2638
    %v2640 = vpop.f32.mrf.mxu0
    %2641 = vdwg.mxu0
    %2642 = vmatpush.bf16.msra.mxu0 %v2612
    %2643 = vmatpush.bf16.msra.mxu0 %v2610
    %2644 = vmatpush.bf16.msra.mxu0 %v2608
    %2645 = vmatpush.bf16.msra.mxu0 %v2606
    %2646 = vmatpush.bf16.msra.mxu0 %v2604
    %2647 = vmatpush.bf16.msra.mxu0 %v2602
    %2648 = vmatpush.bf16.msra.mxu0 %v2600
    %2649 = vmatpush.bf16.msra.mxu0 %v2598
    %2650 = vmatmul.bf16.gmra.mxu0 %v2526
    %v2651 = vpop.f32.mrf.mxu0
    %v2652 = vadd.f32 %v2546, %v2651
    %v2653 = vpop.f32.mrf.mxu0
    %2654 = vdwg.mxu0
    %v2655 = vmax.f32 %v2639, 0.0
    %v2656 = vmax.f32 %v2652, 0.0
    %v2657 = vpack.c.bf16 %v2655, %v2655
    %v2658 = vpack.c.bf16 %v2656, %v2656
    %v2659 = vld [vmem:[%s16] sm:$0xff]
    %v2660 = vld [vmem:[%s16 + $0x8] sm:$0xff]
    %v2661 = vld [vmem:[%s16 + $0x10] sm:$0xff]
    %v2662 = vld [vmem:[%s16 + $0x18] sm:$0xff]
    %v2663 = vld [vmem:[%s16 + $0x20] sm:$0xff]
    %v2664 = vld [vmem:[%s16 + $0x28] sm:$0xff]
    %v2665 = vld [vmem:[%s16 + $0x30] sm:$0xff]
    %v2666 = vld [vmem:[%s16 + $0x38] sm:$0xff]
    %v2667 = vld [vmem:[%s16 + $0x40] sm:$0xff]
    %v2668 = vld [vmem:[%s16 + $0x48] sm:$0xff]
    %v2669 = vld [vmem:[%s16 + $0x50] sm:$0xff]
    %v2670 = vld [vmem:[%s16 + $0x58] sm:$0xff]
    %v2671 = vld [vmem:[%s16 + $0x60] sm:$0xff]
    %v2672 = vld [vmem:[%s16 + $0x68] sm:$0xff]
    %v2673 = vld [vmem:[%s16 + $0x70] sm:$0xff]
    %v2674 = vld [vmem:[%s16 + $0x78] sm:$0xff]
    %v2675 = vld [vmem:[%s16 + $0x80] sm:$0xff]
    %v2676 = vld [vmem:[%s16 + $0x88] sm:$0xff]
    %v2677 = vld [vmem:[%s16 + $0x90] sm:$0xff]
    %v2678 = vld [vmem:[%s16 + $0x98] sm:$0xff]
    %v2679 = vld [vmem:[%s16 + $0xa0] sm:$0xff]
    %v2680 = vld [vmem:[%s16 + $0xa8] sm:$0xff]
    %v2681 = vld [vmem:[%s16 + $0xb0] sm:$0xff]
    %v2682 = vld [vmem:[%s16 + $0xb8] sm:$0xff]
    %v2683 = vld [vmem:[%s16 + $0xc0] sm:$0xff]
    %v2684 = vld [vmem:[%s16 + $0xc8] sm:$0xff]
    %v2685 = vld [vmem:[%s16 + $0xd0] sm:$0xff]
    %v2686 = vld [vmem:[%s16 + $0xd8] sm:$0xff]
    %v2687 = vld [vmem:[%s16 + $0xe0] sm:$0xff]
    %v2688 = vld [vmem:[%s16 + $0xe8] sm:$0xff]
    %v2689 = vld [vmem:[%s16 + $0xf0] sm:$0xff]
    %v2690 = vld [vmem:[%s16 + $0xf8] sm:$0xff]
    %v2691 = vld [vmem:[%s16 + $0x100] sm:$0xff]
    %v2692 = vld [vmem:[%s16 + $0x108] sm:$0xff]
    %v2693 = vld [vmem:[%s16 + $0x110] sm:$0xff]
    %v2694 = vld [vmem:[%s16 + $0x118] sm:$0xff]
    %v2695 = vld [vmem:[%s16 + $0x120] sm:$0xff]
    %v2696 = vld [vmem:[%s16 + $0x128] sm:$0xff]
    %v2697 = vld [vmem:[%s16 + $0x130] sm:$0xff]
    %v2698 = vld [vmem:[%s16 + $0x138] sm:$0xff]
    %v2699 = vld [vmem:[%s16 + $0x140] sm:$0xff]
    %v2700 = vld [vmem:[%s16 + $0x148] sm:$0xff]
    %v2701 = vld [vmem:[%s16 + $0x150] sm:$0xff]
    %v2702 = vld [vmem:[%s16 + $0x158] sm:$0xff]
    %v2703 = vld [vmem:[%s16 + $0x160] sm:$0xff]
    %v2704 = vld [vmem:[%s16 + $0x168] sm:$0xff]
    %v2705 = vld [vmem:[%s16 + $0x170] sm:$0xff]
    %v2706 = vld [vmem:[%s16 + $0x178] sm:$0xff]
    %v2707 = vld [vmem:[%s16 + $0x180] sm:$0xff]
    %v2708 = vld [vmem:[%s16 + $0x188] sm:$0xff]
    %v2709 = vld [vmem:[%s16 + $0x190] sm:$0xff]
    %v2710 = vld [vmem:[%s16 + $0x198] sm:$0xff]
    %v2711 = vld [vmem:[%s16 + $0x1a0] sm:$0xff]
    %v2712 = vld [vmem:[%s16 + $0x1a8] sm:$0xff]
    %v2713 = vld [vmem:[%s16 + $0x1b0] sm:$0xff]
    %v2714 = vld [vmem:[%s16 + $0x1b8] sm:$0xff]
    %v2715 = vld [vmem:[%s16 + $0x1c0] sm:$0xff]
    %v2716 = vld [vmem:[%s16 + $0x1c8] sm:$0xff]
    %v2717 = vld [vmem:[%s16 + $0x1d0] sm:$0xff]
    %v2718 = vld [vmem:[%s16 + $0x1d8] sm:$0xff]
    %v2719 = vld [vmem:[%s16 + $0x1e0] sm:$0xff]
    %v2720 = vld [vmem:[%s16 + $0x1e8] sm:$0xff]
    %v2721 = vld [vmem:[%s16 + $0x1f0] sm:$0xff]
    %v2722 = vld [vmem:[%s16 + $0x1f8] sm:$0xff]
    %v2723 = vld [vmem:[%s17] sm:$0xf]
    %v2725 = vperm.slane %v2723, 0
    %v2726 = vperm.slane %v2723, 1
    %v2727 = vperm.slane %v2723, 2
    %v2728 = vperm.slane %v2723, 3
    %v2797 = vunpack.c.l.b16 %v2659
    %v2798 = vunpack.c.h.b16 %v2659
    %v2799 = vunpack.c.l.b16 %v2660
    %v2800 = vunpack.c.h.b16 %v2660
    %v2801 = vunpack.c.l.b16 %v2661
    %v2802 = vunpack.c.h.b16 %v2661
    %v2803 = vunpack.c.l.b16 %v2662
    %v2804 = vunpack.c.h.b16 %v2662
    %v2805 = vunpack.c.l.b16 %v2663
    %v2806 = vunpack.c.h.b16 %v2663
    %v2807 = vunpack.c.l.b16 %v2664
    %v2808 = vunpack.c.h.b16 %v2664
    %v2809 = vunpack.c.l.b16 %v2665
    %v2810 = vunpack.c.h.b16 %v2665
    %v2811 = vunpack.c.l.b16 %v2666
    %v2812 = vunpack.c.h.b16 %v2666
    %v2813 = vunpack.c.l.b16 %v2667
    %v2814 = vunpack.c.h.b16 %v2667
    %v2815 = vunpack.c.l.b16 %v2668
    %v2816 = vunpack.c.h.b16 %v2668
    %v2817 = vunpack.c.l.b16 %v2669
    %v2818 = vunpack.c.h.b16 %v2669
    %v2819 = vunpack.c.l.b16 %v2670
    %v2820 = vunpack.c.h.b16 %v2670
    %v2821 = vunpack.c.l.b16 %v2671
    %v2822 = vunpack.c.h.b16 %v2671
    %v2823 = vunpack.c.l.b16 %v2672
    %v2824 = vunpack.c.h.b16 %v2672
    %v2825 = vunpack.c.l.b16 %v2673
    %v2826 = vunpack.c.h.b16 %v2673
    %v2827 = vunpack.c.l.b16 %v2674
    %v2828 = vunpack.c.h.b16 %v2674
    %v2829 = vunpack.c.l.b16 %v2675
    %v2830 = vunpack.c.h.b16 %v2675
    %v2831 = vunpack.c.l.b16 %v2676
    %v2832 = vunpack.c.h.b16 %v2676
    %v2833 = vunpack.c.l.b16 %v2677
    %v2834 = vunpack.c.h.b16 %v2677
    %v2835 = vunpack.c.l.b16 %v2678
    %v2836 = vunpack.c.h.b16 %v2678
    %v2837 = vunpack.c.l.b16 %v2679
    %v2838 = vunpack.c.h.b16 %v2679
    %v2839 = vunpack.c.l.b16 %v2680
    %v2840 = vunpack.c.h.b16 %v2680
    %v2841 = vunpack.c.l.b16 %v2681
    %v2842 = vunpack.c.h.b16 %v2681
    %v2843 = vunpack.c.l.b16 %v2682
    %v2844 = vunpack.c.h.b16 %v2682
    %v2845 = vunpack.c.l.b16 %v2683
    %v2846 = vunpack.c.h.b16 %v2683
    %v2847 = vunpack.c.l.b16 %v2684
    %v2848 = vunpack.c.h.b16 %v2684
    %v2849 = vunpack.c.l.b16 %v2685
    %v2850 = vunpack.c.h.b16 %v2685
    %v2851 = vunpack.c.l.b16 %v2686
    %v2852 = vunpack.c.h.b16 %v2686
    %v2853 = vunpack.c.l.b16 %v2687
    %v2854 = vunpack.c.h.b16 %v2687
    %v2855 = vunpack.c.l.b16 %v2688
    %v2856 = vunpack.c.h.b16 %v2688
    %v2857 = vunpack.c.l.b16 %v2689
    %v2858 = vunpack.c.h.b16 %v2689
    %v2859 = vunpack.c.l.b16 %v2690
    %v2860 = vunpack.c.h.b16 %v2690
    %v2861 = vunpack.c.l.b16 %v2691
    %v2862 = vunpack.c.h.b16 %v2691
    %v2863 = vunpack.c.l.b16 %v2692
    %v2864 = vunpack.c.h.b16 %v2692
    %v2865 = vunpack.c.l.b16 %v2693
    %v2866 = vunpack.c.h.b16 %v2693
    %v2867 = vunpack.c.l.b16 %v2694
    %v2868 = vunpack.c.h.b16 %v2694
    %v2869 = vunpack.c.l.b16 %v2695
    %v2870 = vunpack.c.h.b16 %v2695
    %v2871 = vunpack.c.l.b16 %v2696
    %v2872 = vunpack.c.h.b16 %v2696
    %v2873 = vunpack.c.l.b16 %v2697
    %v2874 = vunpack.c.h.b16 %v2697
    %v2875 = vunpack.c.l.b16 %v2698
    %v2876 = vunpack.c.h.b16 %v2698
    %v2877 = vunpack.c.l.b16 %v2699
    %v2878 = vunpack.c.h.b16 %v2699
    %v2879 = vunpack.c.l.b16 %v2700
    %v2880 = vunpack.c.h.b16 %v2700
    %v2881 = vunpack.c.l.b16 %v2701
    %v2882 = vunpack.c.h.b16 %v2701
    %v2883 = vunpack.c.l.b16 %v2702
    %v2884 = vunpack.c.h.b16 %v2702
    %v2885 = vunpack.c.l.b16 %v2703
    %v2886 = vunpack.c.h.b16 %v2703
    %v2887 = vunpack.c.l.b16 %v2704
    %v2888 = vunpack.c.h.b16 %v2704
    %v2889 = vunpack.c.l.b16 %v2705
    %v2890 = vunpack.c.h.b16 %v2705
    %v2891 = vunpack.c.l.b16 %v2706
    %v2892 = vunpack.c.h.b16 %v2706
    %v2893 = vunpack.c.l.b16 %v2707
    %v2894 = vunpack.c.h.b16 %v2707
    %v2895 = vunpack.c.l.b16 %v2708
    %v2896 = vunpack.c.h.b16 %v2708
    %v2897 = vunpack.c.l.b16 %v2709
    %v2898 = vunpack.c.h.b16 %v2709
    %v2899 = vunpack.c.l.b16 %v2710
    %v2900 = vunpack.c.h.b16 %v2710
    %v2901 = vunpack.c.l.b16 %v2711
    %v2902 = vunpack.c.h.b16 %v2711
    %v2903 = vunpack.c.l.b16 %v2712
    %v2904 = vunpack.c.h.b16 %v2712
    %v2905 = vunpack.c.l.b16 %v2713
    %v2906 = vunpack.c.h.b16 %v2713
    %v2907 = vunpack.c.l.b16 %v2714
    %v2908 = vunpack.c.h.b16 %v2714
    %v2909 = vunpack.c.l.b16 %v2715
    %v2910 = vunpack.c.h.b16 %v2715
    %v2911 = vunpack.c.l.b16 %v2716
    %v2912 = vunpack.c.h.b16 %v2716
    %v2913 = vunpack.c.l.b16 %v2717
    %v2914 = vunpack.c.h.b16 %v2717
    %v2915 = vunpack.c.l.b16 %v2718
    %v2916 = vunpack.c.h.b16 %v2718
    %v2917 = vunpack.c.l.b16 %v2719
    %v2918 = vunpack.c.h.b16 %v2719
    %v2919 = vunpack.c.l.b16 %v2720
    %v2920 = vunpack.c.h.b16 %v2720
    %v2921 = vunpack.c.l.b16 %v2721
    %v2922 = vunpack.c.h.b16 %v2721
    %v2923 = vunpack.c.l.b16 %v2722
    %v2924 = vunpack.c.h.b16 %v2722
    %v2925 = vpack.c.b16 %v2801, %v2797
    %v2926 = vpack.c.b16 %v2802, %v2798
    %v2927 = vpack.c.b16 %v2803, %v2799
    %v2928 = vpack.c.b16 %v2804, %v2800
    %v2929 = vpack.c.b16 %v2809, %v2805
    %v2930 = vpack.c.b16 %v2810, %v2806
    %v2931 = vpack.c.b16 %v2811, %v2807
    %v2932 = vpack.c.b16 %v2812, %v2808
    %v2933 = vpack.c.b16 %v2817, %v2813
    %v2934 = vpack.c.b16 %v2818, %v2814
    %v2935 = vpack.c.b16 %v2819, %v2815
    %v2936 = vpack.c.b16 %v2820, %v2816
    %v2937 = vpack.c.b16 %v2825, %v2821
    %v2938 = vpack.c.b16 %v2826, %v2822
    %v2939 = vpack.c.b16 %v2827, %v2823
    %v2940 = vpack.c.b16 %v2828, %v2824
    %v2941 = vpack.c.b16 %v2833, %v2829
    %v2942 = vpack.c.b16 %v2834, %v2830
    %v2943 = vpack.c.b16 %v2835, %v2831
    %v2944 = vpack.c.b16 %v2836, %v2832
    %v2945 = vpack.c.b16 %v2841, %v2837
    %v2946 = vpack.c.b16 %v2842, %v2838
    %v2947 = vpack.c.b16 %v2843, %v2839
    %v2948 = vpack.c.b16 %v2844, %v2840
    %v2949 = vpack.c.b16 %v2849, %v2845
    %v2950 = vpack.c.b16 %v2850, %v2846
    %v2951 = vpack.c.b16 %v2851, %v2847
    %v2952 = vpack.c.b16 %v2852, %v2848
    %v2953 = vpack.c.b16 %v2857, %v2853
    %v2954 = vpack.c.b16 %v2858, %v2854
    %v2955 = vpack.c.b16 %v2859, %v2855
    %v2956 = vpack.c.b16 %v2860, %v2856
    %v2957 = vpack.c.b16 %v2865, %v2861
    %v2958 = vpack.c.b16 %v2866, %v2862
    %v2959 = vpack.c.b16 %v2867, %v2863
    %v2960 = vpack.c.b16 %v2868, %v2864
    %v2961 = vpack.c.b16 %v2873, %v2869
    %v2962 = vpack.c.b16 %v2874, %v2870
    %v2963 = vpack.c.b16 %v2875, %v2871
    %v2964 = vpack.c.b16 %v2876, %v2872
    %v2965 = vpack.c.b16 %v2881, %v2877
    %v2966 = vpack.c.b16 %v2882, %v2878
    %v2967 = vpack.c.b16 %v2883, %v2879
    %v2968 = vpack.c.b16 %v2884, %v2880
    %v2969 = vpack.c.b16 %v2889, %v2885
    %v2970 = vpack.c.b16 %v2890, %v2886
    %v2971 = vpack.c.b16 %v2891, %v2887
    %v2972 = vpack.c.b16 %v2892, %v2888
    %v2973 = vpack.c.b16 %v2897, %v2893
    %v2974 = vpack.c.b16 %v2898, %v2894
    %v2975 = vpack.c.b16 %v2899, %v2895
    %v2976 = vpack.c.b16 %v2900, %v2896
    %v2977 = vpack.c.b16 %v2905, %v2901
    %v2978 = vpack.c.b16 %v2906, %v2902
    %v2979 = vpack.c.b16 %v2907, %v2903
    %v2980 = vpack.c.b16 %v2908, %v2904
    %v2981 = vpack.c.b16 %v2913, %v2909
    %v2982 = vpack.c.b16 %v2914, %v2910
    %v2983 = vpack.c.b16 %v2915, %v2911
    %v2984 = vpack.c.b16 %v2916, %v2912
    %v2985 = vpack.c.b16 %v2921, %v2917
    %v2986 = vpack.c.b16 %v2922, %v2918
    %v2987 = vpack.c.b16 %v2923, %v2919
    %v2988 = vpack.c.b16 %v2924, %v2920
    %3053 = vmatpush.bf16.msra.mxu0 %v2953
    %3054 = vmatpush.bf16.msra.mxu0 %v2949
    %3055 = vmatpush.bf16.msra.mxu0 %v2945
    %3056 = vmatpush.bf16.msra.mxu0 %v2941
    %3057 = vmatpush.bf16.msra.mxu0 %v2937
    %3058 = vmatpush.bf16.msra.mxu0 %v2933
    %3059 = vmatpush.bf16.msra.mxu0 %v2929
    %3060 = vmatpush.bf16.msra.mxu0 %v2925
    %3061 = vmatmul.bf16.gmra.mxu0 %v2657
    %v3062 = vpop.f32.mrf.mxu0
    %v3063 = vadd.f32 %v2725, %v3062
    %v3064 = vpop.f32.mrf.mxu0
    %3065 = vdwg.mxu0
    %3066 = vmatpush.bf16.msra.mxu0 %v2985
    %3067 = vmatpush.bf16.msra.mxu0 %v2981
    %3068 = vmatpush.bf16.msra.mxu0 %v2977
    %3069 = vmatpush.bf16.msra.mxu0 %v2973
    %3070 = vmatpush.bf16.msra.mxu0 %v2969
    %3071 = vmatpush.bf16.msra.mxu0 %v2965
    %3072 = vmatpush.bf16.msra.mxu0 %v2961
    %3073 = vmatpush.bf16.msra.mxu0 %v2957
    %3074 = vmatmul.bf16.gmra.mxu0 %v2658
    %v3075 = vpop.f32.mrf.mxu0
    %v3076 = vadd.f32 %v3063, %v3075
    %v3077 = vpop.f32.mrf.mxu0
    %3078 = vdwg.mxu0
    %3079 = vmatpush.bf16.msra.mxu0 %v2954
    %3080 = vmatpush.bf16.msra.mxu0 %v2950
    %3081 = vmatpush.bf16.msra.mxu0 %v2946
    %3082 = vmatpush.bf16.msra.mxu0 %v2942
    %3083 = vmatpush.bf16.msra.mxu0 %v2938
    %3084 = vmatpush.bf16.msra.mxu0 %v2934
    %3085 = vmatpush.bf16.msra.mxu0 %v2930
    %3086 = vmatpush.bf16.msra.mxu0 %v2926
    %3087 = vmatmul.bf16.gmra.mxu0 %v2657
    %v3088 = vpop.f32.mrf.mxu0
    %v3089 = vadd.f32 %v2726, %v3088
    %v3090 = vpop.f32.mrf.mxu0
    %3091 = vdwg.mxu0
    %3092 = vmatpush.bf16.msra.mxu0 %v2986
    %3093 = vmatpush.bf16.msra.mxu0 %v2982
    %3094 = vmatpush.bf16.msra.mxu0 %v2978
    %3095 = vmatpush.bf16.msra.mxu0 %v2974
    %3096 = vmatpush.bf16.msra.mxu0 %v2970
    %3097 = vmatpush.bf16.msra.mxu0 %v2966
    %3098 = vmatpush.bf16.msra.mxu0 %v2962
    %3099 = vmatpush.bf16.msra.mxu0 %v2958
    %3100 = vmatmul.bf16.gmra.mxu0 %v2658
    %v3101 = vpop.f32.mrf.mxu0
    %v3102 = vadd.f32 %v3089, %v3101
    %v3103 = vpop.f32.mrf.mxu0
    %3104 = vdwg.mxu0
    %3105 = vmatpush.bf16.msra.mxu0 %v2955
    %3106 = vmatpush.bf16.msra.mxu0 %v2951
    %3107 = vmatpush.bf16.msra.mxu0 %v2947
    %3108 = vmatpush.bf16.msra.mxu0 %v2943
    %3109 = vmatpush.bf16.msra.mxu0 %v2939
    %3110 = vmatpush.bf16.msra.mxu0 %v2935
    %3111 = vmatpush.bf16.msra.mxu0 %v2931
    %3112 = vmatpush.bf16.msra.mxu0 %v2927
    %3113 = vmatmul.bf16.gmra.mxu0 %v2657
    %v3114 = vpop.f32.mrf.mxu0
    %v3115 = vadd.f32 %v2727, %v3114
    %v3116 = vpop.f32.mrf.mxu0
    %3117 = vdwg.mxu0
    %3118 = vmatpush.bf16.msra.mxu0 %v2987
    %3119 = vmatpush.bf16.msra.mxu0 %v2983
    %3120 = vmatpush.bf16.msra.mxu0 %v2979
    %3121 = vmatpush.bf16.msra.mxu0 %v2975
    %3122 = vmatpush.bf16.msra.mxu0 %v2971
    %3123 = vmatpush.bf16.msra.mxu0 %v2967
    %3124 = vmatpush.bf16.msra.mxu0 %v2963
    %3125 = vmatpush.bf16.msra.mxu0 %v2959
    %3126 = vmatmul.bf16.gmra.mxu0 %v2658
    %v3127 = vpop.f32.mrf.mxu0
    %v3128 = vadd.f32 %v3115, %v3127
    %v3129 = vpop.f32.mrf.mxu0
    %3130 = vdwg.mxu0
    %3131 = vmatpush.bf16.msra.mxu0 %v2956
    %3132 = vmatpush.bf16.msra.mxu0 %v2952
    %3133 = vmatpush.bf16.msra.mxu0 %v2948
    %3134 = vmatpush.bf16.msra.mxu0 %v2944
    %3135 = vmatpush.bf16.msra.mxu0 %v2940
    %3136 = vmatpush.bf16.msra.mxu0 %v2936
    %3137 = vmatpush.bf16.msra.mxu0 %v2932
    %3138 = vmatpush.bf16.msra.mxu0 %v2928
    %3139 = vmatmul.bf16.gmra.mxu0 %v2657
    %v3140 = vpop.f32.mrf.mxu0
    %v3141 = vadd.f32 %v2728, %v3140
    %v3142 = vpop.f32.mrf.mxu0
    %3143 = vdwg.mxu0
    %3144 = vmatpush.bf16.msra.mxu0 %v2988
    %3145 = vmatpush.bf16.msra.mxu0 %v2984
    %3146 = vmatpush.bf16.msra.mxu0 %v2980
    %3147 = vmatpush.bf16.msra.mxu0 %v2976
    %3148 = vmatpush.bf16.msra.mxu0 %v2972
    %3149 = vmatpush.bf16.msra.mxu0 %v2968
    %3150 = vmatpush.bf16.msra.mxu0 %v2964
    %3151 = vmatpush.bf16.msra.mxu0 %v2960
    %3152 = vmatmul.bf16.gmra.mxu0 %v2658
    %v3153 = vpop.f32.mrf.mxu0
    %v3154 = vadd.f32 %v3141, %v3153
    %v3155 = vpop.f32.mrf.mxu0
    %3156 = vdwg.mxu0
    %v3157 = vmax.f32 %v3076, 0.0
    %v3158 = vmax.f32 %v3102, 0.0
    %v3159 = vmax.f32 %v3128, 0.0
    %v3160 = vmax.f32 %v3154, 0.0
    %v3161 = vpack.c.bf16 %v3157, %v3157
    %v3162 = vpack.c.bf16 %v3158, %v3158
    %v3163 = vpack.c.bf16 %v3159, %v3159
    %v3164 = vpack.c.bf16 %v3160, %v3160
    %v3165 = vld [vmem:[%s18] sm:$0xff]
    %v3166 = vld [vmem:[%s18 + $0x8] sm:$0xff]
    %v3167 = vld [vmem:[%s18 + $0x10] sm:$0xff]
    %v3168 = vld [vmem:[%s18 + $0x18] sm:$0xf]
    %v3169 = vld [vmem:[%s18 + $0x1c] sm:$0xff]
    %v3170 = vld [vmem:[%s18 + $0x24] sm:$0xff]
    %v3171 = vld [vmem:[%s18 + $0x2c] sm:$0xff]
    %v3172 = vld [vmem:[%s18 + $0x34] sm:$0xf]
    %v3173 = vld [vmem:[%s18 + $0x38] sm:$0xff]
    %v3174 = vld [vmem:[%s18 + $0x40] sm:$0xff]
    %v3175 = vld [vmem:[%s18 + $0x48] sm:$0xff]
    %v3176 = vld [vmem:[%s18 + $0x50] sm:$0xf]
    %v3177 = vld [vmem:[%s18 + $0x54] sm:$0xff]
    %v3178 = vld [vmem:[%s18 + $0x5c] sm:$0xff]
    %v3179 = vld [vmem:[%s18 + $0x64] sm:$0xff]
    %v3180 = vld [vmem:[%s18 + $0x6c] sm:$0xf]
    %v3181 = vld [vmem:[%s18 + $0x70] sm:$0xff]
    %v3182 = vld [vmem:[%s18 + $0x78] sm:$0xff]
    %v3183 = vld [vmem:[%s18 + $0x80] sm:$0xff]
    %v3184 = vld [vmem:[%s18 + $0x88] sm:$0xf]
    %v3185 = vld [vmem:[%s18 + $0x8c] sm:$0xff]
    %v3186 = vld [vmem:[%s18 + $0x94] sm:$0xff]
    %v3187 = vld [vmem:[%s18 + $0x9c] sm:$0xff]
    %v3188 = vld [vmem:[%s18 + $0xa4] sm:$0xf]
    %v3189 = vld [vmem:[%s18 + $0xa8] sm:$0xff]
    %v3190 = vld [vmem:[%s18 + $0xb0] sm:$0xff]
    %v3191 = vld [vmem:[%s18 + $0xb8] sm:$0xff]
    %v3192 = vld [vmem:[%s18 + $0xc0] sm:$0xf]
    %v3193 = vld [vmem:[%s18 + $0xc4] sm:$0xff]
    %v3194 = vld [vmem:[%s18 + $0xcc] sm:$0xff]
    %v3195 = vld [vmem:[%s18 + $0xd4] sm:$0xff]
    %v3196 = vld [vmem:[%s18 + $0xdc] sm:$0xf]
    %v3197 = vld [vmem:[%s18 + $0xe0] sm:$0xff]
    %v3198 = vld [vmem:[%s18 + $0xe8] sm:$0xff]
    %v3199 = vld [vmem:[%s18 + $0xf0] sm:$0xff]
    %v3200 = vld [vmem:[%s18 + $0xf8] sm:$0xf]
    %v3201 = vld [vmem:[%s18 + $0xfc] sm:$0xff]
    %v3202 = vld [vmem:[%s18 + $0x104] sm:$0xff]
    %v3203 = vld [vmem:[%s18 + $0x10c] sm:$0xff]
    %v3204 = vld [vmem:[%s18 + $0x114] sm:$0xf]
    %v3205 = vld [vmem:[%s18 + $0x118] sm:$0xff]
    %v3206 = vld [vmem:[%s18 + $0x120] sm:$0xff]
    %v3207 = vld [vmem:[%s18 + $0x128] sm:$0xff]
    %v3208 = vld [vmem:[%s18 + $0x130] sm:$0xf]
    %v3209 = vld [vmem:[%s18 + $0x134] sm:$0xff]
    %v3210 = vld [vmem:[%s18 + $0x13c] sm:$0xff]
    %v3211 = vld [vmem:[%s18 + $0x144] sm:$0xff]
    %v3212 = vld [vmem:[%s18 + $0x14c] sm:$0xf]
    %v3213 = vld [vmem:[%s18 + $0x150] sm:$0xff]
    %v3214 = vld [vmem:[%s18 + $0x158] sm:$0xff]
    %v3215 = vld [vmem:[%s18 + $0x160] sm:$0xff]
    %v3216 = vld [vmem:[%s18 + $0x168] sm:$0xf]
    %v3217 = vld [vmem:[%s18 + $0x16c] sm:$0xff]
    %v3218 = vld [vmem:[%s18 + $0x174] sm:$0xff]
    %v3219 = vld [vmem:[%s18 + $0x17c] sm:$0xff]
    %v3220 = vld [vmem:[%s18 + $0x184] sm:$0xf]
    %v3221 = vld [vmem:[%s18 + $0x188] sm:$0xff]
    %v3222 = vld [vmem:[%s18 + $0x190] sm:$0xff]
    %v3223 = vld [vmem:[%s18 + $0x198] sm:$0xff]
    %v3224 = vld [vmem:[%s18 + $0x1a0] sm:$0xf]
    %v3225 = vld [vmem:[%s18 + $0x1a4] sm:$0xff]
    %v3226 = vld [vmem:[%s18 + $0x1ac] sm:$0xff]
    %v3227 = vld [vmem:[%s18 + $0x1b4] sm:$0xff]
    %v3228 = vld [vmem:[%s18 + $0x1bc] sm:$0xf]
    %v3229 = vld [vmem:[%s18 + $0x1c0] sm:$0xff]
    %v3230 = vld [vmem:[%s18 + $0x1c8] sm:$0xff]
    %v3231 = vld [vmem:[%s18 + $0x1d0] sm:$0xff]
    %v3232 = vld [vmem:[%s18 + $0x1d8] sm:$0xf]
    %v3233 = vld [vmem:[%s18 + $0x1dc] sm:$0xff]
    %v3234 = vld [vmem:[%s18 + $0x1e4] sm:$0xff]
    %v3235 = vld [vmem:[%s18 + $0x1ec] sm:$0xff]
    %v3236 = vld [vmem:[%s18 + $0x1f4] sm:$0xf]
    %v3237 = vld [vmem:[%s18 + $0x1f8] sm:$0xff]
    %v3238 = vld [vmem:[%s18 + $0x200] sm:$0xff]
    %v3239 = vld [vmem:[%s18 + $0x208] sm:$0xff]
    %v3240 = vld [vmem:[%s18 + $0x210] sm:$0xf]
    %v3241 = vld [vmem:[%s18 + $0x214] sm:$0xff]
    %v3242 = vld [vmem:[%s18 + $0x21c] sm:$0xff]
    %v3243 = vld [vmem:[%s18 + $0x224] sm:$0xff]
    %v3244 = vld [vmem:[%s18 + $0x22c] sm:$0xf]
    %v3245 = vld [vmem:[%s18 + $0x230] sm:$0xff]
    %v3246 = vld [vmem:[%s18 + $0x238] sm:$0xff]
    %v3247 = vld [vmem:[%s18 + $0x240] sm:$0xff]
    %v3248 = vld [vmem:[%s18 + $0x248] sm:$0xf]
    %v3249 = vld [vmem:[%s18 + $0x24c] sm:$0xff]
    %v3250 = vld [vmem:[%s18 + $0x254] sm:$0xff]
    %v3251 = vld [vmem:[%s18 + $0x25c] sm:$0xff]
    %v3252 = vld [vmem:[%s18 + $0x264] sm:$0xf]
    %v3253 = vld [vmem:[%s18 + $0x268] sm:$0xff]
    %v3254 = vld [vmem:[%s18 + $0x270] sm:$0xff]
    %v3255 = vld [vmem:[%s18 + $0x278] sm:$0xff]
    %v3256 = vld [vmem:[%s18 + $0x280] sm:$0xf]
    %v3257 = vld [vmem:[%s18 + $0x284] sm:$0xff]
    %v3258 = vld [vmem:[%s18 + $0x28c] sm:$0xff]
    %v3259 = vld [vmem:[%s18 + $0x294] sm:$0xff]
    %v3260 = vld [vmem:[%s18 + $0x29c] sm:$0xf]
    %v3261 = vld [vmem:[%s18 + $0x2a0] sm:$0xff]
    %v3262 = vld [vmem:[%s18 + $0x2a8] sm:$0xff]
    %v3263 = vld [vmem:[%s18 + $0x2b0] sm:$0xff]
    %v3264 = vld [vmem:[%s18 + $0x2b8] sm:$0xf]
    %v3265 = vld [vmem:[%s18 + $0x2bc] sm:$0xff]
    %v3266 = vld [vmem:[%s18 + $0x2c4] sm:$0xff]
    %v3267 = vld [vmem:[%s18 + $0x2cc] sm:$0xff]
    %v3268 = vld [vmem:[%s18 + $0x2d4] sm:$0xf]
    %v3269 = vld [vmem:[%s18 + $0x2d8] sm:$0xff]
    %v3270 = vld [vmem:[%s18 + $0x2e0] sm:$0xff]
    %v3271 = vld [vmem:[%s18 + $0x2e8] sm:$0xff]
    %v3272 = vld [vmem:[%s18 + $0x2f0] sm:$0xf]
    %v3273 = vld [vmem:[%s18 + $0x2f4] sm:$0xff]
    %v3274 = vld [vmem:[%s18 + $0x2fc] sm:$0xff]
    %v3275 = vld [vmem:[%s18 + $0x304] sm:$0xff]
    %v3276 = vld [vmem:[%s18 + $0x30c] sm:$0xf]
    %v3277 = vld [vmem:[%s18 + $0x310] sm:$0xff]
    %v3278 = vld [vmem:[%s18 + $0x318] sm:$0xff]
    %v3279 = vld [vmem:[%s18 + $0x320] sm:$0xff]
    %v3280 = vld [vmem:[%s18 + $0x328] sm:$0xf]
    %v3281 = vld [vmem:[%s18 + $0x32c] sm:$0xff]
    %v3282 = vld [vmem:[%s18 + $0x334] sm:$0xff]
    %v3283 = vld [vmem:[%s18 + $0x33c] sm:$0xff]
    %v3284 = vld [vmem:[%s18 + $0x344] sm:$0xf]
    %v3285 = vld [vmem:[%s18 + $0x348] sm:$0xff]
    %v3286 = vld [vmem:[%s18 + $0x350] sm:$0xff]
    %v3287 = vld [vmem:[%s18 + $0x358] sm:$0xff]
    %v3288 = vld [vmem:[%s18 + $0x360] sm:$0xf]
    %v3289 = vld [vmem:[%s18 + $0x364] sm:$0xff]
    %v3290 = vld [vmem:[%s18 + $0x36c] sm:$0xff]
    %v3291 = vld [vmem:[%s18 + $0x374] sm:$0xff]
    %v3292 = vld [vmem:[%s18 + $0x37c] sm:$0xf]
    %v3293 = vld [vmem:[%s18 + $0x380] sm:$0xff]
    %v3294 = vld [vmem:[%s18 + $0x388] sm:$0xff]
    %v3295 = vld [vmem:[%s18 + $0x390] sm:$0xff]
    %v3296 = vld [vmem:[%s18 + $0x398] sm:$0xf]
    %v3297 = vld [vmem:[%s18 + $0x39c] sm:$0xff]
    %v3298 = vld [vmem:[%s18 + $0x3a4] sm:$0xff]
    %v3299 = vld [vmem:[%s18 + $0x3ac] sm:$0xff]
    %v3300 = vld [vmem:[%s18 + $0x3b4] sm:$0xf]
    %v3301 = vld [vmem:[%s18 + $0x3b8] sm:$0xff]
    %v3302 = vld [vmem:[%s18 + $0x3c0] sm:$0xff]
    %v3303 = vld [vmem:[%s18 + $0x3c8] sm:$0xff]
    %v3304 = vld [vmem:[%s18 + $0x3d0] sm:$0xf]
    %v3305 = vld [vmem:[%s18 + $0x3d4] sm:$0xff]
    %v3306 = vld [vmem:[%s18 + $0x3dc] sm:$0xff]
    %v3307 = vld [vmem:[%s18 + $0x3e4] sm:$0xff]
    %v3308 = vld [vmem:[%s18 + $0x3ec] sm:$0xf]
    %v3309 = vld [vmem:[%s18 + $0x3f0] sm:$0xff]
    %v3310 = vld [vmem:[%s18 + $0x3f8] sm:$0xff]
    %v3311 = vld [vmem:[%s18 + $0x400] sm:$0xff]
    %v3312 = vld [vmem:[%s18 + $0x408] sm:$0xf]
    %v3313 = vld [vmem:[%s18 + $0x40c] sm:$0xff]
    %v3314 = vld [vmem:[%s18 + $0x414] sm:$0xff]
    %v3315 = vld [vmem:[%s18 + $0x41c] sm:$0xff]
    %v3316 = vld [vmem:[%s18 + $0x424] sm:$0xf]
    %v3317 = vld [vmem:[%s18 + $0x428] sm:$0xff]
    %v3318 = vld [vmem:[%s18 + $0x430] sm:$0xff]
    %v3319 = vld [vmem:[%s18 + $0x438] sm:$0xff]
    %v3320 = vld [vmem:[%s18 + $0x440] sm:$0xf]
    %v3321 = vld [vmem:[%s18 + $0x444] sm:$0xff]
    %v3322 = vld [vmem:[%s18 + $0x44c] sm:$0xff]
    %v3323 = vld [vmem:[%s18 + $0x454] sm:$0xff]
    %v3324 = vld [vmem:[%s18 + $0x45c] sm:$0xf]
    %v3325 = vld [vmem:[%s18 + $0x460] sm:$0xff]
    %v3326 = vld [vmem:[%s18 + $0x468] sm:$0xff]
    %v3327 = vld [vmem:[%s18 + $0x470] sm:$0xff]
    %v3328 = vld [vmem:[%s18 + $0x478] sm:$0xf]
    %v3329 = vld [vmem:[%s18 + $0x47c] sm:$0xff]
    %v3330 = vld [vmem:[%s18 + $0x484] sm:$0xff]
    %v3331 = vld [vmem:[%s18 + $0x48c] sm:$0xff]
    %v3332 = vld [vmem:[%s18 + $0x494] sm:$0xf]
    %v3333 = vld [vmem:[%s18 + $0x498] sm:$0xff]
    %v3334 = vld [vmem:[%s18 + $0x4a0] sm:$0xff]
    %v3335 = vld [vmem:[%s18 + $0x4a8] sm:$0xff]
    %v3336 = vld [vmem:[%s18 + $0x4b0] sm:$0xf]
    %v3337 = vld [vmem:[%s18 + $0x4b4] sm:$0xff]
    %v3338 = vld [vmem:[%s18 + $0x4bc] sm:$0xff]
    %v3339 = vld [vmem:[%s18 + $0x4c4] sm:$0xff]
    %v3340 = vld [vmem:[%s18 + $0x4cc] sm:$0xf]
    %v3341 = vld [vmem:[%s18 + $0x4d0] sm:$0xff]
    %v3342 = vld [vmem:[%s18 + $0x4d8] sm:$0xff]
    %v3343 = vld [vmem:[%s18 + $0x4e0] sm:$0xff]
    %v3344 = vld [vmem:[%s18 + $0x4e8] sm:$0xf]
    %v3345 = vld [vmem:[%s18 + $0x4ec] sm:$0xff]
    %v3346 = vld [vmem:[%s18 + $0x4f4] sm:$0xff]
    %v3347 = vld [vmem:[%s18 + $0x4fc] sm:$0xff]
    %v3348 = vld [vmem:[%s18 + $0x504] sm:$0xf]
    %v3349 = vld [vmem:[%s18 + $0x508] sm:$0xff]
    %v3350 = vld [vmem:[%s18 + $0x510] sm:$0xff]
    %v3351 = vld [vmem:[%s18 + $0x518] sm:$0xff]
    %v3352 = vld [vmem:[%s18 + $0x520] sm:$0xf]
    %v3353 = vld [vmem:[%s18 + $0x524] sm:$0xff]
    %v3354 = vld [vmem:[%s18 + $0x52c] sm:$0xff]
    %v3355 = vld [vmem:[%s18 + $0x534] sm:$0xff]
    %v3356 = vld [vmem:[%s18 + $0x53c] sm:$0xf]
    %v3357 = vld [vmem:[%s18 + $0x540] sm:$0xff]
    %v3358 = vld [vmem:[%s18 + $0x548] sm:$0xff]
    %v3359 = vld [vmem:[%s18 + $0x550] sm:$0xff]
    %v3360 = vld [vmem:[%s18 + $0x558] sm:$0xf]
    %v3361 = vld [vmem:[%s18 + $0x55c] sm:$0xff]
    %v3362 = vld [vmem:[%s18 + $0x564] sm:$0xff]
    %v3363 = vld [vmem:[%s18 + $0x56c] sm:$0xff]
    %v3364 = vld [vmem:[%s18 + $0x574] sm:$0xf]
    %v3365 = vld [vmem:[%s18 + $0x578] sm:$0xff]
    %v3366 = vld [vmem:[%s18 + $0x580] sm:$0xff]
    %v3367 = vld [vmem:[%s18 + $0x588] sm:$0xff]
    %v3368 = vld [vmem:[%s18 + $0x590] sm:$0xf]
    %v3369 = vld [vmem:[%s18 + $0x594] sm:$0xff]
    %v3370 = vld [vmem:[%s18 + $0x59c] sm:$0xff]
    %v3371 = vld [vmem:[%s18 + $0x5a4] sm:$0xff]
    %v3372 = vld [vmem:[%s18 + $0x5ac] sm:$0xf]
    %v3373 = vld [vmem:[%s18 + $0x5b0] sm:$0xff]
    %v3374 = vld [vmem:[%s18 + $0x5b8] sm:$0xff]
    %v3375 = vld [vmem:[%s18 + $0x5c0] sm:$0xff]
    %v3376 = vld [vmem:[%s18 + $0x5c8] sm:$0xf]
    %v3377 = vld [vmem:[%s18 + $0x5cc] sm:$0xff]
    %v3378 = vld [vmem:[%s18 + $0x5d4] sm:$0xff]
    %v3379 = vld [vmem:[%s18 + $0x5dc] sm:$0xff]
    %v3380 = vld [vmem:[%s18 + $0x5e4] sm:$0xf]
    %v3381 = vld [vmem:[%s18 + $0x5e8] sm:$0xff]
    %v3382 = vld [vmem:[%s18 + $0x5f0] sm:$0xff]
    %v3383 = vld [vmem:[%s18 + $0x5f8] sm:$0xff]
    %v3384 = vld [vmem:[%s18 + $0x600] sm:$0xf]
    %v3385 = vld [vmem:[%s18 + $0x604] sm:$0xff]
    %v3386 = vld [vmem:[%s18 + $0x60c] sm:$0xff]
    %v3387 = vld [vmem:[%s18 + $0x614] sm:$0xff]
    %v3388 = vld [vmem:[%s18 + $0x61c] sm:$0xf]
    %v3389 = vld [vmem:[%s18 + $0x620] sm:$0xff]
    %v3390 = vld [vmem:[%s18 + $0x628] sm:$0xff]
    %v3391 = vld [vmem:[%s18 + $0x630] sm:$0xff]
    %v3392 = vld [vmem:[%s18 + $0x638] sm:$0xf]
    %v3393 = vld [vmem:[%s18 + $0x63c] sm:$0xff]
    %v3394 = vld [vmem:[%s18 + $0x644] sm:$0xff]
    %v3395 = vld [vmem:[%s18 + $0x64c] sm:$0xff]
    %v3396 = vld [vmem:[%s18 + $0x654] sm:$0xf]
    %v3397 = vld [vmem:[%s18 + $0x658] sm:$0xff]
    %v3398 = vld [vmem:[%s18 + $0x660] sm:$0xff]
    %v3399 = vld [vmem:[%s18 + $0x668] sm:$0xff]
    %v3400 = vld [vmem:[%s18 + $0x670] sm:$0xf]
    %v3401 = vld [vmem:[%s18 + $0x674] sm:$0xff]
    %v3402 = vld [vmem:[%s18 + $0x67c] sm:$0xff]
    %v3403 = vld [vmem:[%s18 + $0x684] sm:$0xff]
    %v3404 = vld [vmem:[%s18 + $0x68c] sm:$0xf]
    %v3405 = vld [vmem:[%s18 + $0x690] sm:$0xff]
    %v3406 = vld [vmem:[%s18 + $0x698] sm:$0xff]
    %v3407 = vld [vmem:[%s18 + $0x6a0] sm:$0xff]
    %v3408 = vld [vmem:[%s18 + $0x6a8] sm:$0xf]
    %v3409 = vld [vmem:[%s18 + $0x6ac] sm:$0xff]
    %v3410 = vld [vmem:[%s18 + $0x6b4] sm:$0xff]
    %v3411 = vld [vmem:[%s18 + $0x6bc] sm:$0xff]
    %v3412 = vld [vmem:[%s18 + $0x6c4] sm:$0xf]
    %v3413 = vld [vmem:[%s18 + $0x6c8] sm:$0xff]
    %v3414 = vld [vmem:[%s18 + $0x6d0] sm:$0xff]
    %v3415 = vld [vmem:[%s18 + $0x6d8] sm:$0xff]
    %v3416 = vld [vmem:[%s18 + $0x6e0] sm:$0xf]
    %v3417 = vld [vmem:[%s18 + $0x6e4] sm:$0xff]
    %v3418 = vld [vmem:[%s18 + $0x6ec] sm:$0xff]
    %v3419 = vld [vmem:[%s18 + $0x6f4] sm:$0xff]
    %v3420 = vld [vmem:[%s18 + $0x6fc] sm:$0xf]
    %v3421 = vld [vmem:[%s19] sm:$0x7f]
    %v3423 = vperm.slane %v3421, 0
    %v3424 = vperm.slane %v3421, 1
    %v3425 = vperm.slane %v3421, 2
    %v3426 = vperm.slane %v3421, 3
    %v3427 = vperm.slane %v3421, 4
    %v3428 = vperm.slane %v3421, 5
    %v3429 = vperm.slane %v3421, 6
    %v3693 = vunpack.c.l.b16 %v3165
    %v3694 = vunpack.c.h.b16 %v3165
    %v3695 = vunpack.c.l.b16 %v3166
    %v3696 = vunpack.c.h.b16 %v3166
    %v3697 = vunpack.c.l.b16 %v3167
    %v3698 = vunpack.c.h.b16 %v3167
    %v3699 = vunpack.c.l.b16 %v3168
    %v3700 = vunpack.c.l.b16 %v3169
    %v3701 = vunpack.c.h.b16 %v3169
    %v3702 = vunpack.c.l.b16 %v3170
    %v3703 = vunpack.c.h.b16 %v3170
    %v3704 = vunpack.c.l.b16 %v3171
    %v3705 = vunpack.c.h.b16 %v3171
    %v3706 = vunpack.c.l.b16 %v3172
    %v3707 = vunpack.c.l.b16 %v3173
    %v3708 = vunpack.c.h.b16 %v3173
    %v3709 = vunpack.c.l.b16 %v3174
    %v3710 = vunpack.c.h.b16 %v3174
    %v3711 = vunpack.c.l.b16 %v3175
    %v3712 = vunpack.c.h.b16 %v3175
    %v3713 = vunpack.c.l.b16 %v3176
    %v3714 = vunpack.c.l.b16 %v3177
    %v3715 = vunpack.c.h.b16 %v3177
    %v3716 = vunpack.c.l.b16 %v3178
    %v3717 = vunpack.c.h.b16 %v3178
    %v3718 = vunpack.c.l.b16 %v3179
    %v3719 = vunpack.c.h.b16 %v3179
    %v3720 = vunpack.c.l.b16 %v3180
    %v3721 = vunpack.c.l.b16 %v3181
    %v3722 = vunpack.c.h.b16 %v3181
    %v3723 = vunpack.c.l.b16 %v3182
    %v3724 = vunpack.c.h.b16 %v3182
    %v3725 = vunpack.c.l.b16 %v3183
    %v3726 = vunpack.c.h.b16 %v3183
    %v3727 = vunpack.c.l.b16 %v3184
    %v3728 = vunpack.c.l.b16 %v3185
    %v3729 = vunpack.c.h.b16 %v3185
    %v3730 = vunpack.c.l.b16 %v3186
    %v3731 = vunpack.c.h.b16 %v3186
    %v3732 = vunpack.c.l.b16 %v3187
    %v3733 = vunpack.c.h.b16 %v3187
    %v3734 = vunpack.c.l.b16 %v3188
    %v3735 = vunpack.c.l.b16 %v3189
    %v3736 = vunpack.c.h.b16 %v3189
    %v3737 = vunpack.c.l.b16 %v3190
    %v3738 = vunpack.c.h.b16 %v3190
    %v3739 = vunpack.c.l.b16 %v3191
    %v3740 = vunpack.c.h.b16 %v3191
    %v3741 = vunpack.c.l.b16 %v3192
    %v3742 = vunpack.c.l.b16 %v3193
    %v3743 = vunpack.c.h.b16 %v3193
    %v3744 = vunpack.c.l.b16 %v3194
    %v3745 = vunpack.c.h.b16 %v3194
    %v3746 = vunpack.c.l.b16 %v3195
    %v3747 = vunpack.c.h.b16 %v3195
    %v3748 = vunpack.c.l.b16 %v3196
    %v3749 = vunpack.c.l.b16 %v3197
    %v3750 = vunpack.c.h.b16 %v3197
    %v3751 = vunpack.c.l.b16 %v3198
    %v3752 = vunpack.c.h.b16 %v3198
    %v3753 = vunpack.c.l.b16 %v3199
    %v3754 = vunpack.c.h.b16 %v3199
    %v3755 = vunpack.c.l.b16 %v3200
    %v3756 = vunpack.c.l.b16 %v3201
    %v3757 = vunpack.c.h.b16 %v3201
    %v3758 = vunpack.c.l.b16 %v3202
    %v3759 = vunpack.c.h.b16 %v3202
    %v3760 = vunpack.c.l.b16 %v3203
    %v3761 = vunpack.c.h.b16 %v3203
    %v3762 = vunpack.c.l.b16 %v3204
    %v3763 = vunpack.c.l.b16 %v3205
    %v3764 = vunpack.c.h.b16 %v3205
    %v3765 = vunpack.c.l.b16 %v3206
    %v3766 = vunpack.c.h.b16 %v3206
    %v3767 = vunpack.c.l.b16 %v3207
    %v3768 = vunpack.c.h.b16 %v3207
    %v3769 = vunpack.c.l.b16 %v3208
    %v3770 = vunpack.c.l.b16 %v3209
    %v3771 = vunpack.c.h.b16 %v3209
    %v3772 = vunpack.c.l.b16 %v3210
    %v3773 = vunpack.c.h.b16 %v3210
    %v3774 = vunpack.c.l.b16 %v3211
    %v3775 = vunpack.c.h.b16 %v3211
    %v3776 = vunpack.c.l.b16 %v3212
    %v3777 = vunpack.c.l.b16 %v3213
    %v3778 = vunpack.c.h.b16 %v3213
    %v3779 = vunpack.c.l.b16 %v3214
    %v3780 = vunpack.c.h.b16 %v3214
    %v3781 = vunpack.c.l.b16 %v3215
    %v3782 = vunpack.c.h.b16 %v3215
    %v3783 = vunpack.c.l.b16 %v3216
    %v3784 = vunpack.c.l.b16 %v3217
    %v3785 = vunpack.c.h.b16 %v3217
    %v3786 = vunpack.c.l.b16 %v3218
    %v3787 = vunpack.c.h.b16 %v3218
    %v3788 = vunpack.c.l.b16 %v3219
    %v3789 = vunpack.c.h.b16 %v3219
    %v3790 = vunpack.c.l.b16 %v3220
    %v3791 = vunpack.c.l.b16 %v3221
    %v3792 = vunpack.c.h.b16 %v3221
    %v3793 = vunpack.c.l.b16 %v3222
    %v3794 = vunpack.c.h.b16 %v3222
    %v3795 = vunpack.c.l.b16 %v3223
    %v3796 = vunpack.c.h.b16 %v3223
    %v3797 = vunpack.c.l.b16 %v3224
    %v3798 = vunpack.c.l.b16 %v3225
    %v3799 = vunpack.c.h.b16 %v3225
    %v3800 = vunpack.c.l.b16 %v3226
    %v3801 = vunpack.c.h.b16 %v3226
    %v3802 = vunpack.c.l.b16 %v3227
    %v3803 = vunpack.c.h.b16 %v3227
    %v3804 = vunpack.c.l.b16 %v3228
    %v3805 = vunpack.c.l.b16 %v3229
    %v3806 = vunpack.c.h.b16 %v3229
    %v3807 = vunpack.c.l.b16 %v3230
    %v3808 = vunpack.c.h.b16 %v3230
    %v3809 = vunpack.c.l.b16 %v3231
    %v3810 = vunpack.c.h.b16 %v3231
    %v3811 = vunpack.c.l.b16 %v3232
    %v3812 = vunpack.c.l.b16 %v3233
    %v3813 = vunpack.c.h.b16 %v3233
    %v3814 = vunpack.c.l.b16 %v3234
    %v3815 = vunpack.c.h.b16 %v3234
    %v3816 = vunpack.c.l.b16 %v3235
    %v3817 = vunpack.c.h.b16 %v3235
    %v3818 = vunpack.c.l.b16 %v3236
    %v3819 = vunpack.c.l.b16 %v3237
    %v3820 = vunpack.c.h.b16 %v3237
    %v3821 = vunpack.c.l.b16 %v3238
    %v3822 = vunpack.c.h.b16 %v3238
    %v3823 = vunpack.c.l.b16 %v3239
    %v3824 = vunpack.c.h.b16 %v3239
    %v3825 = vunpack.c.l.b16 %v3240
    %v3826 = vunpack.c.l.b16 %v3241
    %v3827 = vunpack.c.h.b16 %v3241
    %v3828 = vunpack.c.l.b16 %v3242
    %v3829 = vunpack.c.h.b16 %v3242
    %v3830 = vunpack.c.l.b16 %v3243
    %v3831 = vunpack.c.h.b16 %v3243
    %v3832 = vunpack.c.l.b16 %v3244
    %v3833 = vunpack.c.l.b16 %v3245
    %v3834 = vunpack.c.h.b16 %v3245
    %v3835 = vunpack.c.l.b16 %v3246
    %v3836 = vunpack.c.h.b16 %v3246
    %v3837 = vunpack.c.l.b16 %v3247
    %v3838 = vunpack.c.h.b16 %v3247
    %v3839 = vunpack.c.l.b16 %v3248
    %v3840 = vunpack.c.l.b16 %v3249
    %v3841 = vunpack.c.h.b16 %v3249
    %v3842 = vunpack.c.l.b16 %v3250
    %v3843 = vunpack.c.h.b16 %v3250
    %v3844 = vunpack.c.l.b16 %v3251
    %v3845 = vunpack.c.h.b16 %v3251
    %v3846 = vunpack.c.l.b16 %v3252
    %v3847 = vunpack.c.l.b16 %v3253
    %v3848 = vunpack.c.h.b16 %v3253
    %v3849 = vunpack.c.l.b16 %v3254
    %v3850 = vunpack.c.h.b16 %v3254
    %v3851 = vunpack.c.l.b16 %v3255
    %v3852 = vunpack.c.h.b16 %v3255
    %v3853 = vunpack.c.l.b16 %v3256
    %v3854 = vunpack.c.l.b16 %v3257
    %v3855 = vunpack.c.h.b16 %v3257
    %v3856 = vunpack.c.l.b16 %v3258
    %v3857 = vunpack.c.h.b16 %v3258
    %v3858 = vunpack.c.l.b16 %v3259
    %v3859 = vunpack.c.h.b16 %v3259
    %v3860 = vunpack.c.l.b16 %v3260
    %v3861 = vunpack.c.l.b16 %v3261
    %v3862 = vunpack.c.h.b16 %v3261
    %v3863 = vunpack.c.l.b16 %v3262
    %v3864 = vunpack.c.h.b16 %v3262
    %v3865 = vunpack.c.l.b16 %v3263
    %v3866 = vunpack.c.h.b16 %v3263
    %v3867 = vunpack.c.l.b16 %v3264
    %v3868 = vunpack.c.l.b16 %v3265
    %v3869 = vunpack.c.h.b16 %v3265
    %v3870 = vunpack.c.l.b16 %v3266
    %v3871 = vunpack.c.h.b16 %v3266
    %v3872 = vunpack.c.l.b16 %v3267
    %v3873 = vunpack.c.h.b16 %v3267
    %v3874 = vunpack.c.l.b16 %v3268
    %v3875 = vunpack.c.l.b16 %v3269
    %v3876 = vunpack.c.h.b16 %v3269
    %v3877 = vunpack.c.l.b16 %v3270
    %v3878 = vunpack.c.h.b16 %v3270
    %v3879 = vunpack.c.l.b16 %v3271
    %v3880 = vunpack.c.h.b16 %v3271
    %v3881 = vunpack.c.l.b16 %v3272
    %v3882 = vunpack.c.l.b16 %v3273
    %v3883 = vunpack.c.h.b16 %v3273
    %v3884 = vunpack.c.l.b16 %v3274
    %v3885 = vunpack.c.h.b16 %v3274
    %v3886 = vunpack.c.l.b16 %v3275
    %v3887 = vunpack.c.h.b16 %v3275
    %v3888 = vunpack.c.l.b16 %v3276
    %v3889 = vunpack.c.l.b16 %v3277
    %v3890 = vunpack.c.h.b16 %v3277
    %v3891 = vunpack.c.l.b16 %v3278
    %v3892 = vunpack.c.h.b16 %v3278
    %v3893 = vunpack.c.l.b16 %v3279
    %v3894 = vunpack.c.h.b16 %v3279
    %v3895 = vunpack.c.l.b16 %v3280
    %v3896 = vunpack.c.l.b16 %v3281
    %v3897 = vunpack.c.h.b16 %v3281
    %v3898 = vunpack.c.l.b16 %v3282
    %v3899 = vunpack.c.h.b16 %v3282
    %v3900 = vunpack.c.l.b16 %v3283
    %v3901 = vunpack.c.h.b16 %v3283
    %v3902 = vunpack.c.l.b16 %v3284
    %v3903 = vunpack.c.l.b16 %v3285
    %v3904 = vunpack.c.h.b16 %v3285
    %v3905 = vunpack.c.l.b16 %v3286
    %v3906 = vunpack.c.h.b16 %v3286
    %v3907 = vunpack.c.l.b16 %v3287
    %v3908 = vunpack.c.h.b16 %v3287
    %v3909 = vunpack.c.l.b16 %v3288
    %v3910 = vunpack.c.l.b16 %v3289
    %v3911 = vunpack.c.h.b16 %v3289
    %v3912 = vunpack.c.l.b16 %v3290
    %v3913 = vunpack.c.h.b16 %v3290
    %v3914 = vunpack.c.l.b16 %v3291
    %v3915 = vunpack.c.h.b16 %v3291
    %v3916 = vunpack.c.l.b16 %v3292
    %v3917 = vunpack.c.l.b16 %v3293
    %v3918 = vunpack.c.h.b16 %v3293
    %v3919 = vunpack.c.l.b16 %v3294
    %v3920 = vunpack.c.h.b16 %v3294
    %v3921 = vunpack.c.l.b16 %v3295
    %v3922 = vunpack.c.h.b16 %v3295
    %v3923 = vunpack.c.l.b16 %v3296
    %v3924 = vunpack.c.l.b16 %v3297
    %v3925 = vunpack.c.h.b16 %v3297
    %v3926 = vunpack.c.l.b16 %v3298
    %v3927 = vunpack.c.h.b16 %v3298
    %v3928 = vunpack.c.l.b16 %v3299
    %v3929 = vunpack.c.h.b16 %v3299
    %v3930 = vunpack.c.l.b16 %v3300
    %v3931 = vunpack.c.l.b16 %v3301
    %v3932 = vunpack.c.h.b16 %v3301
    %v3933 = vunpack.c.l.b16 %v3302
    %v3934 = vunpack.c.h.b16 %v3302
    %v3935 = vunpack.c.l.b16 %v3303
    %v3936 = vunpack.c.h.b16 %v3303
    %v3937 = vunpack.c.l.b16 %v3304
    %v3938 = vunpack.c.l.b16 %v3305
    %v3939 = vunpack.c.h.b16 %v3305
    %v3940 = vunpack.c.l.b16 %v3306
    %v3941 = vunpack.c.h.b16 %v3306
    %v3942 = vunpack.c.l.b16 %v3307
    %v3943 = vunpack.c.h.b16 %v3307
    %v3944 = vunpack.c.l.b16 %v3308
    %v3945 = vunpack.c.l.b16 %v3309
    %v3946 = vunpack.c.h.b16 %v3309
    %v3947 = vunpack.c.l.b16 %v3310
    %v3948 = vunpack.c.h.b16 %v3310
    %v3949 = vunpack.c.l.b16 %v3311
    %v3950 = vunpack.c.h.b16 %v3311
    %v3951 = vunpack.c.l.b16 %v3312
    %v3952 = vunpack.c.l.b16 %v3313
    %v3953 = vunpack.c.h.b16 %v3313
    %v3954 = vunpack.c.l.b16 %v3314
    %v3955 = vunpack.c.h.b16 %v3314
    %v3956 = vunpack.c.l.b16 %v3315
    %v3957 = vunpack.c.h.b16 %v3315
    %v3958 = vunpack.c.l.b16 %v3316
    %v3959 = vunpack.c.l.b16 %v3317
    %v3960 = vunpack.c.h.b16 %v3317
    %v3961 = vunpack.c.l.b16 %v3318
    %v3962 = vunpack.c.h.b16 %v3318
    %v3963 = vunpack.c.l.b16 %v3319
    %v3964 = vunpack.c.h.b16 %v3319
    %v3965 = vunpack.c.l.b16 %v3320
    %v3966 = vunpack.c.l.b16 %v3321
    %v3967 = vunpack.c.h.b16 %v3321
    %v3968 = vunpack.c.l.b16 %v3322
    %v3969 = vunpack.c.h.b16 %v3322
    %v3970 = vunpack.c.l.b16 %v3323
    %v3971 = vunpack.c.h.b16 %v3323
    %v3972 = vunpack.c.l.b16 %v3324
    %v3973 = vunpack.c.l.b16 %v3325
    %v3974 = vunpack.c.h.b16 %v3325
    %v3975 = vunpack.c.l.b16 %v3326
    %v3976 = vunpack.c.h.b16 %v3326
    %v3977 = vunpack.c.l.b16 %v3327
    %v3978 = vunpack.c.h.b16 %v3327
    %v3979 = vunpack.c.l.b16 %v3328
    %v3980 = vunpack.c.l.b16 %v3329
    %v3981 = vunpack.c.h.b16 %v3329
    %v3982 = vunpack.c.l.b16 %v3330
    %v3983 = vunpack.c.h.b16 %v3330
    %v3984 = vunpack.c.l.b16 %v3331
    %v3985 = vunpack.c.h.b16 %v3331
    %v3986 = vunpack.c.l.b16 %v3332
    %v3987 = vunpack.c.l.b16 %v3333
    %v3988 = vunpack.c.h.b16 %v3333
    %v3989 = vunpack.c.l.b16 %v3334
    %v3990 = vunpack.c.h.b16 %v3334
    %v3991 = vunpack.c.l.b16 %v3335
    %v3992 = vunpack.c.h.b16 %v3335
    %v3993 = vunpack.c.l.b16 %v3336
    %v3994 = vunpack.c.l.b16 %v3337
    %v3995 = vunpack.c.h.b16 %v3337
    %v3996 = vunpack.c.l.b16 %v3338
    %v3997 = vunpack.c.h.b16 %v3338
    %v3998 = vunpack.c.l.b16 %v3339
    %v3999 = vunpack.c.h.b16 %v3339
    %v4000 = vunpack.c.l.b16 %v3340
    %v4001 = vunpack.c.l.b16 %v3341
    %v4002 = vunpack.c.h.b16 %v3341
    %v4003 = vunpack.c.l.b16 %v3342
    %v4004 = vunpack.c.h.b16 %v3342
    %v4005 = vunpack.c.l.b16 %v3343
    %v4006 = vunpack.c.h.b16 %v3343
    %v4007 = vunpack.c.l.b16 %v3344
    %v4008 = vunpack.c.l.b16 %v3345
    %v4009 = vunpack.c.h.b16 %v3345
    %v4010 = vunpack.c.l.b16 %v3346
    %v4011 = vunpack.c.h.b16 %v3346
    %v4012 = vunpack.c.l.b16 %v3347
    %v4013 = vunpack.c.h.b16 %v3347
    %v4014 = vunpack.c.l.b16 %v3348
    %v4015 = vunpack.c.l.b16 %v3349
    %v4016 = vunpack.c.h.b16 %v3349
    %v4017 = vunpack.c.l.b16 %v3350
    %v4018 = vunpack.c.h.b16 %v3350
    %v4019 = vunpack.c.l.b16 %v3351
    %v4020 = vunpack.c.h.b16 %v3351
    %v4021 = vunpack.c.l.b16 %v3352
    %v4022 = vunpack.c.l.b16 %v3353
    %v4023 = vunpack.c.h.b16 %v3353
    %v4024 = vunpack.c.l.b16 %v3354
    %v4025 = vunpack.c.h.b16 %v3354
    %v4026 = vunpack.c.l.b16 %v3355
    %v4027 = vunpack.c.h.b16 %v3355
    %v4028 = vunpack.c.l.b16 %v3356
    %v4029 = vunpack.c.l.b16 %v3357
    %v4030 = vunpack.c.h.b16 %v3357
    %v4031 = vunpack.c.l.b16 %v3358
    %v4032 = vunpack.c.h.b16 %v3358
    %v4033 = vunpack.c.l.b16 %v3359
    %v4034 = vunpack.c.h.b16 %v3359
    %v4035 = vunpack.c.l.b16 %v3360
    %v4036 = vunpack.c.l.b16 %v3361
    %v4037 = vunpack.c.h.b16 %v3361
    %v4038 = vunpack.c.l.b16 %v3362
    %v4039 = vunpack.c.h.b16 %v3362
    %v4040 = vunpack.c.l.b16 %v3363
    %v4041 = vunpack.c.h.b16 %v3363
    %v4042 = vunpack.c.l.b16 %v3364
    %v4043 = vunpack.c.l.b16 %v3365
    %v4044 = vunpack.c.h.b16 %v3365
    %v4045 = vunpack.c.l.b16 %v3366
    %v4046 = vunpack.c.h.b16 %v3366
    %v4047 = vunpack.c.l.b16 %v3367
    %v4048 = vunpack.c.h.b16 %v3367
    %v4049 = vunpack.c.l.b16 %v3368
    %v4050 = vunpack.c.l.b16 %v3369
    %v4051 = vunpack.c.h.b16 %v3369
    %v4052 = vunpack.c.l.b16 %v3370
    %v4053 = vunpack.c.h.b16 %v3370
    %v4054 = vunpack.c.l.b16 %v3371
    %v4055 = vunpack.c.h.b16 %v3371
    %v4056 = vunpack.c.l.b16 %v3372
    %v4057 = vunpack.c.l.b16 %v3373
    %v4058 = vunpack.c.h.b16 %v3373
    %v4059 = vunpack.c.l.b16 %v3374
    %v4060 = vunpack.c.h.b16 %v3374
    %v4061 = vunpack.c.l.b16 %v3375
    %v4062 = vunpack.c.h.b16 %v3375
    %v4063 = vunpack.c.l.b16 %v3376
    %v4064 = vunpack.c.l.b16 %v3377
    %v4065 = vunpack.c.h.b16 %v3377
    %v4066 = vunpack.c.l.b16 %v3378
    %v4067 = vunpack.c.h.b16 %v3378
    %v4068 = vunpack.c.l.b16 %v3379
    %v4069 = vunpack.c.h.b16 %v3379
    %v4070 = vunpack.c.l.b16 %v3380
    %v4071 = vunpack.c.l.b16 %v3381
    %v4072 = vunpack.c.h.b16 %v3381
    %v4073 = vunpack.c.l.b16 %v3382
    %v4074 = vunpack.c.h.b16 %v3382
    %v4075 = vunpack.c.l.b16 %v3383
    %v4076 = vunpack.c.h.b16 %v3383
    %v4077 = vunpack.c.l.b16 %v3384
    %v4078 = vunpack.c.l.b16 %v3385
    %v4079 = vunpack.c.h.b16 %v3385
    %v4080 = vunpack.c.l.b16 %v3386
    %v4081 = vunpack.c.h.b16 %v3386
    %v4082 = vunpack.c.l.b16 %v3387
    %v4083 = vunpack.c.h.b16 %v3387
    %v4084 = vunpack.c.l.b16 %v3388
    %v4085 = vunpack.c.l.b16 %v3389
    %v4086 = vunpack.c.h.b16 %v3389
    %v4087 = vunpack.c.l.b16 %v3390
    %v4088 = vunpack.c.h.b16 %v3390
    %v4089 = vunpack.c.l.b16 %v3391
    %v4090 = vunpack.c.h.b16 %v3391
    %v4091 = vunpack.c.l.b16 %v3392
    %v4092 = vunpack.c.l.b16 %v3393
    %v4093 = vunpack.c.h.b16 %v3393
    %v4094 = vunpack.c.l.b16 %v3394
    %v4095 = vunpack.c.h.b16 %v3394
    %v4096 = vunpack.c.l.b16 %v3395
    %v4097 = vunpack.c.h.b16 %v3395
    %v4098 = vunpack.c.l.b16 %v3396
    %v4099 = vunpack.c.l.b16 %v3397
    %v4100 = vunpack.c.h.b16 %v3397
    %v4101 = vunpack.c.l.b16 %v3398
    %v4102 = vunpack.c.h.b16 %v3398
    %v4103 = vunpack.c.l.b16 %v3399
    %v4104 = vunpack.c.h.b16 %v3399
    %v4105 = vunpack.c.l.b16 %v3400
    %v4106 = vunpack.c.l.b16 %v3401
    %v4107 = vunpack.c.h.b16 %v3401
    %v4108 = vunpack.c.l.b16 %v3402
    %v4109 = vunpack.c.h.b16 %v3402
    %v4110 = vunpack.c.l.b16 %v3403
    %v4111 = vunpack.c.h.b16 %v3403
    %v4112 = vunpack.c.l.b16 %v3404
    %v4113 = vunpack.c.l.b16 %v3405
    %v4114 = vunpack.c.h.b16 %v3405
    %v4115 = vunpack.c.l.b16 %v3406
    %v4116 = vunpack.c.h.b16 %v3406
    %v4117 = vunpack.c.l.b16 %v3407
    %v4118 = vunpack.c.h.b16 %v3407
    %v4119 = vunpack.c.l.b16 %v3408
    %v4120 = vunpack.c.l.b16 %v3409
    %v4121 = vunpack.c.h.b16 %v3409
    %v4122 = vunpack.c.l.b16 %v3410
    %v4123 = vunpack.c.h.b16 %v3410
    %v4124 = vunpack.c.l.b16 %v3411
    %v4125 = vunpack.c.h.b16 %v3411
    %v4126 = vunpack.c.l.b16 %v3412
    %v4127 = vunpack.c.l.b16 %v3413
    %v4128 = vunpack.c.h.b16 %v3413
    %v4129 = vunpack.c.l.b16 %v3414
    %v4130 = vunpack.c.h.b16 %v3414
    %v4131 = vunpack.c.l.b16 %v3415
    %v4132 = vunpack.c.h.b16 %v3415
    %v4133 = vunpack.c.l.b16 %v3416
    %v4134 = vunpack.c.l.b16 %v3417
    %v4135 = vunpack.c.h.b16 %v3417
    %v4136 = vunpack.c.l.b16 %v3418
    %v4137 = vunpack.c.h.b16 %v3418
    %v4138 = vunpack.c.l.b16 %v3419
    %v4139 = vunpack.c.h.b16 %v3419
    %v4140 = vunpack.c.l.b16 %v3420
    %v4141 = vpack.c.b16 %v3700, %v3693
    %v4142 = vpack.c.b16 %v3701, %v3694
    %v4143 = vpack.c.b16 %v3702, %v3695
    %v4144 = vpack.c.b16 %v3703, %v3696
    %v4145 = vpack.c.b16 %v3704, %v3697
    %v4146 = vpack.c.b16 %v3705, %v3698
    %v4147 = vpack.c.b16 %v3706, %v3699
    %v4148 = vpack.c.b16 %v3714, %v3707
    %v4149 = vpack.c.b16 %v3715, %v3708
    %v4150 = vpack.c.b16 %v3716, %v3709
    %v4151 = vpack.c.b16 %v3717, %v3710
    %v4152 = vpack.c.b16 %v3718, %v3711
    %v4153 = vpack.c.b16 %v3719, %v3712
    %v4154 = vpack.c.b16 %v3720, %v3713
    %v4155 = vpack.c.b16 %v3728, %v3721
    %v4156 = vpack.c.b16 %v3729, %v3722
    %v4157 = vpack.c.b16 %v3730, %v3723
    %v4158 = vpack.c.b16 %v3731, %v3724
    %v4159 = vpack.c.b16 %v3732, %v3725
    %v4160 = vpack.c.b16 %v3733, %v3726
    %v4161 = vpack.c.b16 %v3734, %v3727
    %v4162 = vpack.c.b16 %v3742, %v3735
    %v4163 = vpack.c.b16 %v3743, %v3736
    %v4164 = vpack.c.b16 %v3744, %v3737
    %v4165 = vpack.c.b16 %v3745, %v3738
    %v4166 = vpack.c.b16 %v3746, %v3739
    %v4167 = vpack.c.b16 %v3747, %v3740
    %v4168 = vpack.c.b16 %v3748, %v3741
    %v4169 = vpack.c.b16 %v3756, %v3749
    %v4170 = vpack.c.b16 %v3757, %v3750
    %v4171 = vpack.c.b16 %v3758, %v3751
    %v4172 = vpack.c.b16 %v3759, %v3752
    %v4173 = vpack.c.b16 %v3760, %v3753
    %v4174 = vpack.c.b16 %v3761, %v3754
    %v4175 = vpack.c.b16 %v3762, %v3755
    %v4176 = vpack.c.b16 %v3770, %v3763
    %v4177 = vpack.c.b16 %v3771, %v3764
    %v4178 = vpack.c.b16 %v3772, %v3765
    %v4179 = vpack.c.b16 %v3773, %v3766
    %v4180 = vpack.c.b16 %v3774, %v3767
    %v4181 = vpack.c.b16 %v3775, %v3768
    %v4182 = vpack.c.b16 %v3776, %v3769
    %v4183 = vpack.c.b16 %v3784, %v3777
    %v4184 = vpack.c.b16 %v3785, %v3778
    %v4185 = vpack.c.b16 %v3786, %v3779
    %v4186 = vpack.c.b16 %v3787, %v3780
    %v4187 = vpack.c.b16 %v3788, %v3781
    %v4188 = vpack.c.b16 %v3789, %v3782
    %v4189 = vpack.c.b16 %v3790, %v3783
    %v4190 = vpack.c.b16 %v3798, %v3791
    %v4191 = vpack.c.b16 %v3799, %v3792
    %v4192 = vpack.c.b16 %v3800, %v3793
    %v4193 = vpack.c.b16 %v3801, %v3794
    %v4194 = vpack.c.b16 %v3802, %v3795
    %v4195 = vpack.c.b16 %v3803, %v3796
    %v4196 = vpack.c.b16 %v3804, %v3797
    %v4197 = vpack.c.b16 %v3812, %v3805
    %v4198 = vpack.c.b16 %v3813, %v3806
    %v4199 = vpack.c.b16 %v3814, %v3807
    %v4200 = vpack.c.b16 %v3815, %v3808
    %v4201 = vpack.c.b16 %v3816, %v3809
    %v4202 = vpack.c.b16 %v3817, %v3810
    %v4203 = vpack.c.b16 %v3818, %v3811
    %v4204 = vpack.c.b16 %v3826, %v3819
    %v4205 = vpack.c.b16 %v3827, %v3820
    %v4206 = vpack.c.b16 %v3828, %v3821
    %v4207 = vpack.c.b16 %v3829, %v3822
    %v4208 = vpack.c.b16 %v3830, %v3823
    %v4209 = vpack.c.b16 %v3831, %v3824
    %v4210 = vpack.c.b16 %v3832, %v3825
    %v4211 = vpack.c.b16 %v3840, %v3833
    %v4212 = vpack.c.b16 %v3841, %v3834
    %v4213 = vpack.c.b16 %v3842, %v3835
    %v4214 = vpack.c.b16 %v3843, %v3836
    %v4215 = vpack.c.b16 %v3844, %v3837
    %v4216 = vpack.c.b16 %v3845, %v3838
    %v4217 = vpack.c.b16 %v3846, %v3839
    %v4218 = vpack.c.b16 %v3854, %v3847
    %v4219 = vpack.c.b16 %v3855, %v3848
    %v4220 = vpack.c.b16 %v3856, %v3849
    %v4221 = vpack.c.b16 %v3857, %v3850
    %v4222 = vpack.c.b16 %v3858, %v3851
    %v4223 = vpack.c.b16 %v3859, %v3852
    %v4224 = vpack.c.b16 %v3860, %v3853
    %v4225 = vpack.c.b16 %v3868, %v3861
    %v4226 = vpack.c.b16 %v3869, %v3862
    %v4227 = vpack.c.b16 %v3870, %v3863
    %v4228 = vpack.c.b16 %v3871, %v3864
    %v4229 = vpack.c.b16 %v3872, %v3865
    %v4230 = vpack.c.b16 %v3873, %v3866
    %v4231 = vpack.c.b16 %v3874, %v3867
    %v4232 = vpack.c.b16 %v3882, %v3875
    %v4233 = vpack.c.b16 %v3883, %v3876
    %v4234 = vpack.c.b16 %v3884, %v3877
    %v4235 = vpack.c.b16 %v3885, %v3878
    %v4236 = vpack.c.b16 %v3886, %v3879
    %v4237 = vpack.c.b16 %v3887, %v3880
    %v4238 = vpack.c.b16 %v3888, %v3881
    %v4239 = vpack.c.b16 %v3896, %v3889
    %v4240 = vpack.c.b16 %v3897, %v3890
    %v4241 = vpack.c.b16 %v3898, %v3891
    %v4242 = vpack.c.b16 %v3899, %v3892
    %v4243 = vpack.c.b16 %v3900, %v3893
    %v4244 = vpack.c.b16 %v3901, %v3894
    %v4245 = vpack.c.b16 %v3902, %v3895
    %v4246 = vpack.c.b16 %v3910, %v3903
    %v4247 = vpack.c.b16 %v3911, %v3904
    %v4248 = vpack.c.b16 %v3912, %v3905
    %v4249 = vpack.c.b16 %v3913, %v3906
    %v4250 = vpack.c.b16 %v3914, %v3907
    %v4251 = vpack.c.b16 %v3915, %v3908
    %v4252 = vpack.c.b16 %v3916, %v3909
    %v4253 = vpack.c.b16 %v3924, %v3917
    %v4254 = vpack.c.b16 %v3925, %v3918
    %v4255 = vpack.c.b16 %v3926, %v3919
    %v4256 = vpack.c.b16 %v3927, %v3920
    %v4257 = vpack.c.b16 %v3928, %v3921
    %v4258 = vpack.c.b16 %v3929, %v3922
    %v4259 = vpack.c.b16 %v3930, %v3923
    %v4260 = vpack.c.b16 %v3938, %v3931
    %v4261 = vpack.c.b16 %v3939, %v3932
    %v4262 = vpack.c.b16 %v3940, %v3933
    %v4263 = vpack.c.b16 %v3941, %v3934
    %v4264 = vpack.c.b16 %v3942, %v3935
    %v4265 = vpack.c.b16 %v3943, %v3936
    %v4266 = vpack.c.b16 %v3944, %v3937
    %v4267 = vpack.c.b16 %v3952, %v3945
    %v4268 = vpack.c.b16 %v3953, %v3946
    %v4269 = vpack.c.b16 %v3954, %v3947
    %v4270 = vpack.c.b16 %v3955, %v3948
    %v4271 = vpack.c.b16 %v3956, %v3949
    %v4272 = vpack.c.b16 %v3957, %v3950
    %v4273 = vpack.c.b16 %v3958, %v3951
    %v4274 = vpack.c.b16 %v3966, %v3959
    %v4275 = vpack.c.b16 %v3967, %v3960
    %v4276 = vpack.c.b16 %v3968, %v3961
    %v4277 = vpack.c.b16 %v3969, %v3962
    %v4278 = vpack.c.b16 %v3970, %v3963
    %v4279 = vpack.c.b16 %v3971, %v3964
    %v4280 = vpack.c.b16 %v3972, %v3965
    %v4281 = vpack.c.b16 %v3980, %v3973
    %v4282 = vpack.c.b16 %v3981, %v3974
    %v4283 = vpack.c.b16 %v3982, %v3975
    %v4284 = vpack.c.b16 %v3983, %v3976
    %v4285 = vpack.c.b16 %v3984, %v3977
    %v4286 = vpack.c.b16 %v3985, %v3978
    %v4287 = vpack.c.b16 %v3986, %v3979
    %v4288 = vpack.c.b16 %v3994, %v3987
    %v4289 = vpack.c.b16 %v3995, %v3988
    %v4290 = vpack.c.b16 %v3996, %v3989
    %v4291 = vpack.c.b16 %v3997, %v3990
    %v4292 = vpack.c.b16 %v3998, %v3991
    %v4293 = vpack.c.b16 %v3999, %v3992
    %v4294 = vpack.c.b16 %v4000, %v3993
    %v4295 = vpack.c.b16 %v4008, %v4001
    %v4296 = vpack.c.b16 %v4009, %v4002
    %v4297 = vpack.c.b16 %v4010, %v4003
    %v4298 = vpack.c.b16 %v4011, %v4004
    %v4299 = vpack.c.b16 %v4012, %v4005
    %v4300 = vpack.c.b16 %v4013, %v4006
    %v4301 = vpack.c.b16 %v4014, %v4007
    %v4302 = vpack.c.b16 %v4022, %v4015
    %v4303 = vpack.c.b16 %v4023, %v4016
    %v4304 = vpack.c.b16 %v4024, %v4017
    %v4305 = vpack.c.b16 %v4025, %v4018
    %v4306 = vpack.c.b16 %v4026, %v4019
    %v4307 = vpack.c.b16 %v4027, %v4020
    %v4308 = vpack.c.b16 %v4028, %v4021
    %v4309 = vpack.c.b16 %v4036, %v4029
    %v4310 = vpack.c.b16 %v4037, %v4030
    %v4311 = vpack.c.b16 %v4038, %v4031
    %v4312 = vpack.c.b16 %v4039, %v4032
    %v4313 = vpack.c.b16 %v4040, %v4033
    %v4314 = vpack.c.b16 %v4041, %v4034
    %v4315 = vpack.c.b16 %v4042, %v4035
    %v4316 = vpack.c.b16 %v4050, %v4043
    %v4317 = vpack.c.b16 %v4051, %v4044
    %v4318 = vpack.c.b16 %v4052, %v4045
    %v4319 = vpack.c.b16 %v4053, %v4046
    %v4320 = vpack.c.b16 %v4054, %v4047
    %v4321 = vpack.c.b16 %v4055, %v4048
    %v4322 = vpack.c.b16 %v4056, %v4049
    %v4323 = vpack.c.b16 %v4064, %v4057
    %v4324 = vpack.c.b16 %v4065, %v4058
    %v4325 = vpack.c.b16 %v4066, %v4059
    %v4326 = vpack.c.b16 %v4067, %v4060
    %v4327 = vpack.c.b16 %v4068, %v4061
    %v4328 = vpack.c.b16 %v4069, %v4062
    %v4329 = vpack.c.b16 %v4070, %v4063
    %v4330 = vpack.c.b16 %v4078, %v4071
    %v4331 = vpack.c.b16 %v4079, %v4072
    %v4332 = vpack.c.b16 %v4080, %v4073
    %v4333 = vpack.c.b16 %v4081, %v4074
    %v4334 = vpack.c.b16 %v4082, %v4075
    %v4335 = vpack.c.b16 %v4083, %v4076
    %v4336 = vpack.c.b16 %v4084, %v4077
    %v4337 = vpack.c.b16 %v4092, %v4085
    %v4338 = vpack.c.b16 %v4093, %v4086
    %v4339 = vpack.c.b16 %v4094, %v4087
    %v4340 = vpack.c.b16 %v4095, %v4088
    %v4341 = vpack.c.b16 %v4096, %v4089
    %v4342 = vpack.c.b16 %v4097, %v4090
    %v4343 = vpack.c.b16 %v4098, %v4091
    %v4344 = vpack.c.b16 %v4106, %v4099
    %v4345 = vpack.c.b16 %v4107, %v4100
    %v4346 = vpack.c.b16 %v4108, %v4101
    %v4347 = vpack.c.b16 %v4109, %v4102
    %v4348 = vpack.c.b16 %v4110, %v4103
    %v4349 = vpack.c.b16 %v4111, %v4104
    %v4350 = vpack.c.b16 %v4112, %v4105
    %v4351 = vpack.c.b16 %v4120, %v4113
    %v4352 = vpack.c.b16 %v4121, %v4114
    %v4353 = vpack.c.b16 %v4122, %v4115
    %v4354 = vpack.c.b16 %v4123, %v4116
    %v4355 = vpack.c.b16 %v4124, %v4117
    %v4356 = vpack.c.b16 %v4125, %v4118
    %v4357 = vpack.c.b16 %v4126, %v4119
    %v4358 = vpack.c.b16 %v4134, %v4127
    %v4359 = vpack.c.b16 %v4135, %v4128
    %v4360 = vpack.c.b16 %v4136, %v4129
    %v4361 = vpack.c.b16 %v4137, %v4130
    %v4362 = vpack.c.b16 %v4138, %v4131
    %v4363 = vpack.c.b16 %v4139, %v4132
    %v4364 = vpack.c.b16 %v4140, %v4133
    %4589 = vmatpush.bf16.msra.mxu0 %v4190
    %4590 = vmatpush.bf16.msra.mxu0 %v4183
    %4591 = vmatpush.bf16.msra.mxu0 %v4176
    %4592 = vmatpush.bf16.msra.mxu0 %v4169
    %4593 = vmatpush.bf16.msra.mxu0 %v4162
    %4594 = vmatpush.bf16.msra.mxu0 %v4155
    %4595 = vmatpush.bf16.msra.mxu0 %v4148
    %4596 = vmatpush.bf16.msra.mxu0 %v4141
    %4597 = vmatmul.bf16.gmra.mxu0 %v3161
    %v4598 = vpop.f32.mrf.mxu0
    %v4599 = vadd.f32 %v3423, %v4598
    %v4600 = vpop.f32.mrf.mxu0
    %4601 = vdwg.mxu0
    %4602 = vmatpush.bf16.msra.mxu0 %v4246
    %4603 = vmatpush.bf16.msra.mxu0 %v4239
    %4604 = vmatpush.bf16.msra.mxu0 %v4232
    %4605 = vmatpush.bf16.msra.mxu0 %v4225
    %4606 = vmatpush.bf16.msra.mxu0 %v4218
    %4607 = vmatpush.bf16.msra.mxu0 %v4211
    %4608 = vmatpush.bf16.msra.mxu0 %v4204
    %4609 = vmatpush.bf16.msra.mxu0 %v4197
    %4610 = vmatmul.bf16.gmra.mxu0 %v3162
    %v4611 = vpop.f32.mrf.mxu0
    %v4612 = vadd.f32 %v4599, %v4611
    %v4613 = vpop.f32.mrf.mxu0
    %4614 = vdwg.mxu0
    %4615 = vmatpush.bf16.msra.mxu0 %v4302
    %4616 = vmatpush.bf16.msra.mxu0 %v4295
    %4617 = vmatpush.bf16.msra.mxu0 %v4288
    %4618 = vmatpush.bf16.msra.mxu0 %v4281
    %4619 = vmatpush.bf16.msra.mxu0 %v4274
    %4620 = vmatpush.bf16.msra.mxu0 %v4267
    %4621 = vmatpush.bf16.msra.mxu0 %v4260
    %4622 = vmatpush.bf16.msra.mxu0 %v4253
    %4623 = vmatmul.bf16.gmra.mxu0 %v3163
    %v4624 = vpop.f32.mrf.mxu0
    %v4625 = vadd.f32 %v4612, %v4624
    %v4626 = vpop.f32.mrf.mxu0
    %4627 = vdwg.mxu0
    %4628 = vmatpush.bf16.msra.mxu0 %v4358
    %4629 = vmatpush.bf16.msra.mxu0 %v4351
    %4630 = vmatpush.bf16.msra.mxu0 %v4344
    %4631 = vmatpush.bf16.msra.mxu0 %v4337
    %4632 = vmatpush.bf16.msra.mxu0 %v4330
    %4633 = vmatpush.bf16.msra.mxu0 %v4323
    %4634 = vmatpush.bf16.msra.mxu0 %v4316
    %4635 = vmatpush.bf16.msra.mxu0 %v4309
    %4636 = vmatmul.bf16.gmra.mxu0 %v3164
    %v4637 = vpop.f32.mrf.mxu0
    %v4638 = vadd.f32 %v4625, %v4637
    %v4639 = vpop.f32.mrf.mxu0
    %4640 = vdwg.mxu0
    %4641 = vmatpush.bf16.msra.mxu0 %v4191
    %4642 = vmatpush.bf16.msra.mxu0 %v4184
    %4643 = vmatpush.bf16.msra.mxu0 %v4177
    %4644 = vmatpush.bf16.msra.mxu0 %v4170
    %4645 = vmatpush.bf16.msra.mxu0 %v4163
    %4646 = vmatpush.bf16.msra.mxu0 %v4156
    %4647 = vmatpush.bf16.msra.mxu0 %v4149
    %4648 = vmatpush.bf16.msra.mxu0 %v4142
    %4649 = vmatmul.bf16.gmra.mxu0 %v3161
    %v4650 = vpop.f32.mrf.mxu0
    %v4651 = vadd.f32 %v3424, %v4650
    %v4652 = vpop.f32.mrf.mxu0
    %4653 = vdwg.mxu0
    %4654 = vmatpush.bf16.msra.mxu0 %v4247
    %4655 = vmatpush.bf16.msra.mxu0 %v4240
    %4656 = vmatpush.bf16.msra.mxu0 %v4233
    %4657 = vmatpush.bf16.msra.mxu0 %v4226
    %4658 = vmatpush.bf16.msra.mxu0 %v4219
    %4659 = vmatpush.bf16.msra.mxu0 %v4212
    %4660 = vmatpush.bf16.msra.mxu0 %v4205
    %4661 = vmatpush.bf16.msra.mxu0 %v4198
    %4662 = vmatmul.bf16.gmra.mxu0 %v3162
    %v4663 = vpop.f32.mrf.mxu0
    %v4664 = vadd.f32 %v4651, %v4663
    %v4665 = vpop.f32.mrf.mxu0
    %4666 = vdwg.mxu0
    %4667 = vmatpush.bf16.msra.mxu0 %v4303
    %4668 = vmatpush.bf16.msra.mxu0 %v4296
    %4669 = vmatpush.bf16.msra.mxu0 %v4289
    %4670 = vmatpush.bf16.msra.mxu0 %v4282
    %4671 = vmatpush.bf16.msra.mxu0 %v4275
    %4672 = vmatpush.bf16.msra.mxu0 %v4268
    %4673 = vmatpush.bf16.msra.mxu0 %v4261
    %4674 = vmatpush.bf16.msra.mxu0 %v4254
    %4675 = vmatmul.bf16.gmra.mxu0 %v3163
    %v4676 = vpop.f32.mrf.mxu0
    %v4677 = vadd.f32 %v4664, %v4676
    %v4678 = vpop.f32.mrf.mxu0
    %4679 = vdwg.mxu0
    %4680 = vmatpush.bf16.msra.mxu0 %v4359
    %4681 = vmatpush.bf16.msra.mxu0 %v4352
    %4682 = vmatpush.bf16.msra.mxu0 %v4345
    %4683 = vmatpush.bf16.msra.mxu0 %v4338
    %4684 = vmatpush.bf16.msra.mxu0 %v4331
    %4685 = vmatpush.bf16.msra.mxu0 %v4324
    %4686 = vmatpush.bf16.msra.mxu0 %v4317
    %4687 = vmatpush.bf16.msra.mxu0 %v4310
    %4688 = vmatmul.bf16.gmra.mxu0 %v3164
    %v4689 = vpop.f32.mrf.mxu0
    %v4690 = vadd.f32 %v4677, %v4689
    %v4691 = vpop.f32.mrf.mxu0
    %4692 = vdwg.mxu0
    %4693 = vmatpush.bf16.msra.mxu0 %v4192
    %4694 = vmatpush.bf16.msra.mxu0 %v4185
    %4695 = vmatpush.bf16.msra.mxu0 %v4178
    %4696 = vmatpush.bf16.msra.mxu0 %v4171
    %4697 = vmatpush.bf16.msra.mxu0 %v4164
    %4698 = vmatpush.bf16.msra.mxu0 %v4157
    %4699 = vmatpush.bf16.msra.mxu0 %v4150
    %4700 = vmatpush.bf16.msra.mxu0 %v4143
    %4701 = vmatmul.bf16.gmra.mxu0 %v3161
    %v4702 = vpop.f32.mrf.mxu0
    %v4703 = vadd.f32 %v3425, %v4702
    %v4704 = vpop.f32.mrf.mxu0
    %4705 = vdwg.mxu0
    %4706 = vmatpush.bf16.msra.mxu0 %v4248
    %4707 = vmatpush.bf16.msra.mxu0 %v4241
    %4708 = vmatpush.bf16.msra.mxu0 %v4234
    %4709 = vmatpush.bf16.msra.mxu0 %v4227
    %4710 = vmatpush.bf16.msra.mxu0 %v4220
    %4711 = vmatpush.bf16.msra.mxu0 %v4213
    %4712 = vmatpush.bf16.msra.mxu0 %v4206
    %4713 = vmatpush.bf16.msra.mxu0 %v4199
    %4714 = vmatmul.bf16.gmra.mxu0 %v3162
    %v4715 = vpop.f32.mrf.mxu0
    %v4716 = vadd.f32 %v4703, %v4715
    %v4717 = vpop.f32.mrf.mxu0
    %4718 = vdwg.mxu0
    %4719 = vmatpush.bf16.msra.mxu0 %v4304
    %4720 = vmatpush.bf16.msra.mxu0 %v4297
    %4721 = vmatpush.bf16.msra.mxu0 %v4290
    %4722 = vmatpush.bf16.msra.mxu0 %v4283
    %4723 = vmatpush.bf16.msra.mxu0 %v4276
    %4724 = vmatpush.bf16.msra.mxu0 %v4269
    %4725 = vmatpush.bf16.msra.mxu0 %v4262
    %4726 = vmatpush.bf16.msra.mxu0 %v4255
    %4727 = vmatmul.bf16.gmra.mxu0 %v3163
    %v4728 = vpop.f32.mrf.mxu0
    %v4729 = vadd.f32 %v4716, %v4728
    %v4730 = vpop.f32.mrf.mxu0
    %4731 = vdwg.mxu0
    %4732 = vmatpush.bf16.msra.mxu0 %v4360
    %4733 = vmatpush.bf16.msra.mxu0 %v4353
    %4734 = vmatpush.bf16.msra.mxu0 %v4346
    %4735 = vmatpush.bf16.msra.mxu0 %v4339
    %4736 = vmatpush.bf16.msra.mxu0 %v4332
    %4737 = vmatpush.bf16.msra.mxu0 %v4325
    %4738 = vmatpush.bf16.msra.mxu0 %v4318
    %4739 = vmatpush.bf16.msra.mxu0 %v4311
    %4740 = vmatmul.bf16.gmra.mxu0 %v3164
    %v4741 = vpop.f32.mrf.mxu0
    %v4742 = vadd.f32 %v4729, %v4741
    %v4743 = vpop.f32.mrf.mxu0
    %4744 = vdwg.mxu0
    %4745 = vmatpush.bf16.msra.mxu0 %v4193
    %4746 = vmatpush.bf16.msra.mxu0 %v4186
    %4747 = vmatpush.bf16.msra.mxu0 %v4179
    %4748 = vmatpush.bf16.msra.mxu0 %v4172
    %4749 = vmatpush.bf16.msra.mxu0 %v4165
    %4750 = vmatpush.bf16.msra.mxu0 %v4158
    %4751 = vmatpush.bf16.msra.mxu0 %v4151
    %4752 = vmatpush.bf16.msra.mxu0 %v4144
    %4753 = vmatmul.bf16.gmra.mxu0 %v3161
    %v4754 = vpop.f32.mrf.mxu0
    %v4755 = vadd.f32 %v3426, %v4754
    %v4756 = vpop.f32.mrf.mxu0
    %4757 = vdwg.mxu0
    %4758 = vmatpush.bf16.msra.mxu0 %v4249
    %4759 = vmatpush.bf16.msra.mxu0 %v4242
    %4760 = vmatpush.bf16.msra.mxu0 %v4235
    %4761 = vmatpush.bf16.msra.mxu0 %v4228
    %4762 = vmatpush.bf16.msra.mxu0 %v4221
    %4763 = vmatpush.bf16.msra.mxu0 %v4214
    %4764 = vmatpush.bf16.msra.mxu0 %v4207
    %4765 = vmatpush.bf16.msra.mxu0 %v4200
    %4766 = vmatmul.bf16.gmra.mxu0 %v3162
    %v4767 = vpop.f32.mrf.mxu0
    %v4768 = vadd.f32 %v4755, %v4767
    %v4769 = vpop.f32.mrf.mxu0
    %4770 = vdwg.mxu0
    %4771 = vmatpush.bf16.msra.mxu0 %v4305
    %4772 = vmatpush.bf16.msra.mxu0 %v4298
    %4773 = vmatpush.bf16.msra.mxu0 %v4291
    %4774 = vmatpush.bf16.msra.mxu0 %v4284
    %4775 = vmatpush.bf16.msra.mxu0 %v4277
    %4776 = vmatpush.bf16.msra.mxu0 %v4270
    %4777 = vmatpush.bf16.msra.mxu0 %v4263
    %4778 = vmatpush.bf16.msra.mxu0 %v4256
    %4779 = vmatmul.bf16.gmra.mxu0 %v3163
    %v4780 = vpop.f32.mrf.mxu0
    %v4781 = vadd.f32 %v4768, %v4780
    %v4782 = vpop.f32.mrf.mxu0
    %4783 = vdwg.mxu0
    %4784 = vmatpush.bf16.msra.mxu0 %v4361
    %4785 = vmatpush.bf16.msra.mxu0 %v4354
    %4786 = vmatpush.bf16.msra.mxu0 %v4347
    %4787 = vmatpush.bf16.msra.mxu0 %v4340
    %4788 = vmatpush.bf16.msra.mxu0 %v4333
    %4789 = vmatpush.bf16.msra.mxu0 %v4326
    %4790 = vmatpush.bf16.msra.mxu0 %v4319
    %4791 = vmatpush.bf16.msra.mxu0 %v4312
    %4792 = vmatmul.bf16.gmra.mxu0 %v3164
    %v4793 = vpop.f32.mrf.mxu0
    %v4794 = vadd.f32 %v4781, %v4793
    %v4795 = vpop.f32.mrf.mxu0
    %4796 = vdwg.mxu0
    %4797 = vmatpush.bf16.msra.mxu0 %v4194
    %4798 = vmatpush.bf16.msra.mxu0 %v4187
    %4799 = vmatpush.bf16.msra.mxu0 %v4180
    %4800 = vmatpush.bf16.msra.mxu0 %v4173
    %4801 = vmatpush.bf16.msra.mxu0 %v4166
    %4802 = vmatpush.bf16.msra.mxu0 %v4159
    %4803 = vmatpush.bf16.msra.mxu0 %v4152
    %4804 = vmatpush.bf16.msra.mxu0 %v4145
    %4805 = vmatmul.bf16.gmra.mxu0 %v3161
    %v4806 = vpop.f32.mrf.mxu0
    %v4807 = vadd.f32 %v3427, %v4806
    %v4808 = vpop.f32.mrf.mxu0
    %4809 = vdwg.mxu0
    %4810 = vmatpush.bf16.msra.mxu0 %v4250
    %4811 = vmatpush.bf16.msra.mxu0 %v4243
    %4812 = vmatpush.bf16.msra.mxu0 %v4236
    %4813 = vmatpush.bf16.msra.mxu0 %v4229
    %4814 = vmatpush.bf16.msra.mxu0 %v4222
    %4815 = vmatpush.bf16.msra.mxu0 %v4215
    %4816 = vmatpush.bf16.msra.mxu0 %v4208
    %4817 = vmatpush.bf16.msra.mxu0 %v4201
    %4818 = vmatmul.bf16.gmra.mxu0 %v3162
    %v4819 = vpop.f32.mrf.mxu0
    %v4820 = vadd.f32 %v4807, %v4819
    %v4821 = vpop.f32.mrf.mxu0
    %4822 = vdwg.mxu0
    %4823 = vmatpush.bf16.msra.mxu0 %v4306
    %4824 = vmatpush.bf16.msra.mxu0 %v4299
    %4825 = vmatpush.bf16.msra.mxu0 %v4292
    %4826 = vmatpush.bf16.msra.mxu0 %v4285
    %4827 = vmatpush.bf16.msra.mxu0 %v4278
    %4828 = vmatpush.bf16.msra.mxu0 %v4271
    %4829 = vmatpush.bf16.msra.mxu0 %v4264
    %4830 = vmatpush.bf16.msra.mxu0 %v4257
    %4831 = vmatmul.bf16.gmra.mxu0 %v3163
    %v4832 = vpop.f32.mrf.mxu0
    %v4833 = vadd.f32 %v4820, %v4832
    %v4834 = vpop.f32.mrf.mxu0
    %4835 = vdwg.mxu0
    %4836 = vmatpush.bf16.msra.mxu0 %v4362
    %4837 = vmatpush.bf16.msra.mxu0 %v4355
    %4838 = vmatpush.bf16.msra.mxu0 %v4348
    %4839 = vmatpush.bf16.msra.mxu0 %v4341
    %4840 = vmatpush.bf16.msra.mxu0 %v4334
    %4841 = vmatpush.bf16.msra.mxu0 %v4327
    %4842 = vmatpush.bf16.msra.mxu0 %v4320
    %4843 = vmatpush.bf16.msra.mxu0 %v4313
    %4844 = vmatmul.bf16.gmra.mxu0 %v3164
    %v4845 = vpop.f32.mrf.mxu0
    %v4846 = vadd.f32 %v4833, %v4845
    %v4847 = vpop.f32.mrf.mxu0
    %4848 = vdwg.mxu0
    %4849 = vmatpush.bf16.msra.mxu0 %v4195
    %4850 = vmatpush.bf16.msra.mxu0 %v4188
    %4851 = vmatpush.bf16.msra.mxu0 %v4181
    %4852 = vmatpush.bf16.msra.mxu0 %v4174
    %4853 = vmatpush.bf16.msra.mxu0 %v4167
    %4854 = vmatpush.bf16.msra.mxu0 %v4160
    %4855 = vmatpush.bf16.msra.mxu0 %v4153
    %4856 = vmatpush.bf16.msra.mxu0 %v4146
    %4857 = vmatmul.bf16.gmra.mxu0 %v3161
    %v4858 = vpop.f32.mrf.mxu0
    %v4859 = vadd.f32 %v3428, %v4858
    %v4860 = vpop.f32.mrf.mxu0
    %4861 = vdwg.mxu0
    %4862 = vmatpush.bf16.msra.mxu0 %v4251
    %4863 = vmatpush.bf16.msra.mxu0 %v4244
    %4864 = vmatpush.bf16.msra.mxu0 %v4237
    %4865 = vmatpush.bf16.msra.mxu0 %v4230
    %4866 = vmatpush.bf16.msra.mxu0 %v4223
    %4867 = vmatpush.bf16.msra.mxu0 %v4216
    %4868 = vmatpush.bf16.msra.mxu0 %v4209
    %4869 = vmatpush.bf16.msra.mxu0 %v4202
    %4870 = vmatmul.bf16.gmra.mxu0 %v3162
    %v4871 = vpop.f32.mrf.mxu0
    %v4872 = vadd.f32 %v4859, %v4871
    %v4873 = vpop.f32.mrf.mxu0
    %4874 = vdwg.mxu0
    %4875 = vmatpush.bf16.msra.mxu0 %v4307
    %4876 = vmatpush.bf16.msra.mxu0 %v4300
    %4877 = vmatpush.bf16.msra.mxu0 %v4293
    %4878 = vmatpush.bf16.msra.mxu0 %v4286
    %4879 = vmatpush.bf16.msra.mxu0 %v4279
    %4880 = vmatpush.bf16.msra.mxu0 %v4272
    %4881 = vmatpush.bf16.msra.mxu0 %v4265
    %4882 = vmatpush.bf16.msra.mxu0 %v4258
    %4883 = vmatmul.bf16.gmra.mxu0 %v3163
    %v4884 = vpop.f32.mrf.mxu0
    %v4885 = vadd.f32 %v4872, %v4884
    %v4886 = vpop.f32.mrf.mxu0
    %4887 = vdwg.mxu0
    %4888 = vmatpush.bf16.msra.mxu0 %v4363
    %4889 = vmatpush.bf16.msra.mxu0 %v4356
    %4890 = vmatpush.bf16.msra.mxu0 %v4349
    %4891 = vmatpush.bf16.msra.mxu0 %v4342
    %4892 = vmatpush.bf16.msra.mxu0 %v4335
    %4893 = vmatpush.bf16.msra.mxu0 %v4328
    %4894 = vmatpush.bf16.msra.mxu0 %v4321
    %4895 = vmatpush.bf16.msra.mxu0 %v4314
    %4896 = vmatmul.bf16.gmra.mxu0 %v3164
    %v4897 = vpop.f32.mrf.mxu0
    %v4898 = vadd.f32 %v4885, %v4897
    %v4899 = vpop.f32.mrf.mxu0
    %4900 = vdwg.mxu0
    %4901 = vmatpush.bf16.msra.mxu0 %v4196
    %4902 = vmatpush.bf16.msra.mxu0 %v4189
    %4903 = vmatpush.bf16.msra.mxu0 %v4182
    %4904 = vmatpush.bf16.msra.mxu0 %v4175
    %4905 = vmatpush.bf16.msra.mxu0 %v4168
    %4906 = vmatpush.bf16.msra.mxu0 %v4161
    %4907 = vmatpush.bf16.msra.mxu0 %v4154
    %4908 = vmatpush.bf16.msra.mxu0 %v4147
    %4909 = vmatmul.bf16.gmra.mxu0 %v3161
    %v4910 = vpop.f32.mrf.mxu0
    %v4911 = vadd.f32 %v3429, %v4910
    %v4912 = vpop.f32.mrf.mxu0
    %4913 = vdwg.mxu0
    %4914 = vmatpush.bf16.msra.mxu0 %v4252
    %4915 = vmatpush.bf16.msra.mxu0 %v4245
    %4916 = vmatpush.bf16.msra.mxu0 %v4238
    %4917 = vmatpush.bf16.msra.mxu0 %v4231
    %4918 = vmatpush.bf16.msra.mxu0 %v4224
    %4919 = vmatpush.bf16.msra.mxu0 %v4217
    %4920 = vmatpush.bf16.msra.mxu0 %v4210
    %4921 = vmatpush.bf16.msra.mxu0 %v4203
    %4922 = vmatmul.bf16.gmra.mxu0 %v3162
    %v4923 = vpop.f32.mrf.mxu0
    %v4924 = vadd.f32 %v4911, %v4923
    %v4925 = vpop.f32.mrf.mxu0
    %4926 = vdwg.mxu0
    %4927 = vmatpush.bf16.msra.mxu0 %v4308
    %4928 = vmatpush.bf16.msra.mxu0 %v4301
    %4929 = vmatpush.bf16.msra.mxu0 %v4294
    %4930 = vmatpush.bf16.msra.mxu0 %v4287
    %4931 = vmatpush.bf16.msra.mxu0 %v4280
    %4932 = vmatpush.bf16.msra.mxu0 %v4273
    %4933 = vmatpush.bf16.msra.mxu0 %v4266
    %4934 = vmatpush.bf16.msra.mxu0 %v4259
    %4935 = vmatmul.bf16.gmra.mxu0 %v3163
    %v4936 = vpop.f32.mrf.mxu0
    %v4937 = vadd.f32 %v4924, %v4936
    %v4938 = vpop.f32.mrf.mxu0
    %4939 = vdwg.mxu0
    %4940 = vmatpush.bf16.msra.mxu0 %v4364
    %4941 = vmatpush.bf16.msra.mxu0 %v4357
    %4942 = vmatpush.bf16.msra.mxu0 %v4350
    %4943 = vmatpush.bf16.msra.mxu0 %v4343
    %4944 = vmatpush.bf16.msra.mxu0 %v4336
    %4945 = vmatpush.bf16.msra.mxu0 %v4329
    %4946 = vmatpush.bf16.msra.mxu0 %v4322
    %4947 = vmatpush.bf16.msra.mxu0 %v4315
    %4948 = vmatmul.bf16.gmra.mxu0 %v3164
    %v4949 = vpop.f32.mrf.mxu0
    %v4950 = vadd.f32 %v4937, %v4949
    %v4951 = vpop.f32.mrf.mxu0
    %4952 = vdwg.mxu0
    %v4953 = vxor.u32 %v4638, 2147483648
    %v4954 = vxor.u32 %v4690, 2147483648
    %v4955 = vxor.u32 %v4742, 2147483648
    %v4956 = vxor.u32 %v4794, 2147483648
    %v4957 = vxor.u32 %v4846, 2147483648
    %v4958 = vxor.u32 %v4898, 2147483648
    %v4959 = vxor.u32 %v4950, 2147483648
    %v4960 = vmul.f32 %v4953, 1.442695
    %v4961 = vpow.pop %v4960
    %v4962 = vmul.f32 %v4954, 1.442695
    %v4963 = vpow.pop %v4962
    %v4964 = vmul.f32 %v4955, 1.442695
    %v4965 = vpow.pop %v4964
    %v4966 = vmul.f32 %v4956, 1.442695
    %v4967 = vpow.pop %v4966
    %v4968 = vmul.f32 %v4957, 1.442695
    %v4969 = vpow.pop %v4968
    %v4970 = vmul.f32 %v4958, 1.442695
    %v4971 = vpow.pop %v4970
    %v4972 = vmul.f32 %v4959, 1.442695
    %v4973 = vpow.pop %v4972
    %v4974 = vadd.f32 %v4961, 1.0
    %v4975 = vadd.f32 %v4963, 1.0
    %v4976 = vadd.f32 %v4965, 1.0
    %v4977 = vadd.f32 %v4967, 1.0
    %v4978 = vadd.f32 %v4969, 1.0
    %v4979 = vadd.f32 %v4971, 1.0
    %v4980 = vadd.f32 %v4973, 1.0
    %v4981 = vrcp.pop %v4974
    %v4982 = vmul.f32 %v4974, %v4981
    %v4983 = vsub.f32 1.0, %v4982
    %v4984 = vmul.f32 %v4981, %v4983
    %v4985 = vadd.f32 %v4981, %v4984
    %vm4986 = vweird.f32 %v4974
    %vm4987 = vweird.f32 %v4981
    %vm4988 = vmor %vm4986, %vm4987
    %v4989 = vsel %vm4988, %v4981, %v4985
    %v4990 = vand.u32 2147483647, %v4974
    %vm4991 = vcmp.eq.f32.partialorder %v4990, 8.507059e+37
    %v4992 = vand.u32 %v4974, 2147483648
    %v4993 = vor.u32 1.1754944e-38, %v4992
    %v4994 = vsel %vm4991, %v4993, %v4989
    %v4995 = vmul.f32 1.0, %v4994
    %v4996 = vrcp.pop %v4975
    %v4997 = vmul.f32 %v4975, %v4996
    %v4998 = vsub.f32 1.0, %v4997
    %v4999 = vmul.f32 %v4996, %v4998
    %v5000 = vadd.f32 %v4996, %v4999
    %vm5001 = vweird.f32 %v4975
    %vm5002 = vweird.f32 %v4996
    %vm5003 = vmor %vm5001, %vm5002
    %v5004 = vsel %vm5003, %v4996, %v5000
    %v5005 = vand.u32 2147483647, %v4975
    %vm5006 = vcmp.eq.f32.partialorder %v5005, 8.507059e+37
    %v5007 = vand.u32 %v4975, 2147483648
    %v5008 = vor.u32 1.1754944e-38, %v5007
    %v5009 = vsel %vm5006, %v5008, %v5004
    %v5010 = vmul.f32 1.0, %v5009
    %v5011 = vrcp.pop %v4976
    %v5012 = vmul.f32 %v4976, %v5011
    %v5013 = vsub.f32 1.0, %v5012
    %v5014 = vmul.f32 %v5011, %v5013
    %v5015 = vadd.f32 %v5011, %v5014
    %vm5016 = vweird.f32 %v4976
    %vm5017 = vweird.f32 %v5011
    %vm5018 = vmor %vm5016, %vm5017
    %v5019 = vsel %vm5018, %v5011, %v5015
    %v5020 = vand.u32 2147483647, %v4976
    %vm5021 = vcmp.eq.f32.partialorder %v5020, 8.507059e+37
    %v5022 = vand.u32 %v4976, 2147483648
    %v5023 = vor.u32 1.1754944e-38, %v5022
    %v5024 = vsel %vm5021, %v5023, %v5019
    %v5025 = vmul.f32 1.0, %v5024
    %v5026 = vrcp.pop %v4977
    %v5027 = vmul.f32 %v4977, %v5026
    %v5028 = vsub.f32 1.0, %v5027
    %v5029 = vmul.f32 %v5026, %v5028
    %v5030 = vadd.f32 %v5026, %v5029
    %vm5031 = vweird.f32 %v4977
    %vm5032 = vweird.f32 %v5026
    %vm5033 = vmor %vm5031, %vm5032
    %v5034 = vsel %vm5033, %v5026, %v5030
    %v5035 = vand.u32 2147483647, %v4977
    %vm5036 = vcmp.eq.f32.partialorder %v5035, 8.507059e+37
    %v5037 = vand.u32 %v4977, 2147483648
    %v5038 = vor.u32 1.1754944e-38, %v5037
    %v5039 = vsel %vm5036, %v5038, %v5034
    %v5040 = vmul.f32 1.0, %v5039
    %v5041 = vrcp.pop %v4978
    %v5042 = vmul.f32 %v4978, %v5041
    %v5043 = vsub.f32 1.0, %v5042
    %v5044 = vmul.f32 %v5041, %v5043
    %v5045 = vadd.f32 %v5041, %v5044
    %vm5046 = vweird.f32 %v4978
    %vm5047 = vweird.f32 %v5041
    %vm5048 = vmor %vm5046, %vm5047
    %v5049 = vsel %vm5048, %v5041, %v5045
    %v5050 = vand.u32 2147483647, %v4978
    %vm5051 = vcmp.eq.f32.partialorder %v5050, 8.507059e+37
    %v5052 = vand.u32 %v4978, 2147483648
    %v5053 = vor.u32 1.1754944e-38, %v5052
    %v5054 = vsel %vm5051, %v5053, %v5049
    %v5055 = vmul.f32 1.0, %v5054
    %v5056 = vrcp.pop %v4979
    %v5057 = vmul.f32 %v4979, %v5056
    %v5058 = vsub.f32 1.0, %v5057
    %v5059 = vmul.f32 %v5056, %v5058
    %v5060 = vadd.f32 %v5056, %v5059
    %vm5061 = vweird.f32 %v4979
    %vm5062 = vweird.f32 %v5056
    %vm5063 = vmor %vm5061, %vm5062
    %v5064 = vsel %vm5063, %v5056, %v5060
    %v5065 = vand.u32 2147483647, %v4979
    %vm5066 = vcmp.eq.f32.partialorder %v5065, 8.507059e+37
    %v5067 = vand.u32 %v4979, 2147483648
    %v5068 = vor.u32 1.1754944e-38, %v5067
    %v5069 = vsel %vm5066, %v5068, %v5064
    %v5070 = vmul.f32 1.0, %v5069
    %v5071 = vrcp.pop %v4980
    %v5072 = vmul.f32 %v4980, %v5071
    %v5073 = vsub.f32 1.0, %v5072
    %v5074 = vmul.f32 %v5071, %v5073
    %v5075 = vadd.f32 %v5071, %v5074
    %vm5076 = vweird.f32 %v4980
    %vm5077 = vweird.f32 %v5071
    %vm5078 = vmor %vm5076, %vm5077
    %v5079 = vsel %vm5078, %v5071, %v5075
    %v5080 = vand.u32 2147483647, %v4980
    %vm5081 = vcmp.eq.f32.partialorder %v5080, 8.507059e+37
    %v5082 = vand.u32 %v4980, 2147483648
    %v5083 = vor.u32 1.1754944e-38, %v5082
    %v5084 = vsel %vm5081, %v5083, %v5079
    %v5085 = vmul.f32 1.0, %v5084
    %v5086 = vpack.c.bf16 %v5010, %v4995
    %v5087 = vpack.c.bf16 %v5040, %v5025
    %v5088 = vpack.c.bf16 %v5070, %v5055
    %v5089 = vpack.c.bf16 %v5085, %v5085
    %v5094 = vrot.slane %v5086, 3
    %v5095 = vrot.slane %v5087, 6
    %v5096 = vrot.slane %v5087, 1
    %v5097 = vrot.slane %v5088, 4
    %v5098 = vrot.slane %v5088, 7
    %v5099 = vrot.slane %v5089, 2
    %v5100 = vrot.slane %v5089, 5
    %vm5101 = vcmask 1040384
    %v5104 = vsel %vm5101, %v5086, %v5094
    %vm5105 = vcmask 1042434
    %v5108 = vsel %vm5105, %v5095, %v5096
    %v5109 = vsel %vm2508, %v5104, %v5108
    %vm5110 = vcmask 1044484
    %v5113 = vsel %vm5110, %v5097, %v5098
    %vm5114 = vcmask 1046534
    %v5117 = vsel %vm5114, %v5099, %v5100
    %vm5118 = vcmask 1045508
    %v5119 = vsel %vm5118, %v5113, %v5117
    %vm5120 = vcmask 1043456
    %v5121 = vsel %vm5120, %v5109, %v5119
    %vm5123 = vcmask 1041409
    %vm5124 = vmor %vm5123, %vm5101
    %vm5125 = vmor %vm5105, %vm5124
    %vm5126 = vcmask 1043459
    %vm5127 = vmor %vm5126, %vm5125
    %vm5128 = vmor %vm5110, %vm5127
    %vm5129 = vcmask 1045509
    %vm5130 = vmor %vm5129, %vm5128
    %vm5131 = vcmask 129030
    %vm5132 = vmor %vm5131, %vm5130
    %5133 = vst.msk [vmem:[%s20] sm:$0x7f] %vm5132, %v5121
    %vm5134 = vcmask 156672
    %5135 = vst.msk [vmem:[#allocation2] sm:$0x3] %vm5134, %v2397
    %5136 = vst.msk [vmem:[#allocation4] sm:$0x3] %vm5134, %v2478
    // Predicated region
    $region82: #{vae_forward.1} parent=1 // pred_check
      _
    $region83: #{vae_forward.1} parent=1 // pred_check_branch
      %5138 = sbr.rel (0) target = $region85
    $region84: #{vae_forward.1} parent=1 // pred_region
      _
    $region85: #{vae_forward.1} parent=1 // pred_fallthru
      _
    // Predicated region
    $region86: #{vae_forward.1} parent=1 // pred_check
      _
    $region87: #{vae_forward.1} parent=1 // pred_check_branch
      %5140 = sbr.rel (0) target = $region89
    $region88: #{vae_forward.1} parent=1 // pred_region
      %5142 = vsyncadd [#allocation3], 0
      %s5144 = sshll.u32 [#allocation2], 4
      %s5145 = int_to_ptr.vmem [resolvable:$true] %s5144
      %s5146 = sshll.u32 %s21, 4
      %s5147 = int_to_ptr.hbm [resolvable:$true] %s5146
      %5149 = dma.vmem_to_hbm [thread:$0]  %s5145, 32, %s5147, [#allocation3]
    $region89: #{vae_forward.1} parent=1 // pred_fallthru
      _
    // Predicated region
    $region90: #{vae_forward.1} parent=1 // pred_check
      _
    $region91: #{vae_forward.1} parent=1 // pred_check_branch
      %5151 = sbr.rel (0) target = $region93
    $region92: #{vae_forward.1} parent=1 // pred_region
      %5153 = vsyncadd [#allocation5], 0
      %s5155 = sshll.u32 [#allocation4], 4
      %s5156 = int_to_ptr.vmem [resolvable:$true] %s5155
      %s5157 = sshll.u32 %s22, 4
      %s5158 = int_to_ptr.hbm [resolvable:$true] %s5157
      %5160 = dma.vmem_to_hbm [thread:$0]  %s5156, 32, %s5158, [#allocation5]
    $region93: #{vae_forward.1} parent=1 // pred_fallthru
      _
    // Predicated region
    $region94: #{vae_forward.1} parent=1 // pred_check
      _
    $region95: #{vae_forward.1} parent=1 // pred_check_branch
      %5162 = sbr.rel (0) target = $region97
    $region96: #{vae_forward.1} parent=1 // pred_region
      _
    $region97: #{vae_forward.1} parent=1 // pred_fallthru
      _
    // Predicated region
    $region98: #{vae_forward.1} parent=1 // pred_check
      _
    $region99: #{vae_forward.1} parent=1 // pred_check_branch
      %5164 = sbr.rel (0) target = $region101
    $region100: #{vae_forward.1} parent=1 // pred_region
      %5166 = dma.done [#allocation3], 32
    $region101: #{vae_forward.1} parent=1 // pred_fallthru
      _
    // Predicated region
    $region102: #{vae_forward.1} parent=1 // pred_check
      _
    $region103: #{vae_forward.1} parent=1 // pred_check_branch
      %5168 = sbr.rel (0) target = $region105
    $region104: #{vae_forward.1} parent=1 // pred_region
      %5170 = dma.done [#allocation5], 32
    $region105: #{vae_forward.1} parent=1 // pred_fallthru
      _
    %5171 = vsyncpa [#allocation3], 1
    %5172 = vsyncpa [#allocation5], 1

</llo_original>
